<compile_context>
chip_gen: v6e
topology: v6e:2x2x1
jax: 0.10.0
libtpu: 0.0.40
codegen_flags: <defaults>
</compile_context>

<pallas_src>
import functools

import jax
import jax.numpy as jnp
from jax.experimental import pallas as pl
from jax.experimental.pallas import tpu as pltpu


# ------------------------------ fused kernel --------------------------------

def _fused_encoder_kernel(num_heads,
                          x_ref, keep_ref,
                          wqkv_ref, bqkv_ref, wo_ref, bo_ref,
                          ln1w_ref, ln1b_ref,
                          w1_ref, b1_ref, w2_ref, b2_ref,
                          ln2w_ref, ln2b_ref,
                          out_ref, h_ref):
    """Grid = (batch_block, layer). TB sequences per step; activation in VMEM."""
    l = pl.program_id(1)
    num_layers = pl.num_programs(1)

    TB, S, D = x_ref.shape
    NH = num_heads
    dh = D // NH
    M = TB * S

    @pl.when(l == 0)
    def _():
        h_ref[...] = x_ref[...].reshape(M, D).astype(jnp.float32)

    x = h_ref[...]                                  # (M, D) running activation, f32
    keep = keep_ref[...].astype(jnp.float32)        # (TB, 1, S): 1 = token, 0 = pad
    mbias = (keep - 1.0) * 1e9                      # 0 or -1e9 additive key bias

    # --- fused QKV projection (bf16 MXU inputs, f32 accumulation). 1/sqrt(dh)
    #     is folded into the Q columns of wqkv/bqkv on the host.
    qkv = jnp.dot(x.astype(jnp.bfloat16), wqkv_ref[0],
                  preferred_element_type=jnp.float32) + bqkv_ref[0]        # (M, 3D)

    # --- attention: per-sequence (TB is small), heads batched in the einsums.
    parts = []
    for b in range(TB):
        rows = qkv[b * S:(b + 1) * S]                                      # (S, 3D)
        q = rows[:, :D].reshape(S, NH, dh).swapaxes(0, 1)                  # (NH, S, dh)
        k = rows[:, D:2 * D].reshape(S, NH, dh).swapaxes(0, 1)
        v = rows[:, 2 * D:].reshape(S, NH, dh).swapaxes(0, 1)
        s = jnp.einsum('hqd,hkd->hqk',
                       q.astype(jnp.bfloat16), k.astype(jnp.bfloat16),
                       preferred_element_type=jnp.float32)                 # (NH, S, S)
        s = s + mbias[b]                                                   # (1, S) bcast
        s = s - jnp.max(s, axis=-1, keepdims=True)
        p = jnp.exp(s)
        p = p * pl.reciprocal(jnp.sum(p, axis=-1, keepdims=True), approx=True)
        ctx = jnp.einsum('hqk,hkd->hqd',
                         p.astype(jnp.bfloat16), v.astype(jnp.bfloat16),
                         preferred_element_type=jnp.float32)               # (NH, S, dh)
        parts.append(ctx.swapaxes(0, 1).reshape(S, D))
    attn = parts[0] if TB == 1 else jnp.concatenate(parts, axis=0)         # (M, D)

    attn = jnp.dot(attn.astype(jnp.bfloat16), wo_ref[0],
                   preferred_element_type=jnp.float32) + bo_ref[0]

    # --- residual + LayerNorm 1 (f32)
    y = x + attn
    mu = jnp.mean(y, axis=-1, keepdims=True)
    var = jnp.mean((y - mu) ** 2, axis=-1, keepdims=True)
    y = (y - mu) * jax.lax.rsqrt(var + 1e-5) * ln1w_ref[0] + ln1b_ref[0]

    # --- feed-forward (ReLU), bf16 matmuls with f32 accumulation
    h1 = jnp.dot(y.astype(jnp.bfloat16), w1_ref[0],
                 preferred_element_type=jnp.float32) + b1_ref[0]
    h1 = jnp.maximum(h1, 0.0)
    h2 = jnp.dot(h1.astype(jnp.bfloat16), w2_ref[0],
                 preferred_element_type=jnp.float32) + b2_ref[0]

    # --- residual + LayerNorm 2 (f32)
    z = y + h2
    mu2 = jnp.mean(z, axis=-1, keepdims=True)
    var2 = jnp.mean((z - mu2) ** 2, axis=-1, keepdims=True)
    z = (z - mu2) * jax.lax.rsqrt(var2 + 1e-5) * ln2w_ref[0] + ln2b_ref[0]

    h_ref[...] = z   # carry to next layer (stays in VMEM)

    # --- fused masked mean pooling on the last layer; only (TB, D) leaves chip
    @pl.when(l == num_layers - 1)
    def _():
        z3 = z.reshape(TB, S, D)
        summed = jnp.einsum('bos,bsd->bod', keep, z3,
                            preferred_element_type=jnp.float32)            # (TB, 1, D)
        counts = jnp.maximum(jnp.sum(keep, axis=-1, keepdims=True), 1.0)   # (TB, 1, 1)
        out_ref[...] = (summed / counts).astype(out_ref.dtype)             # exact divide


# -------------------------------- wrapper ------------------------------------

def transformer_korean_encoder(x, padding_mask, packed, num_heads, target_rows=256):
    """Matches TransformerKoreanEncoder.forward (eval mode):
       stacked post-LN TransformerEncoderLayers + masked mean pooling."""
    B, S, D = x.shape
    L = packed["wqkv"].shape[0]
    H = packed["w1"].shape[2]

    # Batch-block size: amortize weight streaming / fill the MXU M dimension.
    TB = max(1, min(B, (target_rows + S - 1) // S))
    nb = (B + TB - 1) // TB
    Bp = nb * TB

    if padding_mask is None:
        keep = jnp.ones((B, 1, S), jnp.float32)
    else:
        pm = padding_mask.astype(jnp.bool_)          # True == padded (PyTorch convention)
        keep = (~pm).astype(jnp.float32)[:, None, :]

    if Bp != B:                                      # pad batch; padded rows are fully masked
        x = jnp.pad(x, ((0, Bp - B), (0, 0), (0, 0)))
        keep = jnp.pad(keep, ((0, Bp - B), (0, 0), (0, 0)))

    seq = lambda shape: pl.BlockSpec(shape, lambda i, l: (i, 0, 0))
    lay = lambda shape: pl.BlockSpec(shape, lambda i, l: (l, 0, 0))

    in_specs = [
        seq((TB, S, D)),           # x
        seq((TB, 1, S)),           # keep mask
        lay((1, D, 3 * D)),        # wqkv (bf16)
        lay((1, 1, 3 * D)),        # bqkv
        lay((1, D, D)),            # wo (bf16)
        lay((1, 1, D)),            # bo
        lay((1, 1, D)),            # ln1w
        lay((1, 1, D)),            # ln1b
        lay((1, D, H)),            # w1 (bf16)
        lay((1, 1, H)),            # b1
        lay((1, H, D)),            # w2 (bf16)
        lay((1, 1, D)),            # b2
        lay((1, 1, D)),            # ln2w
        lay((1, 1, D)),            # ln2b
    ]

    # Explicit VMEM budget from the per-step footprint (double-buffered weight
    # stream + activations).  Clamped to 64 MiB so it is valid on v7x as well.
    w_bf16 = 2 * 2 * (D * 3 * D + D * D + D * H + H * D)
    small = 2 * 4 * (4 * D + 2 * H + 8 * D)
    act_io = 2 * 4 * (TB * S * D + TB * S + TB * D)
    carry = 4 * TB * S * D
    interm = 4 * (TB * S * 3 * D + num_heads * S * S + TB * S * H + 4 * TB * S * D)
    vlim = int(min(64 * 2**20, max(32 * 2**20, 1.5 * (w_bf16 + small + act_io + carry + interm))))

    out = pl.pallas_call(
        functools.partial(_fused_encoder_kernel, num_heads),
        out_shape=jax.ShapeDtypeStruct((Bp, 1, D), jnp.float32),
        grid=(nb, L),
        in_specs=in_specs,
        out_specs=seq((TB, 1, D)),
        scratch_shapes=[pltpu.VMEM((TB * S, D), jnp.float32)],
        compiler_params=pltpu.CompilerParams(
            dimension_semantics=("parallel", "arbitrary"),
            vmem_limit_bytes=vlim),
    )(x, keep,
      packed["wqkv"], packed["bqkv"], packed["wo"], packed["bo"],
      packed["ln1w"], packed["ln1b"], packed["w1"], packed["b1"],
      packed["w2"], packed["b2"], packed["ln2w"], packed["ln2b"])

    return out[:B, 0, :].astype(x.dtype)


# ----------------------------- params (host side) ----------------------------

def init_params(key, input_dim, hidden_dim, num_layers):
    """Per-layer weights, pre-transposed so y = x @ W + b (PyTorch-equivalent)."""
    params = []
    s = 0.02
    for _ in range(num_layers):
        key, k0, k1, k2, k3, k4, k5 = jax.random.split(key, 7)
        params.append(dict(
            wq=jax.random.normal(k0, (input_dim, input_dim), jnp.float32) * s,
            wk=jax.random.normal(k1, (input_dim, input_dim), jnp.float32) * s,
            wv=jax.random.normal(k2, (input_dim, input_dim), jnp.float32) * s,
            wo=jax.random.normal(k3, (input_dim, input_dim), jnp.float32) * s,
            bq=jnp.zeros((1, input_dim), jnp.float32),
            bk=jnp.zeros((1, input_dim), jnp.float32),
            bv=jnp.zeros((1, input_dim), jnp.float32),
            bo=jnp.zeros((1, input_dim), jnp.float32),
            ln1w=jnp.ones((1, input_dim), jnp.float32),
            ln1b=jnp.zeros((1, input_dim), jnp.float32),
            w1=jax.random.normal(k4, (input_dim, hidden_dim), jnp.float32) * s,
            b1=jnp.zeros((1, hidden_dim), jnp.float32),
            w2=jax.random.normal(k5, (hidden_dim, input_dim), jnp.float32) * s,
            b2=jnp.zeros((1, input_dim), jnp.float32),
            ln2w=jnp.ones((1, input_dim), jnp.float32),
            ln2b=jnp.zeros((1, input_dim), jnp.float32),
        ))
    return params


def pack_params(params, num_heads):
    """Stack layers, fuse Q|K|V, fold the 1/sqrt(dh) score scale into Q, and
    cast matmul weights to bf16 (biases / LN params stay f32)."""
    D = params[0]["wq"].shape[0]
    dh = D // num_heads
    scale = dh ** -0.5
    stack = lambda name: jnp.stack([p[name] for p in params], axis=0)

    wqkv = jnp.concatenate([stack("wq") * scale, stack("wk"), stack("wv")], axis=-1)
    bqkv = jnp.concatenate([stack("bq") * scale, stack("bk"), stack("bv")], axis=-1)

    return dict(
        wqkv=wqkv.astype(jnp.bfloat16),                # (L, D, 3D)
        bqkv=bqkv.astype(jnp.float32),                 # (L, 1, 3D)
        wo=stack("wo").astype(jnp.bfloat16),           # (L, D, D)
        bo=stack("bo").astype(jnp.float32),            # (L, 1, D)
        ln1w=stack("ln1w"), ln1b=stack("ln1b"),        # (L, 1, D)
        w1=stack("w1").astype(jnp.bfloat16),           # (L, D, H)
        b1=stack("b1").astype(jnp.float32),            # (L, 1, H)
        w2=stack("w2").astype(jnp.bfloat16),           # (L, H, D)
        b2=stack("b2").astype(jnp.float32),            # (L, 1, D)
        ln2w=stack("ln2w"), ln2b=stack("ln2b"),        # (L, 1, D)
    )


if __name__ == "__main__":
    # Small shapes consistent with the module: input_dim=32, hidden_dim=64,
    # num_heads=4, num_layers=2, batch=2, seq=8  (dropout -> eval/no-op).
    B, S, D, HID, NH, NL = 2, 8, 32, 64, 4, 2
    key = jax.random.PRNGKey(0)
    kx, kp = jax.random.split(key, 2)

    x = jax.random.normal(kx, (B, S, D), jnp.float32)
    # src_key_padding_mask convention: True == padded position
    lengths = jnp.array([[8], [6]], dtype=jnp.int32)
    padding_mask = jnp.arange(S, dtype=jnp.int32)[None, :] >= lengths   # (B, S) bool

    packed = pack_params(init_params(kp, D, HID, NL), NH)

    out = transformer_korean_encoder(x, padding_mask, packed, NH)
    out = jax.block_until_ready(out)
    assert out.shape == (B, D) and bool(jnp.all(jnp.isfinite(out)))
    print("KERNEL_OK")
</pallas_src>

<mosaic_0001>
module attributes {stable_mosaic.version = 11 : i64} {
  func.func @_fused_encoder_kernel(%arg0: i32, %arg1: i32, %arg2: memref<2x8x32xf32, #tpu.memory_space<vmem>>, %arg3: memref<2x1x8xf32, #tpu.memory_space<vmem>>, %arg4: memref<1x32x96xbf16, #tpu.memory_space<vmem>>, %arg5: memref<1x1x96xf32, #tpu.memory_space<vmem>>, %arg6: memref<1x32x32xbf16, #tpu.memory_space<vmem>>, %arg7: memref<1x1x32xf32, #tpu.memory_space<vmem>>, %arg8: memref<1x1x32xf32, #tpu.memory_space<vmem>>, %arg9: memref<1x1x32xf32, #tpu.memory_space<vmem>>, %arg10: memref<1x32x64xbf16, #tpu.memory_space<vmem>>, %arg11: memref<1x1x64xf32, #tpu.memory_space<vmem>>, %arg12: memref<1x64x32xbf16, #tpu.memory_space<vmem>>, %arg13: memref<1x1x32xf32, #tpu.memory_space<vmem>>, %arg14: memref<1x1x32xf32, #tpu.memory_space<vmem>>, %arg15: memref<1x1x32xf32, #tpu.memory_space<vmem>>, %arg16: memref<2x1x32xf32, #tpu.memory_space<vmem>>, %arg17: memref<16x32xf32, #tpu.memory_space<vmem>>) attributes {dimension_semantics = [#tpu.dimension_semantics<parallel>, #tpu.dimension_semantics<arbitrary>], iteration_bounds = array<i64: 1, 2>, scalar_prefetch = 0 : i64, scratch_operands = 1 : i64, tpu.core_type = #tpu.core_type<tc>, window_params = [{transform_indices = @transform_0, window_bounds = array<i64: 2, 8, 32>}, {transform_indices = @transform_1, window_bounds = array<i64: 2, 1, 8>}, {transform_indices = @transform_2, window_bounds = array<i64: 1, 32, 96>}, {transform_indices = @transform_3, window_bounds = array<i64: 1, 1, 96>}, {transform_indices = @transform_4, window_bounds = array<i64: 1, 32, 32>}, {transform_indices = @transform_5, window_bounds = array<i64: 1, 1, 32>}, {transform_indices = @transform_6, window_bounds = array<i64: 1, 1, 32>}, {transform_indices = @transform_7, window_bounds = array<i64: 1, 1, 32>}, {transform_indices = @transform_8, window_bounds = array<i64: 1, 32, 64>}, {transform_indices = @transform_9, window_bounds = array<i64: 1, 1, 64>}, {transform_indices = @transform_10, window_bounds = array<i64: 1, 64, 32>}, {transform_indices = @transform_11, window_bounds = array<i64: 1, 1, 32>}, {transform_indices = @transform_12, window_bounds = array<i64: 1, 1, 32>}, {transform_indices = @transform_13, window_bounds = array<i64: 1, 1, 32>}, {transform_indices = @transform_14, window_bounds = array<i64: 2, 1, 32>}]} {
    %c0_i32 = arith.constant 0 : i32
    %0 = arith.cmpi eq, %arg1, %c0_i32 : i32
    %1 = arith.extui %0 : i1 to i32
    %c0_i32_0 = arith.constant 0 : i32
    %2 = arith.cmpi ne, %1, %c0_i32_0 : i32
    scf.if %2 {
      %c0_68 = arith.constant 0 : index
      %c0_69 = arith.constant 0 : index
      %c0_70 = arith.constant 0 : index
      %168 = vector.load %arg2[%c0_68, %c0_69, %c0_70] : memref<2x8x32xf32, #tpu.memory_space<vmem>>, vector<2x8x32xf32>
      %169 = vector.shape_cast %168 : vector<2x8x32xf32> to vector<16x32xf32>
      %c0_71 = arith.constant 0 : index
      %c0_72 = arith.constant 0 : index
      %170 = vector.load %arg17[%c0_71, %c0_72] : memref<16x32xf32, #tpu.memory_space<vmem>>, vector<16x32xf32>
      tpu.vector_store %arg17[%c0_71, %c0_72], %169 {strides = array<i32>} : memref<16x32xf32, #tpu.memory_space<vmem>>, vector<16x32xf32>,
    } else {
    }
    %c0 = arith.constant 0 : index
    %c0_1 = arith.constant 0 : index
    %3 = vector.load %arg17[%c0, %c0_1] : memref<16x32xf32, #tpu.memory_space<vmem>>, vector<16x32xf32>
    %c0_2 = arith.constant 0 : index
    %c0_3 = arith.constant 0 : index
    %c0_4 = arith.constant 0 : index
    %4 = vector.load %arg3[%c0_2, %c0_3, %c0_4] : memref<2x1x8xf32, #tpu.memory_space<vmem>>, vector<2x1x8xf32>
    %cst = arith.constant 1.000000e+00 : f32
    %5 = vector.broadcast %cst : f32 to vector<2x1x8xf32>
    %6 = arith.subf %4, %5 : vector<2x1x8xf32>
    %cst_5 = arith.constant 1.000000e+09 : f32
    %7 = vector.broadcast %cst_5 : f32 to vector<2x1x8xf32>
    %8 = arith.mulf %6, %7 : vector<2x1x8xf32>
    %9 = arith.truncf %3 : vector<16x32xf32> to vector<16x32xbf16>
    %c0_6 = arith.constant 0 : index
    %c0_7 = arith.constant 0 : index
    %c0_8 = arith.constant 0 : index
    %10 = vector.load %arg4[%c0_6, %c0_7, %c0_8] : memref<1x32x96xbf16, #tpu.memory_space<vmem>>, vector<1x32x96xbf16>
    %11 = vector.shape_cast %10 : vector<1x32x96xbf16> to vector<32x96xbf16>
    %cst_9 = arith.constant dense<0.000000e+00> : vector<16x96xf32>
    %12 = tpu.matmul %9, %11, %cst_9 {dimension_numbers = #tpu.dot_dimension_numbers<[1], [0], [0], [1], [0, 0, 1, 1], [], []>} : vector<16x32xbf16>, vector<32x96xbf16>, vector<16x96xf32> -> vector<16x96xf32>
    %c0_10 = arith.constant 0 : index
    %c0_11 = arith.constant 0 : index
    %c0_12 = arith.constant 0 : index
    %13 = vector.load %arg5[%c0_10, %c0_11, %c0_12] : memref<1x1x96xf32, #tpu.memory_space<vmem>>, vector<1x1x96xf32>
    %14 = vector.shape_cast %13 : vector<1x1x96xf32> to vector<1x96xf32>
    %15 = vector.broadcast %14 : vector<1x96xf32> to vector<16x96xf32>
    %16 = arith.addf %12, %15 : vector<16x96xf32>
    %17 = vector.extract_strided_slice %16 {offsets = [0, 0], sizes = [8, 96], strides = [1, 1]} : vector<16x96xf32> to vector<8x96xf32>
    %18 = vector.extract_strided_slice %17 {offsets = [0, 0], sizes = [8, 32], strides = [1, 1]} : vector<8x96xf32> to vector<8x32xf32>
    %19 = vector.shape_cast %18 : vector<8x32xf32> to vector<8x4x8xf32>
    %20 = tpu.transpose %19, [1, 0, 2] : vector<8x4x8xf32> -> vector<4x8x8xf32>
    %21 = vector.extract_strided_slice %17 {offsets = [0, 32], sizes = [8, 32], strides = [1, 1]} : vector<8x96xf32> to vector<8x32xf32>
    %22 = vector.shape_cast %21 : vector<8x32xf32> to vector<8x4x8xf32>
    %23 = tpu.transpose %22, [1, 0, 2] : vector<8x4x8xf32> -> vector<4x8x8xf32>
    %24 = vector.extract_strided_slice %17 {offsets = [0, 64], sizes = [8, 32], strides = [1, 1]} : vector<8x96xf32> to vector<8x32xf32>
    %25 = vector.shape_cast %24 : vector<8x32xf32> to vector<8x4x8xf32>
    %26 = tpu.transpose %25, [1, 0, 2] : vector<8x4x8xf32> -> vector<4x8x8xf32>
    %27 = arith.truncf %20 : vector<4x8x8xf32> to vector<4x8x8xbf16>
    %28 = arith.truncf %23 : vector<4x8x8xf32> to vector<4x8x8xbf16>
    "tpu.trace_start"() <{level = 10 : i32, message = "hqd,hkd->hqk"}> : () -> ()
    %cst_13 = arith.constant dense<0.000000e+00> : vector<4x8x8xf32>
    %29 = tpu.matmul %27, %28, %cst_13 {dimension_numbers = #tpu.dot_dimension_numbers<[2], [2], [1], [1], [0, 0, 0, 1, 1, 1], [0], [0]>} : vector<4x8x8xbf16>, vector<4x8x8xbf16>, vector<4x8x8xf32> -> vector<4x8x8xf32>
    "tpu.trace_stop"() : () -> ()
    %30 = vector.extract_strided_slice %8 {offsets = [0, 0, 0], sizes = [1, 1, 8], strides = [1, 1, 1]} : vector<2x1x8xf32> to vector<1x1x8xf32>
    %31 = vector.shape_cast %30 : vector<1x1x8xf32> to vector<1x8xf32>
    %32 = vector.shape_cast %31 : vector<1x8xf32> to vector<1x1x8xf32>
    %33 = vector.broadcast %32 : vector<1x1x8xf32> to vector<4x8x8xf32>
    %34 = arith.addf %29, %33 : vector<4x8x8xf32>
    %cst_14 = arith.constant dense<0xFF800000> : vector<4x8xf32>
    %35 = vector.multi_reduction <maximumf>, %34, %cst_14 [2] : vector<4x8x8xf32> to vector<4x8xf32>
    %36 = vector.shape_cast %35 : vector<4x8xf32> to vector<4x8x1xf32>
    %37 = vector.broadcast %36 : vector<4x8x1xf32> to vector<4x8x8xf32>
    %38 = arith.subf %34, %37 : vector<4x8x8xf32>
    %39 = math.exp %38 : vector<4x8x8xf32>
    %cst_15 = arith.constant dense<0.000000e+00> : vector<4x8xf32>
    %40 = vector.multi_reduction <add>, %39, %cst_15 [2] : vector<4x8x8xf32> to vector<4x8xf32>
    %41 = vector.shape_cast %40 : vector<4x8xf32> to vector<4x8x1xf32>
    %42 = tpu.reciprocal %41 {approx = true} : vector<4x8x1xf32> -> vector<4x8x1xf32>
    %43 = vector.broadcast %42 : vector<4x8x1xf32> to vector<4x8x8xf32>
    %44 = arith.mulf %39, %43 : vector<4x8x8xf32>
    %45 = arith.truncf %44 : vector<4x8x8xf32> to vector<4x8x8xbf16>
    %46 = arith.truncf %26 : vector<4x8x8xf32> to vector<4x8x8xbf16>
    "tpu.trace_start"() <{level = 10 : i32, message = "hqk,hkd->hqd"}> : () -> ()
    %cst_16 = arith.constant dense<0.000000e+00> : vector<4x8x8xf32>
    %47 = tpu.matmul %45, %46, %cst_16 {dimension_numbers = #tpu.dot_dimension_numbers<[2], [1], [1], [2], [0, 0, 0, 1, 1, 2], [0], [0]>} : vector<4x8x8xbf16>, vector<4x8x8xbf16>, vector<4x8x8xf32> -> vector<4x8x8xf32>
    "tpu.trace_stop"() : () -> ()
    %48 = tpu.transpose %47, [1, 0, 2] : vector<4x8x8xf32> -> vector<8x4x8xf32>
    %49 = vector.shape_cast %48 : vector<8x4x8xf32> to vector<8x32xf32>
    %50 = vector.extract_strided_slice %16 {offsets = [8, 0], sizes = [8, 96], strides = [1, 1]} : vector<16x96xf32> to vector<8x96xf32>
    %51 = vector.extract_strided_slice %50 {offsets = [0, 0], sizes = [8, 32], strides = [1, 1]} : vector<8x96xf32> to vector<8x32xf32>
    %52 = vector.shape_cast %51 : vector<8x32xf32> to vector<8x4x8xf32>
    %53 = tpu.transpose %52, [1, 0, 2] : vector<8x4x8xf32> -> vector<4x8x8xf32>
    %54 = vector.extract_strided_slice %50 {offsets = [0, 32], sizes = [8, 32], strides = [1, 1]} : vector<8x96xf32> to vector<8x32xf32>
    %55 = vector.shape_cast %54 : vector<8x32xf32> to vector<8x4x8xf32>
    %56 = tpu.transpose %55, [1, 0, 2] : vector<8x4x8xf32> -> vector<4x8x8xf32>
    %57 = vector.extract_strided_slice %50 {offsets = [0, 64], sizes = [8, 32], strides = [1, 1]} : vector<8x96xf32> to vector<8x32xf32>
    %58 = vector.shape_cast %57 : vector<8x32xf32> to vector<8x4x8xf32>
    %59 = tpu.transpose %58, [1, 0, 2] : vector<8x4x8xf32> -> vector<4x8x8xf32>
    %60 = arith.truncf %53 : vector<4x8x8xf32> to vector<4x8x8xbf16>
    %61 = arith.truncf %56 : vector<4x8x8xf32> to vector<4x8x8xbf16>
    "tpu.trace_start"() <{level = 10 : i32, message = "hqd,hkd->hqk"}> : () -> ()
    %cst_17 = arith.constant dense<0.000000e+00> : vector<4x8x8xf32>
    %62 = tpu.matmul %60, %61, %cst_17 {dimension_numbers = #tpu.dot_dimension_numbers<[2], [2], [1], [1], [0, 0, 0, 1, 1, 1], [0], [0]>} : vector<4x8x8xbf16>, vector<4x8x8xbf16>, vector<4x8x8xf32> -> vector<4x8x8xf32>
    "tpu.trace_stop"() : () -> ()
    %63 = vector.extract_strided_slice %8 {offsets = [1, 0, 0], sizes = [1, 1, 8], strides = [1, 1, 1]} : vector<2x1x8xf32> to vector<1x1x8xf32>
    %64 = vector.shape_cast %63 : vector<1x1x8xf32> to vector<1x8xf32>
    %65 = vector.shape_cast %64 : vector<1x8xf32> to vector<1x1x8xf32>
    %66 = vector.broadcast %65 : vector<1x1x8xf32> to vector<4x8x8xf32>
    %67 = arith.addf %62, %66 : vector<4x8x8xf32>
    %cst_18 = arith.constant dense<0xFF800000> : vector<4x8xf32>
    %68 = vector.multi_reduction <maximumf>, %67, %cst_18 [2] : vector<4x8x8xf32> to vector<4x8xf32>
    %69 = vector.shape_cast %68 : vector<4x8xf32> to vector<4x8x1xf32>
    %70 = vector.broadcast %69 : vector<4x8x1xf32> to vector<4x8x8xf32>
    %71 = arith.subf %67, %70 : vector<4x8x8xf32>
    %72 = math.exp %71 : vector<4x8x8xf32>
    %cst_19 = arith.constant dense<0.000000e+00> : vector<4x8xf32>
    %73 = vector.multi_reduction <add>, %72, %cst_19 [2] : vector<4x8x8xf32> to vector<4x8xf32>
    %74 = vector.shape_cast %73 : vector<4x8xf32> to vector<4x8x1xf32>
    %75 = tpu.reciprocal %74 {approx = true} : vector<4x8x1xf32> -> vector<4x8x1xf32>
    %76 = vector.broadcast %75 : vector<4x8x1xf32> to vector<4x8x8xf32>
    %77 = arith.mulf %72, %76 : vector<4x8x8xf32>
    %78 = arith.truncf %77 : vector<4x8x8xf32> to vector<4x8x8xbf16>
    %79 = arith.truncf %59 : vector<4x8x8xf32> to vector<4x8x8xbf16>
    "tpu.trace_start"() <{level = 10 : i32, message = "hqk,hkd->hqd"}> : () -> ()
    %cst_20 = arith.constant dense<0.000000e+00> : vector<4x8x8xf32>
    %80 = tpu.matmul %78, %79, %cst_20 {dimension_numbers = #tpu.dot_dimension_numbers<[2], [1], [1], [2], [0, 0, 0, 1, 1, 2], [0], [0]>} : vector<4x8x8xbf16>, vector<4x8x8xbf16>, vector<4x8x8xf32> -> vector<4x8x8xf32>
    "tpu.trace_stop"() : () -> ()
    %81 = tpu.transpose %80, [1, 0, 2] : vector<4x8x8xf32> -> vector<8x4x8xf32>
    %82 = vector.shape_cast %81 : vector<8x4x8xf32> to vector<8x32xf32>
    %83 = tpu.concatenate %49, %82 in 0 : vector<8x32xf32>, vector<8x32xf32> -> vector<16x32xf32>
    %84 = arith.truncf %83 : vector<16x32xf32> to vector<16x32xbf16>
    %c0_21 = arith.constant 0 : index
    %c0_22 = arith.constant 0 : index
    %c0_23 = arith.constant 0 : index
    %85 = vector.load %arg6[%c0_21, %c0_22, %c0_23] : memref<1x32x32xbf16, #tpu.memory_space<vmem>>, vector<1x32x32xbf16>
    %86 = vector.shape_cast %85 : vector<1x32x32xbf16> to vector<32x32xbf16>
    %cst_24 = arith.constant dense<0.000000e+00> : vector<16x32xf32>
    %87 = tpu.matmul %84, %86, %cst_24 {dimension_numbers = #tpu.dot_dimension_numbers<[1], [0], [0], [1], [0, 0, 1, 1], [], []>} : vector<16x32xbf16>, vector<32x32xbf16>, vector<16x32xf32> -> vector<16x32xf32>
    %c0_25 = arith.constant 0 : index
    %c0_26 = arith.constant 0 : index
    %c0_27 = arith.constant 0 : index
    %88 = vector.load %arg7[%c0_25, %c0_26, %c0_27] : memref<1x1x32xf32, #tpu.memory_space<vmem>>, vector<1x1x32xf32>
    %89 = vector.shape_cast %88 : vector<1x1x32xf32> to vector<1x32xf32>
    %90 = vector.broadcast %89 : vector<1x32xf32> to vector<16x32xf32>
    %91 = arith.addf %87, %90 : vector<16x32xf32>
    %92 = arith.addf %3, %91 : vector<16x32xf32>
    %cst_28 = arith.constant dense<0.000000e+00> : vector<16xf32>
    %93 = vector.multi_reduction <add>, %92, %cst_28 [1] : vector<16x32xf32> to vector<16xf32>
    %94 = vector.shape_cast %93 : vector<16xf32> to vector<16x1xf32>
    %cst_29 = arith.constant 3.200000e+01 : f32
    %95 = vector.broadcast %cst_29 : f32 to vector<16x1xf32>
    %96 = arith.divf %94, %95 : vector<16x1xf32>
    %97 = vector.broadcast %96 : vector<16x1xf32> to vector<16x32xf32>
    %98 = arith.subf %92, %97 : vector<16x32xf32>
    %99 = arith.mulf %98, %98 : vector<16x32xf32>
    %cst_30 = arith.constant dense<0.000000e+00> : vector<16xf32>
    %100 = vector.multi_reduction <add>, %99, %cst_30 [1] : vector<16x32xf32> to vector<16xf32>
    %101 = vector.shape_cast %100 : vector<16xf32> to vector<16x1xf32>
    %cst_31 = arith.constant 3.200000e+01 : f32
    %102 = vector.broadcast %cst_31 : f32 to vector<16x1xf32>
    %103 = arith.divf %101, %102 : vector<16x1xf32>
    %104 = vector.broadcast %96 : vector<16x1xf32> to vector<16x32xf32>
    %105 = arith.subf %92, %104 : vector<16x32xf32>
    %cst_32 = arith.constant 9.99999974E-6 : f32
    %106 = vector.broadcast %cst_32 : f32 to vector<16x1xf32>
    %107 = arith.addf %103, %106 : vector<16x1xf32>
    %108 = math.rsqrt %107 : vector<16x1xf32>
    %109 = vector.broadcast %108 : vector<16x1xf32> to vector<16x32xf32>
    %110 = arith.mulf %105, %109 : vector<16x32xf32>
    %c0_33 = arith.constant 0 : index
    %c0_34 = arith.constant 0 : index
    %c0_35 = arith.constant 0 : index
    %111 = vector.load %arg8[%c0_33, %c0_34, %c0_35] : memref<1x1x32xf32, #tpu.memory_space<vmem>>, vector<1x1x32xf32>
    %112 = vector.shape_cast %111 : vector<1x1x32xf32> to vector<1x32xf32>
    %113 = vector.broadcast %112 : vector<1x32xf32> to vector<16x32xf32>
    %114 = arith.mulf %110, %113 : vector<16x32xf32>
    %c0_36 = arith.constant 0 : index
    %c0_37 = arith.constant 0 : index
    %c0_38 = arith.constant 0 : index
    %115 = vector.load %arg9[%c0_36, %c0_37, %c0_38] : memref<1x1x32xf32, #tpu.memory_space<vmem>>, vector<1x1x32xf32>
    %116 = vector.shape_cast %115 : vector<1x1x32xf32> to vector<1x32xf32>
    %117 = vector.broadcast %116 : vector<1x32xf32> to vector<16x32xf32>
    %118 = arith.addf %114, %117 : vector<16x32xf32>
    %119 = arith.truncf %118 : vector<16x32xf32> to vector<16x32xbf16>
    %c0_39 = arith.constant 0 : index
    %c0_40 = arith.constant 0 : index
    %c0_41 = arith.constant 0 : index
    %120 = vector.load %arg10[%c0_39, %c0_40, %c0_41] : memref<1x32x64xbf16, #tpu.memory_space<vmem>>, vector<1x32x64xbf16>
    %121 = vector.shape_cast %120 : vector<1x32x64xbf16> to vector<32x64xbf16>
    %cst_42 = arith.constant dense<0.000000e+00> : vector<16x64xf32>
    %122 = tpu.matmul %119, %121, %cst_42 {dimension_numbers = #tpu.dot_dimension_numbers<[1], [0], [0], [1], [0, 0, 1, 1], [], []>} : vector<16x32xbf16>, vector<32x64xbf16>, vector<16x64xf32> -> vector<16x64xf32>
    %c0_43 = arith.constant 0 : index
    %c0_44 = arith.constant 0 : index
    %c0_45 = arith.constant 0 : index
    %123 = vector.load %arg11[%c0_43, %c0_44, %c0_45] : memref<1x1x64xf32, #tpu.memory_space<vmem>>, vector<1x1x64xf32>
    %124 = vector.shape_cast %123 : vector<1x1x64xf32> to vector<1x64xf32>
    %125 = vector.broadcast %124 : vector<1x64xf32> to vector<16x64xf32>
    %126 = arith.addf %122, %125 : vector<16x64xf32>
    %cst_46 = arith.constant 0.000000e+00 : f32
    %127 = vector.broadcast %cst_46 : f32 to vector<16x64xf32>
    %128 = arith.maximumf %126, %127 : vector<16x64xf32>
    %129 = arith.truncf %128 : vector<16x64xf32> to vector<16x64xbf16>
    %c0_47 = arith.constant 0 : index
    %c0_48 = arith.constant 0 : index
    %c0_49 = arith.constant 0 : index
    %130 = vector.load %arg12[%c0_47, %c0_48, %c0_49] : memref<1x64x32xbf16, #tpu.memory_space<vmem>>, vector<1x64x32xbf16>
    %131 = vector.shape_cast %130 : vector<1x64x32xbf16> to vector<64x32xbf16>
    %cst_50 = arith.constant dense<0.000000e+00> : vector<16x32xf32>
    %132 = tpu.matmul %129, %131, %cst_50 {dimension_numbers = #tpu.dot_dimension_numbers<[1], [0], [0], [1], [0, 0, 1, 1], [], []>} : vector<16x64xbf16>, vector<64x32xbf16>, vector<16x32xf32> -> vector<16x32xf32>
    %c0_51 = arith.constant 0 : index
    %c0_52 = arith.constant 0 : index
    %c0_53 = arith.constant 0 : index
    %133 = vector.load %arg13[%c0_51, %c0_52, %c0_53] : memref<1x1x32xf32, #tpu.memory_space<vmem>>, vector<1x1x32xf32>
    %134 = vector.shape_cast %133 : vector<1x1x32xf32> to vector<1x32xf32>
    %135 = vector.broadcast %134 : vector<1x32xf32> to vector<16x32xf32>
    %136 = arith.addf %132, %135 : vector<16x32xf32>
    %137 = arith.addf %118, %136 : vector<16x32xf32>
    %cst_54 = arith.constant dense<0.000000e+00> : vector<16xf32>
    %138 = vector.multi_reduction <add>, %137, %cst_54 [1] : vector<16x32xf32> to vector<16xf32>
    %139 = vector.shape_cast %138 : vector<16xf32> to vector<16x1xf32>
    %cst_55 = arith.constant 3.200000e+01 : f32
    %140 = vector.broadcast %cst_55 : f32 to vector<16x1xf32>
    %141 = arith.divf %139, %140 : vector<16x1xf32>
    %142 = vector.broadcast %141 : vector<16x1xf32> to vector<16x32xf32>
    %143 = arith.subf %137, %142 : vector<16x32xf32>
    %144 = arith.mulf %143, %143 : vector<16x32xf32>
    %cst_56 = arith.constant dense<0.000000e+00> : vector<16xf32>
    %145 = vector.multi_reduction <add>, %144, %cst_56 [1] : vector<16x32xf32> to vector<16xf32>
    %146 = vector.shape_cast %145 : vector<16xf32> to vector<16x1xf32>
    %cst_57 = arith.constant 3.200000e+01 : f32
    %147 = vector.broadcast %cst_57 : f32 to vector<16x1xf32>
    %148 = arith.divf %146, %147 : vector<16x1xf32>
    %149 = vector.broadcast %141 : vector<16x1xf32> to vector<16x32xf32>
    %150 = arith.subf %137, %149 : vector<16x32xf32>
    %cst_58 = arith.constant 9.99999974E-6 : f32
    %151 = vector.broadcast %cst_58 : f32 to vector<16x1xf32>
    %152 = arith.addf %148, %151 : vector<16x1xf32>
    %153 = math.rsqrt %152 : vector<16x1xf32>
    %154 = vector.broadcast %153 : vector<16x1xf32> to vector<16x32xf32>
    %155 = arith.mulf %150, %154 : vector<16x32xf32>
    %c0_59 = arith.constant 0 : index
    %c0_60 = arith.constant 0 : index
    %c0_61 = arith.constant 0 : index
    %156 = vector.load %arg14[%c0_59, %c0_60, %c0_61] : memref<1x1x32xf32, #tpu.memory_space<vmem>>, vector<1x1x32xf32>
    %157 = vector.shape_cast %156 : vector<1x1x32xf32> to vector<1x32xf32>
    %158 = vector.broadcast %157 : vector<1x32xf32> to vector<16x32xf32>
    %159 = arith.mulf %155, %158 : vector<16x32xf32>
    %c0_62 = arith.constant 0 : index
    %c0_63 = arith.constant 0 : index
    %c0_64 = arith.constant 0 : index
    %160 = vector.load %arg15[%c0_62, %c0_63, %c0_64] : memref<1x1x32xf32, #tpu.memory_space<vmem>>, vector<1x1x32xf32>
    %161 = vector.shape_cast %160 : vector<1x1x32xf32> to vector<1x32xf32>
    %162 = vector.broadcast %161 : vector<1x32xf32> to vector<16x32xf32>
    %163 = arith.addf %159, %162 : vector<16x32xf32>
    %c0_65 = arith.constant 0 : index
    %c0_66 = arith.constant 0 : index
    %164 = vector.load %arg17[%c0_65, %c0_66] : memref<16x32xf32, #tpu.memory_space<vmem>>, vector<16x32xf32>
    tpu.vector_store %arg17[%c0_65, %c0_66], %163 {strides = array<i32>} : memref<16x32xf32, #tpu.memory_space<vmem>>, vector<16x32xf32>,
    %c1_i32 = arith.constant 1 : i32
    %165 = arith.cmpi eq, %arg1, %c1_i32 : i32
    %166 = arith.extui %165 : i1 to i32
    %c0_i32_67 = arith.constant 0 : i32
    %167 = arith.cmpi ne, %166, %c0_i32_67 : i32
    scf.if %167 {
      %168 = vector.shape_cast %163 : vector<16x32xf32> to vector<2x8x32xf32>
      "tpu.trace_start"() <{level = 10 : i32, message = "bos,bsd->bod"}> : () -> ()
      %cst_68 = arith.constant dense<0.000000e+00> : vector<2x1x32xf32>
      %169 = tpu.matmul %4, %168, %cst_68 {dimension_numbers = #tpu.dot_dimension_numbers<[2], [1], [1], [2], [0, 0, 0, 1, 1, 2], [0], [0]>} : vector<2x1x8xf32>, vector<2x8x32xf32>, vector<2x1x32xf32> -> vector<2x1x32xf32>
      "tpu.trace_stop"() : () -> ()
      %cst_69 = arith.constant dense<0.000000e+00> : vector<2x1xf32>
      %170 = vector.multi_reduction <add>, %4, %cst_69 [2] : vector<2x1x8xf32> to vector<2x1xf32>
      %171 = vector.shape_cast %170 : vector<2x1xf32> to vector<2x1x1xf32>
      %cst_70 = arith.constant 1.000000e+00 : f32
      %172 = vector.broadcast %cst_70 : f32 to vector<2x1x1xf32>
      %173 = arith.maximumf %171, %172 : vector<2x1x1xf32>
      %174 = vector.broadcast %173 : vector<2x1x1xf32> to vector<2x1x32xf32>
      %175 = arith.divf %169, %174 : vector<2x1x32xf32>
      %c0_71 = arith.constant 0 : index
      %c0_72 = arith.constant 0 : index
      %c0_73 = arith.constant 0 : index
      %176 = vector.load %arg16[%c0_71, %c0_72, %c0_73] : memref<2x1x32xf32, #tpu.memory_space<vmem>>, vector<2x1x32xf32>
      tpu.vector_store %arg16[%c0_71, %c0_72, %c0_73], %175 {strides = array<i32>} : memref<2x1x32xf32, #tpu.memory_space<vmem>>, vector<2x1x32xf32>,
    } else {
    }
    return
  }
  func.func @transform_0(%arg0: i32, %arg1: i32) -> (i32, i32, i32) {
    %c0_i32 = arith.constant 0 : i32
    %c0_i32_0 = arith.constant 0 : i32
    %c0_i32_1 = arith.constant 0 : i32
    return %arg0, %c0_i32, %c0_i32_0 : i32, i32, i32
  }
  func.func @transform_1(%arg0: i32, %arg1: i32) -> (i32, i32, i32) {
    %c0_i32 = arith.constant 0 : i32
    %c0_i32_0 = arith.constant 0 : i32
    %c0_i32_1 = arith.constant 0 : i32
    return %arg0, %c0_i32, %c0_i32_0 : i32, i32, i32
  }
  func.func @transform_2(%arg0: i32, %arg1: i32) -> (i32, i32, i32) {
    %c0_i32 = arith.constant 0 : i32
    %c0_i32_0 = arith.constant 0 : i32
    %c0_i32_1 = arith.constant 0 : i32
    return %arg1, %c0_i32, %c0_i32_0 : i32, i32, i32
  }
  func.func @transform_3(%arg0: i32, %arg1: i32) -> (i32, i32, i32) {
    %c0_i32 = arith.constant 0 : i32
    %c0_i32_0 = arith.constant 0 : i32
    %c0_i32_1 = arith.constant 0 : i32
    return %arg1, %c0_i32, %c0_i32_0 : i32, i32, i32
  }
  func.func @transform_4(%arg0: i32, %arg1: i32) -> (i32, i32, i32) {
    %c0_i32 = arith.constant 0 : i32
    %c0_i32_0 = arith.constant 0 : i32
    %c0_i32_1 = arith.constant 0 : i32
    return %arg1, %c0_i32, %c0_i32_0 : i32, i32, i32
  }
  func.func @transform_5(%arg0: i32, %arg1: i32) -> (i32, i32, i32) {
    %c0_i32 = arith.constant 0 : i32
    %c0_i32_0 = arith.constant 0 : i32
    %c0_i32_1 = arith.constant 0 : i32
    return %arg1, %c0_i32, %c0_i32_0 : i32, i32, i32
  }
  func.func @transform_6(%arg0: i32, %arg1: i32) -> (i32, i32, i32) {
    %c0_i32 = arith.constant 0 : i32
    %c0_i32_0 = arith.constant 0 : i32
    %c0_i32_1 = arith.constant 0 : i32
    return %arg1, %c0_i32, %c0_i32_0 : i32, i32, i32
  }
  func.func @transform_7(%arg0: i32, %arg1: i32) -> (i32, i32, i32) {
    %c0_i32 = arith.constant 0 : i32
    %c0_i32_0 = arith.constant 0 : i32
    %c0_i32_1 = arith.constant 0 : i32
    return %arg1, %c0_i32, %c0_i32_0 : i32, i32, i32
  }
  func.func @transform_8(%arg0: i32, %arg1: i32) -> (i32, i32, i32) {
    %c0_i32 = arith.constant 0 : i32
    %c0_i32_0 = arith.constant 0 : i32
    %c0_i32_1 = arith.constant 0 : i32
    return %arg1, %c0_i32, %c0_i32_0 : i32, i32, i32
  }
  func.func @transform_9(%arg0: i32, %arg1: i32) -> (i32, i32, i32) {
    %c0_i32 = arith.constant 0 : i32
    %c0_i32_0 = arith.constant 0 : i32
    %c0_i32_1 = arith.constant 0 : i32
    return %arg1, %c0_i32, %c0_i32_0 : i32, i32, i32
  }
  func.func @transform_10(%arg0: i32, %arg1: i32) -> (i32, i32, i32) {
    %c0_i32 = arith.constant 0 : i32
    %c0_i32_0 = arith.constant 0 : i32
    %c0_i32_1 = arith.constant 0 : i32
    return %arg1, %c0_i32, %c0_i32_0 : i32, i32, i32
  }
  func.func @transform_11(%arg0: i32, %arg1: i32) -> (i32, i32, i32) {
    %c0_i32 = arith.constant 0 : i32
    %c0_i32_0 = arith.constant 0 : i32
    %c0_i32_1 = arith.constant 0 : i32
    return %arg1, %c0_i32, %c0_i32_0 : i32, i32, i32
  }
  func.func @transform_12(%arg0: i32, %arg1: i32) -> (i32, i32, i32) {
    %c0_i32 = arith.constant 0 : i32
    %c0_i32_0 = arith.constant 0 : i32
    %c0_i32_1 = arith.constant 0 : i32
    return %arg1, %c0_i32, %c0_i32_0 : i32, i32, i32
  }
  func.func @transform_13(%arg0: i32, %arg1: i32) -> (i32, i32, i32) {
    %c0_i32 = arith.constant 0 : i32
    %c0_i32_0 = arith.constant 0 : i32
    %c0_i32_1 = arith.constant 0 : i32
    return %arg1, %c0_i32, %c0_i32_0 : i32, i32, i32
  }
  func.func @transform_14(%arg0: i32, %arg1: i32) -> (i32, i32, i32) {
    %c0_i32 = arith.constant 0 : i32
    %c0_i32_0 = arith.constant 0 : i32
    %c0_i32_1 = arith.constant 0 : i32
    return %arg0, %c0_i32, %c0_i32_0 : i32, i32, i32
  }
}

</mosaic_0001>

<llo_original>
// kernel: tpu_custom_call.1
$region0: #{tpu_custom_call.1}
  #allocation0 [shape = 'u32[]', space=smem, size = 0x4, offset = 0x4, fixed_abs, tag = 'smem constant byte address 0x4 - core index']
  #allocation1 [shape = 'u32[144,128]{1,0:T(1,128)}', space=vmem, size = 0x12000, scoped, tag = 'internal scratch']
  #allocation2 [shape = 'f32[16,32]{1,0:T(8,128)}', space=vmem, size = 0x2000, scoped, tag = 'scratch operand']
  %s0 = inlined_call_operand.hbm [shape: f32[2,8,32], index: 0, kind: input, shape index: {}]
  %s1 = inlined_call_operand.hbm [shape: f32[2,1,8], index: 1, kind: input, shape index: {}]
  %s2 = inlined_call_operand.vmem [shape: bf16[2,32,96], index: 2, kind: input, shape index: {}]
  %s3 = inlined_call_operand.vmem [shape: f32[2,1,96], index: 3, kind: input, shape index: {}]
  %s4 = inlined_call_operand.vmem [shape: bf16[2,32,32], index: 4, kind: input, shape index: {}]
  %s5 = inlined_call_operand.vmem [shape: f32[2,1,32], index: 5, kind: input, shape index: {}]
  %s6 = inlined_call_operand.vmem [shape: f32[2,1,32], index: 6, kind: input, shape index: {}]
  %s7 = inlined_call_operand.vmem [shape: f32[2,1,32], index: 7, kind: input, shape index: {}]
  %s8 = inlined_call_operand.vmem [shape: bf16[2,32,64], index: 8, kind: input, shape index: {}]
  %s9 = inlined_call_operand.vmem [shape: f32[2,1,64], index: 9, kind: input, shape index: {}]
  %s10 = inlined_call_operand.vmem [shape: bf16[2,64,32], index: 10, kind: input, shape index: {}]
  %s11 = inlined_call_operand.vmem [shape: f32[2,1,32], index: 11, kind: input, shape index: {}]
  %s12 = inlined_call_operand.vmem [shape: f32[2,1,32], index: 12, kind: input, shape index: {}]
  %s13 = inlined_call_operand.vmem [shape: f32[2,1,32], index: 13, kind: input, shape index: {}]
  %s14 = inlined_call_operand.hbm [shape: f32[2,1,32], index: 14, kind: output, shape index: {}]
  %s15 = sld [smem:[#allocation0]]
  $region105: #{tpu_custom_call.1} parent=0
    _
  %s17 = ssub.s32 1, %s15
  %s18 = scalar_select 0, %s17, %s15
  $region1: #{tpu_custom_call.1} parent=0
    #allocation3 [shape = 'u8[8192]{0}', space=vmem, size = 0x2000, scoped, tag = 'input window, operand 0, single buffered']
    #allocation4 [shape = 's32[2]{0}', space=sflag, size = 0x8, scoped, tag = 'scoped memory for tpu_custom_call.1']
    #allocation5 [shape = 's32[2]{0}', space=sflag, size = 0x8, scoped, tag = 'scoped memory for tpu_custom_call.1']
    #allocation6 [shape = 'u8[1024]{0}', space=vmem, size = 0x400, scoped, tag = 'input window, operand 1, single buffered']
    #allocation7 [shape = 's32[1]{0}', space=sflag, size = 0x4, scoped, tag = 'scoped memory for tpu_custom_call.1']
    #allocation8 [shape = 'u8[1024]{0}', space=vmem, size = 0x400, scoped, tag = 'output window, operand 0, single buffered']
    %19 = vsyncpa [#allocation4], 0
    %20 = vsyncpa [#allocation7], 0
    %21 = vsyncpa [#allocation5], 0
    loop: start=0, step=1, limit=4
    $region2: #{tpu_custom_call.1} parent=1 // loop_pre_header
      _
    $region3: #{tpu_custom_call.1} parent=1 // loop_header
      %s23 = sphi 0, %s27
      %p24 = scmp.ge.s32.totalorder %s23, 4
      %s30 = sphi 0, %s42
      %s31 = sphi 0, %s38
      %s32 = sphi 0, %s30
      %s33 = sphi 0, %s31
      %s34 = sphi 0, %s32
      %s35 = sphi 0, %s33
      %s45 = sphi 0, %s47
      %s48 = sphi 0, %s45
      %s49 = sphi 0, %s48
      %s65 = sphi 0, %s49
      %s71 = sphi 0, %s73
      %s74 = sphi 0, %s71
      %s75 = sphi 0, %s74
      %s91 = sphi 0, %s75
      %s97 = sphi 0, %s99
      %s100 = sphi 0, %s97
      %s101 = sphi 0, %s100
      %s117 = sphi 0, %s101
      %s123 = sphi 0, %s125
      %s126 = sphi 0, %s123
      %s127 = sphi 0, %s126
      %s143 = sphi 0, %s127
      %s149 = sphi 0, %s151
      %s152 = sphi 0, %s149
      %s153 = sphi 0, %s152
      %s169 = sphi 0, %s153
      %s175 = sphi 0, %s177
      %s178 = sphi 0, %s175
      %s179 = sphi 0, %s178
      %s195 = sphi 0, %s179
      %s201 = sphi 0, %s203
      %s204 = sphi 0, %s201
      %s205 = sphi 0, %s204
      %s221 = sphi 0, %s205
      %s227 = sphi 0, %s229
      %s230 = sphi 0, %s227
      %s231 = sphi 0, %s230
      %s247 = sphi 0, %s231
      %s253 = sphi 0, %s255
      %s256 = sphi 0, %s253
      %s257 = sphi 0, %s256
      %s273 = sphi 0, %s257
      %s279 = sphi 0, %s281
      %s282 = sphi 0, %s279
      %s283 = sphi 0, %s282
      %s299 = sphi 0, %s283
      %s305 = sphi 0, %s307
      %s308 = sphi 0, %s305
      %s309 = sphi 0, %s308
      %s325 = sphi 0, %s309
      %s331 = sphi 0, %s333
      %s334 = sphi 0, %s331
      %s335 = sphi 0, %s334
      %s351 = sphi 0, %s335
      %s357 = sphi 0, %s359
      %s360 = sphi 0, %s357
      %s361 = sphi 0, %s360
      %s377 = sphi 0, %s361
      %s383 = sphi 0, %s385
      %s386 = sphi 0, %s383
      %s387 = sphi 0, %s386
      %s403 = sphi 0, %s387
      %s409 = sphi 0, %s411
      %s412 = sphi 0, %s409
      %s413 = sphi 0, %s412
      %s429 = sphi 0, %s413
    $region4: #{tpu_custom_call.1} parent=1 // loop_header_branch
      %26 = sbr.rel (%p24) target = $region8
    $region5: #{tpu_custom_call.1} parent=1 // loop_body
      %s28 = ssub.s32 %s23, 1
      %s29 = ssub.s32 %s23, 2
      %s36 = sadd.s32 1, %s31
      %p37 = scmp.ge.s32.totalorder %s36, 2
      %s38 = scalar_select %p37, 0, %s36
      %s39 = sadd.s32 1, %s30
      %s40 = scalar_select %p37, %s39, %s30
      %p41 = scmp.ge.s32.totalorder %s40, 1
      %s42 = scalar_select %p41, 0, %s40
      %s43 = ssub.s32 %s30, %s42
      %p44 = scmp.eq.s32.totalorder %s43, 0
      %s46 = sadd.s32 %s45, 1
      %s47 = scalar_select %p44, %s45, %s46
      %p50 = pneg %p44
      %p51 = scmp.eq.s32.totalorder %s23, 1
      %p52 = por %p50, %p51
      %p53 = scmp.ne.s32.totalorder %s45, %s48
      %p54 = scmp.eq.s32.totalorder %s23, 0
      %p55 = por %p53, %p54
      %p56 = scmp.ne.s32.totalorder %s45, %s48
      %p57 = scmp.eq.s32.totalorder %s28, 1
      %p58 = por %p56, %p57
      %p59 = scmp.ne.s32.totalorder %s48, %s49
      %p60 = scmp.eq.s32.totalorder %s28, 0
      %p61 = por %p59, %p60
      %p62 = scmp.ne.s32.totalorder %s48, %s49
      %p63 = scmp.eq.s32.totalorder %s29, 1
      %p64 = por %p62, %p63
      %p66 = scmp.ne.s32.totalorder %s49, %s65
      %p67 = scmp.eq.s32.totalorder %s29, 0
      %p68 = por %p66, %p67
      %s69 = ssub.s32 %s30, %s42
      %p70 = scmp.eq.s32.totalorder %s69, 0
      %s72 = sadd.s32 %s71, 1
      %s73 = scalar_select %p70, %s71, %s72
      %p76 = pneg %p70
      %p77 = scmp.eq.s32.totalorder %s23, 1
      %p78 = por %p76, %p77
      %p79 = scmp.ne.s32.totalorder %s71, %s74
      %p80 = scmp.eq.s32.totalorder %s23, 0
      %p81 = por %p79, %p80
      %p82 = scmp.ne.s32.totalorder %s71, %s74
      %p83 = scmp.eq.s32.totalorder %s28, 1
      %p84 = por %p82, %p83
      %p85 = scmp.ne.s32.totalorder %s74, %s75
      %p86 = scmp.eq.s32.totalorder %s28, 0
      %p87 = por %p85, %p86
      %p88 = scmp.ne.s32.totalorder %s74, %s75
      %p89 = scmp.eq.s32.totalorder %s29, 1
      %p90 = por %p88, %p89
      %p92 = scmp.ne.s32.totalorder %s75, %s91
      %p93 = scmp.eq.s32.totalorder %s29, 0
      %p94 = por %p92, %p93
      %s95 = ssub.s32 %s31, %s38
      %p96 = scmp.eq.s32.totalorder %s95, 0
      %s98 = sadd.s32 %s97, 1
      %s99 = scalar_select %p96, %s97, %s98
      %p102 = pneg %p96
      %p103 = scmp.eq.s32.totalorder %s23, 1
      %p104 = por %p102, %p103
      %p105 = scmp.ne.s32.totalorder %s97, %s100
      %p106 = scmp.eq.s32.totalorder %s23, 0
      %p107 = por %p105, %p106
      %p108 = scmp.ne.s32.totalorder %s97, %s100
      %p109 = scmp.eq.s32.totalorder %s28, 1
      %p110 = por %p108, %p109
      %p111 = scmp.ne.s32.totalorder %s100, %s101
      %p112 = scmp.eq.s32.totalorder %s28, 0
      %p113 = por %p111, %p112
      %p114 = scmp.ne.s32.totalorder %s100, %s101
      %p115 = scmp.eq.s32.totalorder %s29, 1
      %p116 = por %p114, %p115
      %p118 = scmp.ne.s32.totalorder %s101, %s117
      %p119 = scmp.eq.s32.totalorder %s29, 0
      %p120 = por %p118, %p119
      %s121 = ssub.s32 %s31, %s38
      %p122 = scmp.eq.s32.totalorder %s121, 0
      %s124 = sadd.s32 %s123, 1
      %s125 = scalar_select %p122, %s123, %s124
      %p128 = pneg %p122
      %p129 = scmp.eq.s32.totalorder %s23, 1
      %p130 = por %p128, %p129
      %p131 = scmp.ne.s32.totalorder %s123, %s126
      %p132 = scmp.eq.s32.totalorder %s23, 0
      %p133 = por %p131, %p132
      %p134 = scmp.ne.s32.totalorder %s123, %s126
      %p135 = scmp.eq.s32.totalorder %s28, 1
      %p136 = por %p134, %p135
      %p137 = scmp.ne.s32.totalorder %s126, %s127
      %p138 = scmp.eq.s32.totalorder %s28, 0
      %p139 = por %p137, %p138
      %p140 = scmp.ne.s32.totalorder %s126, %s127
      %p141 = scmp.eq.s32.totalorder %s29, 1
      %p142 = por %p140, %p141
      %p144 = scmp.ne.s32.totalorder %s127, %s143
      %p145 = scmp.eq.s32.totalorder %s29, 0
      %p146 = por %p144, %p145
      %s147 = ssub.s32 %s31, %s38
      %p148 = scmp.eq.s32.totalorder %s147, 0
      %s150 = sadd.s32 %s149, 1
      %s151 = scalar_select %p148, %s149, %s150
      %p154 = pneg %p148
      %p155 = scmp.eq.s32.totalorder %s23, 1
      %p156 = por %p154, %p155
      %p157 = scmp.ne.s32.totalorder %s149, %s152
      %p158 = scmp.eq.s32.totalorder %s23, 0
      %p159 = por %p157, %p158
      %p160 = scmp.ne.s32.totalorder %s149, %s152
      %p161 = scmp.eq.s32.totalorder %s28, 1
      %p162 = por %p160, %p161
      %p163 = scmp.ne.s32.totalorder %s152, %s153
      %p164 = scmp.eq.s32.totalorder %s28, 0
      %p165 = por %p163, %p164
      %p166 = scmp.ne.s32.totalorder %s152, %s153
      %p167 = scmp.eq.s32.totalorder %s29, 1
      %p168 = por %p166, %p167
      %p170 = scmp.ne.s32.totalorder %s153, %s169
      %p171 = scmp.eq.s32.totalorder %s29, 0
      %p172 = por %p170, %p171
      %s173 = ssub.s32 %s31, %s38
      %p174 = scmp.eq.s32.totalorder %s173, 0
      %s176 = sadd.s32 %s175, 1
      %s177 = scalar_select %p174, %s175, %s176
      %p180 = pneg %p174
      %p181 = scmp.eq.s32.totalorder %s23, 1
      %p182 = por %p180, %p181
      %p183 = scmp.ne.s32.totalorder %s175, %s178
      %p184 = scmp.eq.s32.totalorder %s23, 0
      %p185 = por %p183, %p184
      %p186 = scmp.ne.s32.totalorder %s175, %s178
      %p187 = scmp.eq.s32.totalorder %s28, 1
      %p188 = por %p186, %p187
      %p189 = scmp.ne.s32.totalorder %s178, %s179
      %p190 = scmp.eq.s32.totalorder %s28, 0
      %p191 = por %p189, %p190
      %p192 = scmp.ne.s32.totalorder %s178, %s179
      %p193 = scmp.eq.s32.totalorder %s29, 1
      %p194 = por %p192, %p193
      %p196 = scmp.ne.s32.totalorder %s179, %s195
      %p197 = scmp.eq.s32.totalorder %s29, 0
      %p198 = por %p196, %p197
      %s199 = ssub.s32 %s31, %s38
      %p200 = scmp.eq.s32.totalorder %s199, 0
      %s202 = sadd.s32 %s201, 1
      %s203 = scalar_select %p200, %s201, %s202
      %p206 = pneg %p200
      %p207 = scmp.eq.s32.totalorder %s23, 1
      %p208 = por %p206, %p207
      %p209 = scmp.ne.s32.totalorder %s201, %s204
      %p210 = scmp.eq.s32.totalorder %s23, 0
      %p211 = por %p209, %p210
      %p212 = scmp.ne.s32.totalorder %s201, %s204
      %p213 = scmp.eq.s32.totalorder %s28, 1
      %p214 = por %p212, %p213
      %p215 = scmp.ne.s32.totalorder %s204, %s205
      %p216 = scmp.eq.s32.totalorder %s28, 0
      %p217 = por %p215, %p216
      %p218 = scmp.ne.s32.totalorder %s204, %s205
      %p219 = scmp.eq.s32.totalorder %s29, 1
      %p220 = por %p218, %p219
      %p222 = scmp.ne.s32.totalorder %s205, %s221
      %p223 = scmp.eq.s32.totalorder %s29, 0
      %p224 = por %p222, %p223
      %s225 = ssub.s32 %s31, %s38
      %p226 = scmp.eq.s32.totalorder %s225, 0
      %s228 = sadd.s32 %s227, 1
      %s229 = scalar_select %p226, %s227, %s228
      %p232 = pneg %p226
      %p233 = scmp.eq.s32.totalorder %s23, 1
      %p234 = por %p232, %p233
      %p235 = scmp.ne.s32.totalorder %s227, %s230
      %p236 = scmp.eq.s32.totalorder %s23, 0
      %p237 = por %p235, %p236
      %p238 = scmp.ne.s32.totalorder %s227, %s230
      %p239 = scmp.eq.s32.totalorder %s28, 1
      %p240 = por %p238, %p239
      %p241 = scmp.ne.s32.totalorder %s230, %s231
      %p242 = scmp.eq.s32.totalorder %s28, 0
      %p243 = por %p241, %p242
      %p244 = scmp.ne.s32.totalorder %s230, %s231
      %p245 = scmp.eq.s32.totalorder %s29, 1
      %p246 = por %p244, %p245
      %p248 = scmp.ne.s32.totalorder %s231, %s247
      %p249 = scmp.eq.s32.totalorder %s29, 0
      %p250 = por %p248, %p249
      %s251 = ssub.s32 %s31, %s38
      %p252 = scmp.eq.s32.totalorder %s251, 0
      %s254 = sadd.s32 %s253, 1
      %s255 = scalar_select %p252, %s253, %s254
      %p258 = pneg %p252
      %p259 = scmp.eq.s32.totalorder %s23, 1
      %p260 = por %p258, %p259
      %p261 = scmp.ne.s32.totalorder %s253, %s256
      %p262 = scmp.eq.s32.totalorder %s23, 0
      %p263 = por %p261, %p262
      %p264 = scmp.ne.s32.totalorder %s253, %s256
      %p265 = scmp.eq.s32.totalorder %s28, 1
      %p266 = por %p264, %p265
      %p267 = scmp.ne.s32.totalorder %s256, %s257
      %p268 = scmp.eq.s32.totalorder %s28, 0
      %p269 = por %p267, %p268
      %p270 = scmp.ne.s32.totalorder %s256, %s257
      %p271 = scmp.eq.s32.totalorder %s29, 1
      %p272 = por %p270, %p271
      %p274 = scmp.ne.s32.totalorder %s257, %s273
      %p275 = scmp.eq.s32.totalorder %s29, 0
      %p276 = por %p274, %p275
      %s277 = ssub.s32 %s31, %s38
      %p278 = scmp.eq.s32.totalorder %s277, 0
      %s280 = sadd.s32 %s279, 1
      %s281 = scalar_select %p278, %s279, %s280
      %p284 = pneg %p278
      %p285 = scmp.eq.s32.totalorder %s23, 1
      %p286 = por %p284, %p285
      %p287 = scmp.ne.s32.totalorder %s279, %s282
      %p288 = scmp.eq.s32.totalorder %s23, 0
      %p289 = por %p287, %p288
      %p290 = scmp.ne.s32.totalorder %s279, %s282
      %p291 = scmp.eq.s32.totalorder %s28, 1
      %p292 = por %p290, %p291
      %p293 = scmp.ne.s32.totalorder %s282, %s283
      %p294 = scmp.eq.s32.totalorder %s28, 0
      %p295 = por %p293, %p294
      %p296 = scmp.ne.s32.totalorder %s282, %s283
      %p297 = scmp.eq.s32.totalorder %s29, 1
      %p298 = por %p296, %p297
      %p300 = scmp.ne.s32.totalorder %s283, %s299
      %p301 = scmp.eq.s32.totalorder %s29, 0
      %p302 = por %p300, %p301
      %s303 = ssub.s32 %s31, %s38
      %p304 = scmp.eq.s32.totalorder %s303, 0
      %s306 = sadd.s32 %s305, 1
      %s307 = scalar_select %p304, %s305, %s306
      %p310 = pneg %p304
      %p311 = scmp.eq.s32.totalorder %s23, 1
      %p312 = por %p310, %p311
      %p313 = scmp.ne.s32.totalorder %s305, %s308
      %p314 = scmp.eq.s32.totalorder %s23, 0
      %p315 = por %p313, %p314
      %p316 = scmp.ne.s32.totalorder %s305, %s308
      %p317 = scmp.eq.s32.totalorder %s28, 1
      %p318 = por %p316, %p317
      %p319 = scmp.ne.s32.totalorder %s308, %s309
      %p320 = scmp.eq.s32.totalorder %s28, 0
      %p321 = por %p319, %p320
      %p322 = scmp.ne.s32.totalorder %s308, %s309
      %p323 = scmp.eq.s32.totalorder %s29, 1
      %p324 = por %p322, %p323
      %p326 = scmp.ne.s32.totalorder %s309, %s325
      %p327 = scmp.eq.s32.totalorder %s29, 0
      %p328 = por %p326, %p327
      %s329 = ssub.s32 %s31, %s38
      %p330 = scmp.eq.s32.totalorder %s329, 0
      %s332 = sadd.s32 %s331, 1
      %s333 = scalar_select %p330, %s331, %s332
      %p336 = pneg %p330
      %p337 = scmp.eq.s32.totalorder %s23, 1
      %p338 = por %p336, %p337
      %p339 = scmp.ne.s32.totalorder %s331, %s334
      %p340 = scmp.eq.s32.totalorder %s23, 0
      %p341 = por %p339, %p340
      %p342 = scmp.ne.s32.totalorder %s331, %s334
      %p343 = scmp.eq.s32.totalorder %s28, 1
      %p344 = por %p342, %p343
      %p345 = scmp.ne.s32.totalorder %s334, %s335
      %p346 = scmp.eq.s32.totalorder %s28, 0
      %p347 = por %p345, %p346
      %p348 = scmp.ne.s32.totalorder %s334, %s335
      %p349 = scmp.eq.s32.totalorder %s29, 1
      %p350 = por %p348, %p349
      %p352 = scmp.ne.s32.totalorder %s335, %s351
      %p353 = scmp.eq.s32.totalorder %s29, 0
      %p354 = por %p352, %p353
      %s355 = ssub.s32 %s31, %s38
      %p356 = scmp.eq.s32.totalorder %s355, 0
      %s358 = sadd.s32 %s357, 1
      %s359 = scalar_select %p356, %s357, %s358
      %p362 = pneg %p356
      %p363 = scmp.eq.s32.totalorder %s23, 1
      %p364 = por %p362, %p363
      %p365 = scmp.ne.s32.totalorder %s357, %s360
      %p366 = scmp.eq.s32.totalorder %s23, 0
      %p367 = por %p365, %p366
      %p368 = scmp.ne.s32.totalorder %s357, %s360
      %p369 = scmp.eq.s32.totalorder %s28, 1
      %p370 = por %p368, %p369
      %p371 = scmp.ne.s32.totalorder %s360, %s361
      %p372 = scmp.eq.s32.totalorder %s28, 0
      %p373 = por %p371, %p372
      %p374 = scmp.ne.s32.totalorder %s360, %s361
      %p375 = scmp.eq.s32.totalorder %s29, 1
      %p376 = por %p374, %p375
      %p378 = scmp.ne.s32.totalorder %s361, %s377
      %p379 = scmp.eq.s32.totalorder %s29, 0
      %p380 = por %p378, %p379
      %s381 = ssub.s32 %s31, %s38
      %p382 = scmp.eq.s32.totalorder %s381, 0
      %s384 = sadd.s32 %s383, 1
      %s385 = scalar_select %p382, %s383, %s384
      %p388 = pneg %p382
      %p389 = scmp.eq.s32.totalorder %s23, 1
      %p390 = por %p388, %p389
      %p391 = scmp.ne.s32.totalorder %s383, %s386
      %p392 = scmp.eq.s32.totalorder %s23, 0
      %p393 = por %p391, %p392
      %p394 = scmp.ne.s32.totalorder %s383, %s386
      %p395 = scmp.eq.s32.totalorder %s28, 1
      %p396 = por %p394, %p395
      %p397 = scmp.ne.s32.totalorder %s386, %s387
      %p398 = scmp.eq.s32.totalorder %s28, 0
      %p399 = por %p397, %p398
      %p400 = scmp.ne.s32.totalorder %s386, %s387
      %p401 = scmp.eq.s32.totalorder %s29, 1
      %p402 = por %p400, %p401
      %p404 = scmp.ne.s32.totalorder %s387, %s403
      %p405 = scmp.eq.s32.totalorder %s29, 0
      %p406 = por %p404, %p405
      %s407 = ssub.s32 %s30, %s42
      %p408 = scmp.eq.s32.totalorder %s407, 0
      %s410 = sadd.s32 %s409, 1
      %s411 = scalar_select %p408, %s409, %s410
      %p414 = pneg %p408
      %p415 = scmp.eq.s32.totalorder %s23, 1
      %p416 = por %p414, %p415
      %p417 = scmp.ne.s32.totalorder %s409, %s412
      %p418 = scmp.eq.s32.totalorder %s23, 0
      %p419 = por %p417, %p418
      %p420 = scmp.ne.s32.totalorder %s409, %s412
      %p421 = scmp.eq.s32.totalorder %s28, 1
      %p422 = por %p420, %p421
      %p423 = scmp.ne.s32.totalorder %s412, %s413
      %p424 = scmp.eq.s32.totalorder %s28, 0
      %p425 = por %p423, %p424
      %p426 = scmp.ne.s32.totalorder %s412, %s413
      %p427 = scmp.eq.s32.totalorder %s29, 1
      %p428 = por %p426, %p427
      %p430 = scmp.ne.s32.totalorder %s413, %s429
      %p431 = scmp.eq.s32.totalorder %s29, 0
      %p432 = por %p430, %p431
      %p433 = scmp.le.s32.totalorder 1, %s23
      %p434 = scmp.lt.s32.totalorder %s23, 3
      %p435 = pnand %p433, %p434
      %p436 = pneg %p435
      // Predicated region
      $region9: #{tpu_custom_call.1} parent=5 // pred_check
        _
      $region10: #{tpu_custom_call.1} parent=5 // pred_check_branch
        %438 = sbr.rel (%p435) target = $region12
      $region11: #{tpu_custom_call.1} parent=5 // pred_region
        %s439 = ssub.s32 %s23, 1
        // Predicated region
        $region13: #{tpu_custom_call.1} parent=11 // pred_check
          %p440 = pneg %p61
        $region14: #{tpu_custom_call.1} parent=11 // pred_check_branch
          %442 = sbr.rel (%p440) target = $region16
        $region15: #{tpu_custom_call.1} parent=11 // pred_region
          %s443 = smul.u32 2, %s32
          %s445 = ssub.s32 256, 256
          %446 = vsyncadd [#allocation4], %s445
          %s447 = smul.addr %s443, 128
          %s448 = scalar_lea.hbm %s0, %s447
          %s449 = sshll.u32 [#allocation3], 4
          %s450 = int_to_ptr.vmem [resolvable:$true] %s449
          %455 = dma.hbm_to_vmem [thread:$0]  %s448, 256, %s450, [#allocation4], 128, 128, 8
        $region16: #{tpu_custom_call.1} parent=11 // pred_fallthru
          _
        // Predicated region
        $region17: #{tpu_custom_call.1} parent=11 // pred_check
          %p456 = pneg %p87
        $region18: #{tpu_custom_call.1} parent=11 // pred_check_branch
          %458 = sbr.rel (%p456) target = $region20
        $region19: #{tpu_custom_call.1} parent=11 // pred_region
          %s459 = smul.u32 2, %s32
          %s461 = ssub.s32 32, 32
          %462 = vsyncadd [#allocation7], %s461
          %s463 = smul.addr %s459, 16
          %s464 = scalar_lea.hbm %s1, %s463
          %s465 = sshll.u32 [#allocation6], 4
          %s466 = int_to_ptr.vmem [resolvable:$true] %s465
          %471 = dma.hbm_to_vmem [thread:$0]  %s464, 32, %s466, [#allocation7], 16, 16, 1
        $region20: #{tpu_custom_call.1} parent=11 // pred_fallthru
          _
      $region12: #{tpu_custom_call.1} parent=5 // pred_fallthru
        _
      %p472 = scmp.lt.s32.totalorder %s23, 2
      // Predicated region
      $region21: #{tpu_custom_call.1} parent=5 // pred_check
        %p473 = pneg %p472
      $region22: #{tpu_custom_call.1} parent=5 // pred_check_branch
        %475 = sbr.rel (%p473) target = $region24
      $region23: #{tpu_custom_call.1} parent=5 // pred_region
        // Predicated region
        $region25: #{tpu_custom_call.1} parent=23 // pred_check
          %p476 = pneg %p107
        $region26: #{tpu_custom_call.1} parent=23 // pred_check_branch
          %478 = sbr.rel (%p476) target = $region28
        $region27: #{tpu_custom_call.1} parent=23 // pred_region
          %p479 = scmp.lt.s32.totalorder %s31, 1
          %s480 = scalar_select %p479, %s31, 1
          %s481 = smul.addr %s480, 4
          %s482 = smul.addr %s481, 4
          %s483 = scalar_lea.vmem %s2, %s482
        $region28: #{tpu_custom_call.1} parent=23 // pred_fallthru
          _
        // Predicated region
        $region29: #{tpu_custom_call.1} parent=23 // pred_check
          %p484 = pneg %p133
        $region30: #{tpu_custom_call.1} parent=23 // pred_check_branch
          %486 = sbr.rel (%p484) target = $region32
        $region31: #{tpu_custom_call.1} parent=23 // pred_region
          %p487 = scmp.lt.s32.totalorder %s31, 1
          %s488 = scalar_select %p487, %s31, 1
          %s489 = scalar_lea.vmem %s3, %s488
        $region32: #{tpu_custom_call.1} parent=23 // pred_fallthru
          _
        // Predicated region
        $region33: #{tpu_custom_call.1} parent=23 // pred_check
          %p490 = pneg %p159
        $region34: #{tpu_custom_call.1} parent=23 // pred_check_branch
          %492 = sbr.rel (%p490) target = $region36
        $region35: #{tpu_custom_call.1} parent=23 // pred_region
          %p493 = scmp.lt.s32.totalorder %s31, 1
          %s494 = scalar_select %p493, %s31, 1
          %s495 = smul.addr %s494, 4
          %s496 = smul.addr %s495, 4
          %s497 = scalar_lea.vmem %s4, %s496
        $region36: #{tpu_custom_call.1} parent=23 // pred_fallthru
          _
        // Predicated region
        $region37: #{tpu_custom_call.1} parent=23 // pred_check
          %p498 = pneg %p185
        $region38: #{tpu_custom_call.1} parent=23 // pred_check_branch
          %500 = sbr.rel (%p498) target = $region40
        $region39: #{tpu_custom_call.1} parent=23 // pred_region
          %p501 = scmp.lt.s32.totalorder %s31, 1
          %s502 = scalar_select %p501, %s31, 1
          %s503 = scalar_lea.vmem %s5, %s502
        $region40: #{tpu_custom_call.1} parent=23 // pred_fallthru
          _
        // Predicated region
        $region41: #{tpu_custom_call.1} parent=23 // pred_check
          %p504 = pneg %p211
        $region42: #{tpu_custom_call.1} parent=23 // pred_check_branch
          %506 = sbr.rel (%p504) target = $region44
        $region43: #{tpu_custom_call.1} parent=23 // pred_region
          %p507 = scmp.lt.s32.totalorder %s31, 1
          %s508 = scalar_select %p507, %s31, 1
          %s509 = scalar_lea.vmem %s6, %s508
        $region44: #{tpu_custom_call.1} parent=23 // pred_fallthru
          _
        // Predicated region
        $region45: #{tpu_custom_call.1} parent=23 // pred_check
          %p510 = pneg %p237
        $region46: #{tpu_custom_call.1} parent=23 // pred_check_branch
          %512 = sbr.rel (%p510) target = $region48
        $region47: #{tpu_custom_call.1} parent=23 // pred_region
          %p513 = scmp.lt.s32.totalorder %s31, 1
          %s514 = scalar_select %p513, %s31, 1
          %s515 = scalar_lea.vmem %s7, %s514
        $region48: #{tpu_custom_call.1} parent=23 // pred_fallthru
          _
        // Predicated region
        $region49: #{tpu_custom_call.1} parent=23 // pred_check
          %p516 = pneg %p263
        $region50: #{tpu_custom_call.1} parent=23 // pred_check_branch
          %518 = sbr.rel (%p516) target = $region52
        $region51: #{tpu_custom_call.1} parent=23 // pred_region
          %p519 = scmp.lt.s32.totalorder %s31, 1
          %s520 = scalar_select %p519, %s31, 1
          %s521 = smul.addr %s520, 4
          %s522 = smul.addr %s521, 4
          %s523 = scalar_lea.vmem %s8, %s522
        $region52: #{tpu_custom_call.1} parent=23 // pred_fallthru
          _
        // Predicated region
        $region53: #{tpu_custom_call.1} parent=23 // pred_check
          %p524 = pneg %p289
        $region54: #{tpu_custom_call.1} parent=23 // pred_check_branch
          %526 = sbr.rel (%p524) target = $region56
        $region55: #{tpu_custom_call.1} parent=23 // pred_region
          %p527 = scmp.lt.s32.totalorder %s31, 1
          %s528 = scalar_select %p527, %s31, 1
          %s529 = scalar_lea.vmem %s9, %s528
        $region56: #{tpu_custom_call.1} parent=23 // pred_fallthru
          _
        // Predicated region
        $region57: #{tpu_custom_call.1} parent=23 // pred_check
          %p530 = pneg %p315
        $region58: #{tpu_custom_call.1} parent=23 // pred_check_branch
          %532 = sbr.rel (%p530) target = $region60
        $region59: #{tpu_custom_call.1} parent=23 // pred_region
          %p533 = scmp.lt.s32.totalorder %s31, 1
          %s534 = scalar_select %p533, %s31, 1
          %s535 = smul.addr %s534, 8
          %s536 = smul.addr %s535, 4
          %s537 = scalar_lea.vmem %s10, %s536
        $region60: #{tpu_custom_call.1} parent=23 // pred_fallthru
          _
        // Predicated region
        $region61: #{tpu_custom_call.1} parent=23 // pred_check
          %p538 = pneg %p341
        $region62: #{tpu_custom_call.1} parent=23 // pred_check_branch
          %540 = sbr.rel (%p538) target = $region64
        $region63: #{tpu_custom_call.1} parent=23 // pred_region
          %p541 = scmp.lt.s32.totalorder %s31, 1
          %s542 = scalar_select %p541, %s31, 1
          %s543 = scalar_lea.vmem %s11, %s542
        $region64: #{tpu_custom_call.1} parent=23 // pred_fallthru
          _
        // Predicated region
        $region65: #{tpu_custom_call.1} parent=23 // pred_check
          %p544 = pneg %p367
        $region66: #{tpu_custom_call.1} parent=23 // pred_check_branch
          %546 = sbr.rel (%p544) target = $region68
        $region67: #{tpu_custom_call.1} parent=23 // pred_region
          %p547 = scmp.lt.s32.totalorder %s31, 1
          %s548 = scalar_select %p547, %s31, 1
          %s549 = scalar_lea.vmem %s12, %s548
        $region68: #{tpu_custom_call.1} parent=23 // pred_fallthru
          _
        // Predicated region
        $region69: #{tpu_custom_call.1} parent=23 // pred_check
          %p550 = pneg %p393
        $region70: #{tpu_custom_call.1} parent=23 // pred_check_branch
          %552 = sbr.rel (%p550) target = $region72
        $region71: #{tpu_custom_call.1} parent=23 // pred_region
          %p553 = scmp.lt.s32.totalorder %s31, 1
          %s554 = scalar_select %p553, %s31, 1
          %s555 = scalar_lea.vmem %s13, %s554
        $region72: #{tpu_custom_call.1} parent=23 // pred_fallthru
          _
      $region24: #{tpu_custom_call.1} parent=5 // pred_fallthru
        _
      %p556 = scmp.le.s32.totalorder 1, %s23
      %p557 = scmp.lt.s32.totalorder %s23, 3
      %p558 = pnand %p556, %p557
      %p559 = pneg %p558
      // Predicated region
      $region73: #{tpu_custom_call.1} parent=5 // pred_check
        _
      $region74: #{tpu_custom_call.1} parent=5 // pred_check_branch
        %561 = sbr.rel (%p558) target = $region76
      $region75: #{tpu_custom_call.1} parent=5 // pred_region
        %s562 = ssub.s32 %s23, 1
        // Predicated region
        $region77: #{tpu_custom_call.1} parent=75 // pred_check
          %p563 = pneg %p61
        $region78: #{tpu_custom_call.1} parent=75 // pred_check_branch
          %565 = sbr.rel (%p563) target = $region80
        $region79: #{tpu_custom_call.1} parent=75 // pred_region
          %566 = dma.done [#allocation4], 256
        $region80: #{tpu_custom_call.1} parent=75 // pred_fallthru
          _
        // Predicated region
        $region81: #{tpu_custom_call.1} parent=75 // pred_check
          %p567 = pneg %p87
        $region82: #{tpu_custom_call.1} parent=75 // pred_check_branch
          %569 = sbr.rel (%p567) target = $region84
        $region83: #{tpu_custom_call.1} parent=75 // pred_region
          %570 = dma.done [#allocation7], 32
        $region84: #{tpu_custom_call.1} parent=75 // pred_fallthru
          _
        %p571 = pneg %p61
        %p572 = pneg %p58
        %p573 = pneg %p87
        %p574 = pneg %p84
        %p575 = scmp.lt.s32.totalorder %s33, 1
        %s576 = scalar_select %p575, %s33, 1
        %s577 = smul.addr %s576, 4
        %s578 = smul.addr %s577, 4
        %s579 = scalar_lea.vmem %s2, %s578
        %p580 = pneg %p113
        %p581 = pneg %p110
        %p582 = scmp.lt.s32.totalorder %s33, 1
        %s583 = scalar_select %p582, %s33, 1
        %s584 = scalar_lea.vmem %s3, %s583
        %p585 = pneg %p139
        %p586 = pneg %p136
        %p587 = scmp.lt.s32.totalorder %s33, 1
        %s588 = scalar_select %p587, %s33, 1
        %s589 = smul.addr %s588, 4
        %s590 = smul.addr %s589, 4
        %s591 = scalar_lea.vmem %s4, %s590
        %p592 = pneg %p165
        %p593 = pneg %p162
        %p594 = scmp.lt.s32.totalorder %s33, 1
        %s595 = scalar_select %p594, %s33, 1
        %s596 = scalar_lea.vmem %s5, %s595
        %p597 = pneg %p191
        %p598 = pneg %p188
        %p599 = scmp.lt.s32.totalorder %s33, 1
        %s600 = scalar_select %p599, %s33, 1
        %s601 = scalar_lea.vmem %s6, %s600
        %p602 = pneg %p217
        %p603 = pneg %p214
        %p604 = scmp.lt.s32.totalorder %s33, 1
        %s605 = scalar_select %p604, %s33, 1
        %s606 = scalar_lea.vmem %s7, %s605
        %p607 = pneg %p243
        %p608 = pneg %p240
        %p609 = scmp.lt.s32.totalorder %s33, 1
        %s610 = scalar_select %p609, %s33, 1
        %s611 = smul.addr %s610, 4
        %s612 = smul.addr %s611, 4
        %s613 = scalar_lea.vmem %s8, %s612
        %p614 = pneg %p269
        %p615 = pneg %p266
        %p616 = scmp.lt.s32.totalorder %s33, 1
        %s617 = scalar_select %p616, %s33, 1
        %s618 = scalar_lea.vmem %s9, %s617
        %p619 = pneg %p295
        %p620 = pneg %p292
        %p621 = scmp.lt.s32.totalorder %s33, 1
        %s622 = scalar_select %p621, %s33, 1
        %s623 = smul.addr %s622, 8
        %s624 = smul.addr %s623, 4
        %s625 = scalar_lea.vmem %s10, %s624
        %p626 = pneg %p321
        %p627 = pneg %p318
        %p628 = scmp.lt.s32.totalorder %s33, 1
        %s629 = scalar_select %p628, %s33, 1
        %s630 = scalar_lea.vmem %s11, %s629
        %p631 = pneg %p347
        %p632 = pneg %p344
        %p633 = scmp.lt.s32.totalorder %s33, 1
        %s634 = scalar_select %p633, %s33, 1
        %s635 = scalar_lea.vmem %s12, %s634
        %p636 = pneg %p373
        %p637 = pneg %p370
        %p638 = scmp.lt.s32.totalorder %s33, 1
        %s639 = scalar_select %p638, %s33, 1
        %s640 = scalar_lea.vmem %s13, %s639
        %p641 = pneg %p399
        %p642 = pneg %p396
        %p643 = pneg %p425
        %p644 = pneg %p422
        %s645 = smul.u32 2, %s32
        %s646 = smul.u32 2, %s32
        %p647 = scmp.lt.s32.totalorder %s33, 1
        %s648 = scalar_select %p647, %s33, 1
        %s649 = smul.addr %s648, 4
        %s650 = smul.addr %s649, 4
        %s651 = scalar_lea.vmem %s2, %s650
        %p652 = scmp.lt.s32.totalorder %s33, 1
        %s653 = scalar_select %p652, %s33, 1
        %s654 = scalar_lea.vmem %s3, %s653
        %p655 = scmp.lt.s32.totalorder %s33, 1
        %s656 = scalar_select %p655, %s33, 1
        %s657 = smul.addr %s656, 4
        %s658 = smul.addr %s657, 4
        %s659 = scalar_lea.vmem %s4, %s658
        %p660 = scmp.lt.s32.totalorder %s33, 1
        %s661 = scalar_select %p660, %s33, 1
        %s662 = scalar_lea.vmem %s5, %s661
        %p663 = scmp.lt.s32.totalorder %s33, 1
        %s664 = scalar_select %p663, %s33, 1
        %s665 = scalar_lea.vmem %s6, %s664
        %p666 = scmp.lt.s32.totalorder %s33, 1
        %s667 = scalar_select %p666, %s33, 1
        %s668 = scalar_lea.vmem %s7, %s667
        %p669 = scmp.lt.s32.totalorder %s33, 1
        %s670 = scalar_select %p669, %s33, 1
        %s671 = smul.addr %s670, 4
        %s672 = smul.addr %s671, 4
        %s673 = scalar_lea.vmem %s8, %s672
        %p674 = scmp.lt.s32.totalorder %s33, 1
        %s675 = scalar_select %p674, %s33, 1
        %s676 = scalar_lea.vmem %s9, %s675
        %p677 = scmp.lt.s32.totalorder %s33, 1
        %s678 = scalar_select %p677, %s33, 1
        %s679 = smul.addr %s678, 8
        %s680 = smul.addr %s679, 4
        %s681 = scalar_lea.vmem %s10, %s680
        %p682 = scmp.lt.s32.totalorder %s33, 1
        %s683 = scalar_select %p682, %s33, 1
        %s684 = scalar_lea.vmem %s11, %s683
        %p685 = scmp.lt.s32.totalorder %s33, 1
        %s686 = scalar_select %p685, %s33, 1
        %s687 = scalar_lea.vmem %s12, %s686
        %p688 = scmp.lt.s32.totalorder %s33, 1
        %s689 = scalar_select %p688, %s33, 1
        %s690 = scalar_lea.vmem %s13, %s689
        %s691 = smul.u32 2, %s32
        %p693 = scmp.eq.s32.totalorder %s33, 0
        // Predicated region
        $region85: #{tpu_custom_call.1} parent=75 // pred_check
          %p694 = pneg %p693
        $region86: #{tpu_custom_call.1} parent=75 // pred_check_branch
          %696 = sbr.rel (%p694) target = $region88
        $region87: #{tpu_custom_call.1} parent=75 // pred_region
          %v697 = vld [vmem:[#allocation3] sm:$0xff]
          %v698 = vld [vmem:[#allocation3 + $0x8] sm:$0xff]
          %vm699 = vcmask 261120
          %700 = vst.msk [vmem:[#allocation2] sm:$0xff] %vm699, %v697
          %701 = vst.msk [vmem:[#allocation2 + $0x8] sm:$0xff] %vm699, %v698
        $region88: #{tpu_custom_call.1} parent=75 // pred_fallthru
          _
        %v702 = vld [vmem:[#allocation2] sm:$0xff]
        %v703 = vld [vmem:[#allocation2 + $0x8] sm:$0xff]
        %v704 = vld [vmem:[#allocation6] sm:$0x1]
        %v705 = vld [vmem:[#allocation6 + $0x1] sm:$0x1]
        %v706 = vsub.f32 %v704, 1.0
        %v707 = vsub.f32 %v705, 1.0
        %v708 = vmul.f32 %v706, 1e+09
        %v709 = vmul.f32 %v707, 1e+09
        %v710 = vpack.c.bf16 %v703, %v702
        %v711 = vld [vmem:[%s651] sm:$0xf]
        %v712 = vld [vmem:[%s651 + $0x4] sm:$0xf]
        %v713 = vld [vmem:[%s651 + $0x8] sm:$0xf]
        %v714 = vld [vmem:[%s651 + $0xc] sm:$0xf]
        %v715 = vld [vmem:[%s654] sm:$0x1]
        %v717 = vlaneseq
        %v718 = vshrl.u32 %v717, 7
        %v719 = vsub.s32 0, %v718
        %v720 = vrot.slane %v715, %v719
        %v726 = vunpack.c.l.b16 %v711
        %v727 = vunpack.c.l.b16 %v712
        %v728 = vunpack.c.l.b16 %v713
        %v729 = vunpack.c.l.b16 %v714
        %v730 = vpack.c.b16 %v727, %v726
        %v731 = vpack.c.b16 %v729, %v728
        %vm734 = vcmask 261120
        %v736 = vsel %vm734, %v710, 0
        %738 = vmatprep.subr.bf16.mxu0 0
        %739 = vmatpush1.bf16.msra.mxu0 0
        %740 = vmatprep.subr.bf16.mxu0 0
        %741 = vmatpush1.bf16.msra.mxu0 0
        %742 = vmatprep.subr.bf16.mxu0 0
        %743 = vmatpush1.bf16.msra.mxu0 0
        %744 = vmatprep.subr.bf16.mxu0 0
        %745 = vmatpush1.bf16.msra.mxu0 0
        %746 = vmatprep.subr.bf16.mxu0 0
        %747 = vmatpush1.bf16.msra.mxu0 0
        %748 = vmatprep.subr.bf16.mxu0 0
        %749 = vmatpush1.bf16.msra.mxu0 0
        %750 = vmatprep.subr.bf16.mxu0 0
        %751 = vmatpush1.bf16.msra.mxu0 %v731
        %752 = vmatprep.subr.bf16.mxu0 0
        %753 = vmatpush1.bf16.msra.mxu0 %v730
        %754 = vmatprep.subr.bf16.mxu0 0
        %755 = vmatpush2.bf16.msra.mxu0 0
        %756 = vmatprep.subr.bf16.mxu0 0
        %757 = vmatpush2.bf16.msra.mxu0 0
        %758 = vmatprep.subr.bf16.mxu0 0
        %759 = vmatpush2.bf16.msra.mxu0 0
        %760 = vmatprep.subr.bf16.mxu0 0
        %761 = vmatpush2.bf16.msra.mxu0 0
        %762 = vmatprep.subr.bf16.mxu0 0
        %763 = vmatpush2.bf16.msra.mxu0 0
        %764 = vmatprep.subr.bf16.mxu0 0
        %765 = vmatpush2.bf16.msra.mxu0 0
        %766 = vmatprep.subr.bf16.mxu0 0
        %767 = vmatpush2.bf16.msra.mxu0 0
        %768 = vmatprep.subr.bf16.mxu0 0
        %769 = vmatpush2.bf16.msra.mxu0 0
        %770 = vmatprep.mubr.bf16.mxu0 0
        %771 = vmatmul.mubr.bf16.gmra.mxu0 %v736
        %v772 = vpop.f32.mrf.mxu0
        %v773 = vadd.f32 %v720, %v772
        %v774 = vpop.f32.mrf.mxu0
        %v775 = vpop.f32.mrf.mxu0
        %v776 = vadd.f32 %v720, %v775
        %v777 = vpop.f32.mrf.mxu0
        %778 = vdwg.mxu0
        %780 = vrot.lane.b32.xlu0 %v773, 120
        %v781 = vpop.permute.xlu0 %780
        %783 = vrot.lane.b32.xlu0 %v773, 112
        %v784 = vpop.permute.xlu0 %783
        %786 = vrot.lane.b32.xlu0 %v773, 104
        %v787 = vpop.permute.xlu0 %786
        %v789 = vcombine.low %v773, %v784
        %v790 = vcombine.high %v773, %v784
        %v792 = vunpack.c.l.s4 1983009808
        %v793 = vunpack.c.0.s8 %v792
        %v794 = vlaneseq
        %v795 = vshrl.u32 %v794, 7
        %v796 = vsub.s32 %v793, %v795
        %v797 = vrot.slane %v789, %v796
        %v799 = vunpack.c.l.s4 1983009808
        %v800 = vunpack.c.0.s8 %v799
        %v801 = vlaneseq
        %v802 = vshrl.u32 %v801, 7
        %v803 = vsub.s32 %v800, %v802
        %v804 = vrot.slane %v790, %v803
        %v805 = vcombine.low %v781, %v787
        %v806 = vcombine.high %v781, %v787
        %v808 = vunpack.c.l.s4 1983009808
        %v809 = vunpack.c.0.s8 %v808
        %v810 = vlaneseq
        %v811 = vshrl.u32 %v810, 7
        %v812 = vsub.s32 %v809, %v811
        %v813 = vrot.slane %v805, %v812
        %v815 = vunpack.c.l.s4 1983009808
        %v816 = vunpack.c.0.s8 %v815
        %v817 = vlaneseq
        %v818 = vshrl.u32 %v817, 7
        %v819 = vsub.s32 %v816, %v818
        %v820 = vrot.slane %v806, %v819
        %v821 = vcombine.low %v797, %v813
        %v822 = vcombine.high %v797, %v813
        %v824 = vunpack.c.l.s4 1934713408
        %v825 = vunpack.c.0.s8 %v824
        %v826 = vlaneseq
        %v827 = vshrl.u32 %v826, 7
        %v828 = vsub.s32 %v825, %v827
        %v829 = vrot.slane %v821, %v828
        %v831 = vunpack.c.l.s4 1934713408
        %v832 = vunpack.c.0.s8 %v831
        %v833 = vlaneseq
        %v834 = vshrl.u32 %v833, 7
        %v835 = vsub.s32 %v832, %v834
        %v836 = vrot.slane %v822, %v835
        %v837 = vcombine.low %v804, %v820
        %v838 = vcombine.high %v804, %v820
        %v840 = vunpack.c.l.s4 1934713408
        %v841 = vunpack.c.0.s8 %v840
        %v842 = vlaneseq
        %v843 = vshrl.u32 %v842, 7
        %v844 = vsub.s32 %v841, %v843
        %v845 = vrot.slane %v837, %v844
        %v847 = vunpack.c.l.s4 1934713408
        %v848 = vunpack.c.0.s8 %v847
        %v849 = vlaneseq
        %v850 = vshrl.u32 %v849, 7
        %v851 = vsub.s32 %v848, %v850
        %v852 = vrot.slane %v838, %v851
        %v853 = vcombine.high %v829, 0.0
        %v854 = vcombine.high %v836, 0.0
        %v855 = vcombine.high %v845, 0.0
        %v856 = vcombine.high %v852, 0.0
        %v857 = vcombine.low %v829, %v836
        %v859 = vunpack.c.l.s4 1983009808
        %v860 = vunpack.c.0.s8 %v859
        %v861 = vlaneseq
        %v862 = vshrl.u32 %v861, 7
        %v863 = vsub.s32 %v860, %v862
        %v864 = vrot.slane %v857, %v863
        %v865 = vcombine.low %v853, %v854
        %v867 = vunpack.c.l.s4 1983009808
        %v868 = vunpack.c.0.s8 %v867
        %v869 = vlaneseq
        %v870 = vshrl.u32 %v869, 7
        %v871 = vsub.s32 %v868, %v870
        %v872 = vrot.slane %v865, %v871
        %v873 = vcombine.low %v845, %v852
        %v875 = vunpack.c.l.s4 1983009808
        %v876 = vunpack.c.0.s8 %v875
        %v877 = vlaneseq
        %v878 = vshrl.u32 %v877, 7
        %v879 = vsub.s32 %v876, %v878
        %v880 = vrot.slane %v873, %v879
        %v881 = vcombine.low %v855, %v856
        %v883 = vunpack.c.l.s4 1983009808
        %v884 = vunpack.c.0.s8 %v883
        %v885 = vlaneseq
        %v886 = vshrl.u32 %v885, 7
        %v887 = vsub.s32 %v884, %v886
        %v888 = vrot.slane %v881, %v887
        %v889 = vcombine.low %v864, %v872
        %v890 = vcombine.high %v864, %v872
        %v892 = vunpack.c.l.s4 1934713408
        %v893 = vunpack.c.0.s8 %v892
        %v894 = vlaneseq
        %v895 = vshrl.u32 %v894, 7
        %v896 = vsub.s32 %v893, %v895
        %v897 = vrot.slane %v889, %v896
        %v899 = vunpack.c.l.s4 1934713408
        %v900 = vunpack.c.0.s8 %v899
        %v901 = vlaneseq
        %v902 = vshrl.u32 %v901, 7
        %v903 = vsub.s32 %v900, %v902
        %v904 = vrot.slane %v890, %v903
        %v905 = vcombine.low %v880, %v888
        %v906 = vcombine.high %v880, %v888
        %v908 = vunpack.c.l.s4 1934713408
        %v909 = vunpack.c.0.s8 %v908
        %v910 = vlaneseq
        %v911 = vshrl.u32 %v910, 7
        %v912 = vsub.s32 %v909, %v911
        %v913 = vrot.slane %v905, %v912
        %v915 = vunpack.c.l.s4 1934713408
        %v916 = vunpack.c.0.s8 %v915
        %v917 = vlaneseq
        %v918 = vshrl.u32 %v917, 7
        %v919 = vsub.s32 %v916, %v918
        %v920 = vrot.slane %v906, %v919
        %v921 = vcombine.low %v897, %v913
        %v922 = vcombine.high %v897, %v913
        %v923 = vcombine.low %v904, %v920
        %v924 = vcombine.high %v904, %v920
        %925 = vrot.lane.b32.xlu0 %v773, 96
        %v926 = vpop.permute.xlu0 %925
        %927 = vrot.lane.b32.xlu0 %v781, 96
        %v928 = vpop.permute.xlu0 %927
        %929 = vrot.lane.b32.xlu0 %v784, 96
        %v930 = vpop.permute.xlu0 %929
        %931 = vrot.lane.b32.xlu0 %v787, 96
        %v932 = vpop.permute.xlu0 %931
        %v937 = vcombine.low %v926, %v930
        %v938 = vcombine.high %v926, %v930
        %v940 = vunpack.c.l.s4 1983009808
        %v941 = vunpack.c.0.s8 %v940
        %v942 = vlaneseq
        %v943 = vshrl.u32 %v942, 7
        %v944 = vsub.s32 %v941, %v943
        %v945 = vrot.slane %v937, %v944
        %v947 = vunpack.c.l.s4 1983009808
        %v948 = vunpack.c.0.s8 %v947
        %v949 = vlaneseq
        %v950 = vshrl.u32 %v949, 7
        %v951 = vsub.s32 %v948, %v950
        %v952 = vrot.slane %v938, %v951
        %v953 = vcombine.low %v928, %v932
        %v954 = vcombine.high %v928, %v932
        %v956 = vunpack.c.l.s4 1983009808
        %v957 = vunpack.c.0.s8 %v956
        %v958 = vlaneseq
        %v959 = vshrl.u32 %v958, 7
        %v960 = vsub.s32 %v957, %v959
        %v961 = vrot.slane %v953, %v960
        %v963 = vunpack.c.l.s4 1983009808
        %v964 = vunpack.c.0.s8 %v963
        %v965 = vlaneseq
        %v966 = vshrl.u32 %v965, 7
        %v967 = vsub.s32 %v964, %v966
        %v968 = vrot.slane %v954, %v967
        %v969 = vcombine.low %v945, %v961
        %v970 = vcombine.high %v945, %v961
        %v972 = vunpack.c.l.s4 1934713408
        %v973 = vunpack.c.0.s8 %v972
        %v974 = vlaneseq
        %v975 = vshrl.u32 %v974, 7
        %v976 = vsub.s32 %v973, %v975
        %v977 = vrot.slane %v969, %v976
        %v979 = vunpack.c.l.s4 1934713408
        %v980 = vunpack.c.0.s8 %v979
        %v981 = vlaneseq
        %v982 = vshrl.u32 %v981, 7
        %v983 = vsub.s32 %v980, %v982
        %v984 = vrot.slane %v970, %v983
        %v985 = vcombine.low %v952, %v968
        %v986 = vcombine.high %v952, %v968
        %v988 = vunpack.c.l.s4 1934713408
        %v989 = vunpack.c.0.s8 %v988
        %v990 = vlaneseq
        %v991 = vshrl.u32 %v990, 7
        %v992 = vsub.s32 %v989, %v991
        %v993 = vrot.slane %v985, %v992
        %v995 = vunpack.c.l.s4 1934713408
        %v996 = vunpack.c.0.s8 %v995
        %v997 = vlaneseq
        %v998 = vshrl.u32 %v997, 7
        %v999 = vsub.s32 %v996, %v998
        %v1000 = vrot.slane %v986, %v999
        %v1001 = vcombine.high %v977, 0.0
        %v1002 = vcombine.high %v984, 0.0
        %v1003 = vcombine.high %v993, 0.0
        %v1004 = vcombine.high %v1000, 0.0
        %v1005 = vcombine.low %v977, %v984
        %v1007 = vunpack.c.l.s4 1983009808
        %v1008 = vunpack.c.0.s8 %v1007
        %v1009 = vlaneseq
        %v1010 = vshrl.u32 %v1009, 7
        %v1011 = vsub.s32 %v1008, %v1010
        %v1012 = vrot.slane %v1005, %v1011
        %v1013 = vcombine.low %v1001, %v1002
        %v1015 = vunpack.c.l.s4 1983009808
        %v1016 = vunpack.c.0.s8 %v1015
        %v1017 = vlaneseq
        %v1018 = vshrl.u32 %v1017, 7
        %v1019 = vsub.s32 %v1016, %v1018
        %v1020 = vrot.slane %v1013, %v1019
        %v1021 = vcombine.low %v993, %v1000
        %v1023 = vunpack.c.l.s4 1983009808
        %v1024 = vunpack.c.0.s8 %v1023
        %v1025 = vlaneseq
        %v1026 = vshrl.u32 %v1025, 7
        %v1027 = vsub.s32 %v1024, %v1026
        %v1028 = vrot.slane %v1021, %v1027
        %v1029 = vcombine.low %v1003, %v1004
        %v1031 = vunpack.c.l.s4 1983009808
        %v1032 = vunpack.c.0.s8 %v1031
        %v1033 = vlaneseq
        %v1034 = vshrl.u32 %v1033, 7
        %v1035 = vsub.s32 %v1032, %v1034
        %v1036 = vrot.slane %v1029, %v1035
        %v1037 = vcombine.low %v1012, %v1020
        %v1038 = vcombine.high %v1012, %v1020
        %v1040 = vunpack.c.l.s4 1934713408
        %v1041 = vunpack.c.0.s8 %v1040
        %v1042 = vlaneseq
        %v1043 = vshrl.u32 %v1042, 7
        %v1044 = vsub.s32 %v1041, %v1043
        %v1045 = vrot.slane %v1037, %v1044
        %v1047 = vunpack.c.l.s4 1934713408
        %v1048 = vunpack.c.0.s8 %v1047
        %v1049 = vlaneseq
        %v1050 = vshrl.u32 %v1049, 7
        %v1051 = vsub.s32 %v1048, %v1050
        %v1052 = vrot.slane %v1038, %v1051
        %v1053 = vcombine.low %v1028, %v1036
        %v1054 = vcombine.high %v1028, %v1036
        %v1056 = vunpack.c.l.s4 1934713408
        %v1057 = vunpack.c.0.s8 %v1056
        %v1058 = vlaneseq
        %v1059 = vshrl.u32 %v1058, 7
        %v1060 = vsub.s32 %v1057, %v1059
        %v1061 = vrot.slane %v1053, %v1060
        %v1063 = vunpack.c.l.s4 1934713408
        %v1064 = vunpack.c.0.s8 %v1063
        %v1065 = vlaneseq
        %v1066 = vshrl.u32 %v1065, 7
        %v1067 = vsub.s32 %v1064, %v1066
        %v1068 = vrot.slane %v1054, %v1067
        %v1069 = vcombine.low %v1045, %v1061
        %v1070 = vcombine.high %v1045, %v1061
        %v1071 = vcombine.low %v1052, %v1068
        %v1072 = vcombine.high %v1052, %v1068
        %1073 = vrot.lane.b32.xlu0 %v773, 64
        %v1074 = vpop.permute.xlu0 %1073
        %1075 = vrot.lane.b32.xlu0 %v781, 64
        %v1076 = vpop.permute.xlu0 %1075
        %1077 = vrot.lane.b32.xlu0 %v784, 64
        %v1078 = vpop.permute.xlu0 %1077
        %1079 = vrot.lane.b32.xlu0 %v787, 64
        %v1080 = vpop.permute.xlu0 %1079
        %v1085 = vcombine.low %v1074, %v1078
        %v1086 = vcombine.high %v1074, %v1078
        %v1088 = vunpack.c.l.s4 1983009808
        %v1089 = vunpack.c.0.s8 %v1088
        %v1090 = vlaneseq
        %v1091 = vshrl.u32 %v1090, 7
        %v1092 = vsub.s32 %v1089, %v1091
        %v1093 = vrot.slane %v1085, %v1092
        %v1095 = vunpack.c.l.s4 1983009808
        %v1096 = vunpack.c.0.s8 %v1095
        %v1097 = vlaneseq
        %v1098 = vshrl.u32 %v1097, 7
        %v1099 = vsub.s32 %v1096, %v1098
        %v1100 = vrot.slane %v1086, %v1099
        %v1101 = vcombine.low %v1076, %v1080
        %v1102 = vcombine.high %v1076, %v1080
        %v1104 = vunpack.c.l.s4 1983009808
        %v1105 = vunpack.c.0.s8 %v1104
        %v1106 = vlaneseq
        %v1107 = vshrl.u32 %v1106, 7
        %v1108 = vsub.s32 %v1105, %v1107
        %v1109 = vrot.slane %v1101, %v1108
        %v1111 = vunpack.c.l.s4 1983009808
        %v1112 = vunpack.c.0.s8 %v1111
        %v1113 = vlaneseq
        %v1114 = vshrl.u32 %v1113, 7
        %v1115 = vsub.s32 %v1112, %v1114
        %v1116 = vrot.slane %v1102, %v1115
        %v1117 = vcombine.low %v1093, %v1109
        %v1118 = vcombine.high %v1093, %v1109
        %v1120 = vunpack.c.l.s4 1934713408
        %v1121 = vunpack.c.0.s8 %v1120
        %v1122 = vlaneseq
        %v1123 = vshrl.u32 %v1122, 7
        %v1124 = vsub.s32 %v1121, %v1123
        %v1125 = vrot.slane %v1117, %v1124
        %v1127 = vunpack.c.l.s4 1934713408
        %v1128 = vunpack.c.0.s8 %v1127
        %v1129 = vlaneseq
        %v1130 = vshrl.u32 %v1129, 7
        %v1131 = vsub.s32 %v1128, %v1130
        %v1132 = vrot.slane %v1118, %v1131
        %v1133 = vcombine.low %v1100, %v1116
        %v1134 = vcombine.high %v1100, %v1116
        %v1136 = vunpack.c.l.s4 1934713408
        %v1137 = vunpack.c.0.s8 %v1136
        %v1138 = vlaneseq
        %v1139 = vshrl.u32 %v1138, 7
        %v1140 = vsub.s32 %v1137, %v1139
        %v1141 = vrot.slane %v1133, %v1140
        %v1143 = vunpack.c.l.s4 1934713408
        %v1144 = vunpack.c.0.s8 %v1143
        %v1145 = vlaneseq
        %v1146 = vshrl.u32 %v1145, 7
        %v1147 = vsub.s32 %v1144, %v1146
        %v1148 = vrot.slane %v1134, %v1147
        %v1149 = vcombine.high %v1125, 0.0
        %v1150 = vcombine.high %v1132, 0.0
        %v1151 = vcombine.high %v1141, 0.0
        %v1152 = vcombine.high %v1148, 0.0
        %v1153 = vcombine.low %v1125, %v1132
        %v1155 = vunpack.c.l.s4 1983009808
        %v1156 = vunpack.c.0.s8 %v1155
        %v1157 = vlaneseq
        %v1158 = vshrl.u32 %v1157, 7
        %v1159 = vsub.s32 %v1156, %v1158
        %v1160 = vrot.slane %v1153, %v1159
        %v1161 = vcombine.low %v1149, %v1150
        %v1163 = vunpack.c.l.s4 1983009808
        %v1164 = vunpack.c.0.s8 %v1163
        %v1165 = vlaneseq
        %v1166 = vshrl.u32 %v1165, 7
        %v1167 = vsub.s32 %v1164, %v1166
        %v1168 = vrot.slane %v1161, %v1167
        %v1169 = vcombine.low %v1141, %v1148
        %v1171 = vunpack.c.l.s4 1983009808
        %v1172 = vunpack.c.0.s8 %v1171
        %v1173 = vlaneseq
        %v1174 = vshrl.u32 %v1173, 7
        %v1175 = vsub.s32 %v1172, %v1174
        %v1176 = vrot.slane %v1169, %v1175
        %v1177 = vcombine.low %v1151, %v1152
        %v1179 = vunpack.c.l.s4 1983009808
        %v1180 = vunpack.c.0.s8 %v1179
        %v1181 = vlaneseq
        %v1182 = vshrl.u32 %v1181, 7
        %v1183 = vsub.s32 %v1180, %v1182
        %v1184 = vrot.slane %v1177, %v1183
        %v1185 = vcombine.low %v1160, %v1168
        %v1186 = vcombine.high %v1160, %v1168
        %v1188 = vunpack.c.l.s4 1934713408
        %v1189 = vunpack.c.0.s8 %v1188
        %v1190 = vlaneseq
        %v1191 = vshrl.u32 %v1190, 7
        %v1192 = vsub.s32 %v1189, %v1191
        %v1193 = vrot.slane %v1185, %v1192
        %v1195 = vunpack.c.l.s4 1934713408
        %v1196 = vunpack.c.0.s8 %v1195
        %v1197 = vlaneseq
        %v1198 = vshrl.u32 %v1197, 7
        %v1199 = vsub.s32 %v1196, %v1198
        %v1200 = vrot.slane %v1186, %v1199
        %v1201 = vcombine.low %v1176, %v1184
        %v1202 = vcombine.high %v1176, %v1184
        %v1204 = vunpack.c.l.s4 1934713408
        %v1205 = vunpack.c.0.s8 %v1204
        %v1206 = vlaneseq
        %v1207 = vshrl.u32 %v1206, 7
        %v1208 = vsub.s32 %v1205, %v1207
        %v1209 = vrot.slane %v1201, %v1208
        %v1211 = vunpack.c.l.s4 1934713408
        %v1212 = vunpack.c.0.s8 %v1211
        %v1213 = vlaneseq
        %v1214 = vshrl.u32 %v1213, 7
        %v1215 = vsub.s32 %v1212, %v1214
        %v1216 = vrot.slane %v1202, %v1215
        %v1217 = vcombine.low %v1193, %v1209
        %v1218 = vcombine.high %v1193, %v1209
        %v1219 = vcombine.low %v1200, %v1216
        %v1220 = vcombine.high %v1200, %v1216
        %v1221 = vpack.c.bf16 %v921, %v921
        %v1222 = vpack.c.bf16 %v922, %v922
        %v1223 = vpack.c.bf16 %v923, %v923
        %v1224 = vpack.c.bf16 %v924, %v924
        %v1225 = vpack.c.bf16 %v1069, %v1069
        %v1226 = vpack.c.bf16 %v1070, %v1070
        %v1227 = vpack.c.bf16 %v1071, %v1071
        %v1228 = vpack.c.bf16 %v1072, %v1072
        %v1230 = vlaneseq
        %v1231 = vshrl.u32 %v1230, 7
        %v1232 = vsub.s32 0, %v1231
        %v1233 = vrot.slane %v708, %v1232
        %vm1235 = vcmask 64512
        %v1237 = vsel %vm1235, %v1221, 0
        %v1240 = vsel %vm1235, %v1225, 0
        %1242 = vmatprep.subr.bf16.mxu0 0
        %1243 = vmatpush1.bf16.xpose.msra.mxu0 0
        %1244 = vmatprep.subr.bf16.mxu0 0
        %1245 = vmatpush1.bf16.xpose.msra.mxu0 0
        %1246 = vmatprep.subr.bf16.mxu0 0
        %1247 = vmatpush1.bf16.xpose.msra.mxu0 0
        %1248 = vmatprep.subr.bf16.mxu0 0
        %1249 = vmatpush1.bf16.xpose.msra.mxu0 0
        %1250 = vmatprep.subr.bf16.mxu0 0
        %1251 = vmatpush1.bf16.xpose.msra.mxu0 0
        %1252 = vmatprep.subr.bf16.mxu0 0
        %1253 = vmatpush1.bf16.xpose.msra.mxu0 0
        %1254 = vmatprep.subr.bf16.mxu0 0
        %1255 = vmatpush1.bf16.xpose.msra.mxu0 0
        %1256 = vmatprep.subr.bf16.mxu0 0
        %1257 = vmatpush1.bf16.xpose.msra.mxu0 %v1240
        %1258 = vmatprep.subr.bf16.mxu0 0
        %1259 = vmatpush2.bf16.xpose.msra.mxu0 0
        %1260 = vmatprep.subr.bf16.mxu0 0
        %1261 = vmatpush2.bf16.xpose.msra.mxu0 0
        %1262 = vmatprep.subr.bf16.mxu0 0
        %1263 = vmatpush2.bf16.xpose.msra.mxu0 0
        %1264 = vmatprep.subr.bf16.mxu0 0
        %1265 = vmatpush2.bf16.xpose.msra.mxu0 0
        %1266 = vmatprep.subr.bf16.mxu0 0
        %1267 = vmatpush2.bf16.xpose.msra.mxu0 0
        %1268 = vmatprep.subr.bf16.mxu0 0
        %1269 = vmatpush2.bf16.xpose.msra.mxu0 0
        %1270 = vmatprep.subr.bf16.mxu0 0
        %1271 = vmatpush2.bf16.xpose.msra.mxu0 0
        %1272 = vmatprep.subr.bf16.mxu0 0
        %1273 = vmatpush2.bf16.xpose.msra.mxu0 0
        %1274 = vmatprep.mubr.bf16.mxu0 0
        %1275 = vmatmul.mubr.bf16.gmra.mxu0 %v1237
        %v1276 = vpop.f32.mrf.mxu0
        %v1277 = vadd.f32 %v1233, %v1276
        %v1278 = vpop.f32.mrf.mxu0
        %v1279 = vpop.f32.mrf.mxu0
        %v1280 = vpop.f32.mrf.mxu0
        %1281 = vdwg.mxu0
        %v1283 = vsel %vm1235, %v1222, 0
        %v1286 = vsel %vm1235, %v1226, 0
        %1288 = vmatprep.subr.bf16.mxu0 0
        %1289 = vmatpush1.bf16.xpose.msra.mxu0 0
        %1290 = vmatprep.subr.bf16.mxu0 0
        %1291 = vmatpush1.bf16.xpose.msra.mxu0 0
        %1292 = vmatprep.subr.bf16.mxu0 0
        %1293 = vmatpush1.bf16.xpose.msra.mxu0 0
        %1294 = vmatprep.subr.bf16.mxu0 0
        %1295 = vmatpush1.bf16.xpose.msra.mxu0 0
        %1296 = vmatprep.subr.bf16.mxu0 0
        %1297 = vmatpush1.bf16.xpose.msra.mxu0 0
        %1298 = vmatprep.subr.bf16.mxu0 0
        %1299 = vmatpush1.bf16.xpose.msra.mxu0 0
        %1300 = vmatprep.subr.bf16.mxu0 0
        %1301 = vmatpush1.bf16.xpose.msra.mxu0 0
        %1302 = vmatprep.subr.bf16.mxu0 0
        %1303 = vmatpush1.bf16.xpose.msra.mxu0 %v1286
        %1304 = vmatprep.subr.bf16.mxu0 0
        %1305 = vmatpush2.bf16.xpose.msra.mxu0 0
        %1306 = vmatprep.subr.bf16.mxu0 0
        %1307 = vmatpush2.bf16.xpose.msra.mxu0 0
        %1308 = vmatprep.subr.bf16.mxu0 0
        %1309 = vmatpush2.bf16.xpose.msra.mxu0 0
        %1310 = vmatprep.subr.bf16.mxu0 0
        %1311 = vmatpush2.bf16.xpose.msra.mxu0 0
        %1312 = vmatprep.subr.bf16.mxu0 0
        %1313 = vmatpush2.bf16.xpose.msra.mxu0 0
        %1314 = vmatprep.subr.bf16.mxu0 0
        %1315 = vmatpush2.bf16.xpose.msra.mxu0 0
        %1316 = vmatprep.subr.bf16.mxu0 0
        %1317 = vmatpush2.bf16.xpose.msra.mxu0 0
        %1318 = vmatprep.subr.bf16.mxu0 0
        %1319 = vmatpush2.bf16.xpose.msra.mxu0 0
        %1320 = vmatprep.mubr.bf16.mxu0 0
        %1321 = vmatmul.mubr.bf16.gmra.mxu0 %v1283
        %v1322 = vpop.f32.mrf.mxu0
        %v1323 = vadd.f32 %v1233, %v1322
        %v1324 = vpop.f32.mrf.mxu0
        %v1325 = vpop.f32.mrf.mxu0
        %v1326 = vpop.f32.mrf.mxu0
        %1327 = vdwg.mxu0
        %v1329 = vsel %vm1235, %v1223, 0
        %v1332 = vsel %vm1235, %v1227, 0
        %1334 = vmatprep.subr.bf16.mxu0 0
        %1335 = vmatpush1.bf16.xpose.msra.mxu0 0
        %1336 = vmatprep.subr.bf16.mxu0 0
        %1337 = vmatpush1.bf16.xpose.msra.mxu0 0
        %1338 = vmatprep.subr.bf16.mxu0 0
        %1339 = vmatpush1.bf16.xpose.msra.mxu0 0
        %1340 = vmatprep.subr.bf16.mxu0 0
        %1341 = vmatpush1.bf16.xpose.msra.mxu0 0
        %1342 = vmatprep.subr.bf16.mxu0 0
        %1343 = vmatpush1.bf16.xpose.msra.mxu0 0
        %1344 = vmatprep.subr.bf16.mxu0 0
        %1345 = vmatpush1.bf16.xpose.msra.mxu0 0
        %1346 = vmatprep.subr.bf16.mxu0 0
        %1347 = vmatpush1.bf16.xpose.msra.mxu0 0
        %1348 = vmatprep.subr.bf16.mxu0 0
        %1349 = vmatpush1.bf16.xpose.msra.mxu0 %v1332
        %1350 = vmatprep.subr.bf16.mxu0 0
        %1351 = vmatpush2.bf16.xpose.msra.mxu0 0
        %1352 = vmatprep.subr.bf16.mxu0 0
        %1353 = vmatpush2.bf16.xpose.msra.mxu0 0
        %1354 = vmatprep.subr.bf16.mxu0 0
        %1355 = vmatpush2.bf16.xpose.msra.mxu0 0
        %1356 = vmatprep.subr.bf16.mxu0 0
        %1357 = vmatpush2.bf16.xpose.msra.mxu0 0
        %1358 = vmatprep.subr.bf16.mxu0 0
        %1359 = vmatpush2.bf16.xpose.msra.mxu0 0
        %1360 = vmatprep.subr.bf16.mxu0 0
        %1361 = vmatpush2.bf16.xpose.msra.mxu0 0
        %1362 = vmatprep.subr.bf16.mxu0 0
        %1363 = vmatpush2.bf16.xpose.msra.mxu0 0
        %1364 = vmatprep.subr.bf16.mxu0 0
        %1365 = vmatpush2.bf16.xpose.msra.mxu0 0
        %1366 = vmatprep.mubr.bf16.mxu0 0
        %1367 = vmatmul.mubr.bf16.gmra.mxu0 %v1329
        %v1368 = vpop.f32.mrf.mxu0
        %v1369 = vadd.f32 %v1233, %v1368
        %v1370 = vpop.f32.mrf.mxu0
        %v1371 = vpop.f32.mrf.mxu0
        %v1372 = vpop.f32.mrf.mxu0
        %1373 = vdwg.mxu0
        %v1375 = vsel %vm1235, %v1224, 0
        %v1378 = vsel %vm1235, %v1228, 0
        %1380 = vmatprep.subr.bf16.mxu0 0
        %1381 = vmatpush1.bf16.xpose.msra.mxu0 0
        %1382 = vmatprep.subr.bf16.mxu0 0
        %1383 = vmatpush1.bf16.xpose.msra.mxu0 0
        %1384 = vmatprep.subr.bf16.mxu0 0
        %1385 = vmatpush1.bf16.xpose.msra.mxu0 0
        %1386 = vmatprep.subr.bf16.mxu0 0
        %1387 = vmatpush1.bf16.xpose.msra.mxu0 0
        %1388 = vmatprep.subr.bf16.mxu0 0
        %1389 = vmatpush1.bf16.xpose.msra.mxu0 0
        %1390 = vmatprep.subr.bf16.mxu0 0
        %1391 = vmatpush1.bf16.xpose.msra.mxu0 0
        %1392 = vmatprep.subr.bf16.mxu0 0
        %1393 = vmatpush1.bf16.xpose.msra.mxu0 0
        %1394 = vmatprep.subr.bf16.mxu0 0
        %1395 = vmatpush1.bf16.xpose.msra.mxu0 %v1378
        %1396 = vmatprep.subr.bf16.mxu0 0
        %1397 = vmatpush2.bf16.xpose.msra.mxu0 0
        %1398 = vmatprep.subr.bf16.mxu0 0
        %1399 = vmatpush2.bf16.xpose.msra.mxu0 0
        %1400 = vmatprep.subr.bf16.mxu0 0
        %1401 = vmatpush2.bf16.xpose.msra.mxu0 0
        %1402 = vmatprep.subr.bf16.mxu0 0
        %1403 = vmatpush2.bf16.xpose.msra.mxu0 0
        %1404 = vmatprep.subr.bf16.mxu0 0
        %1405 = vmatpush2.bf16.xpose.msra.mxu0 0
        %1406 = vmatprep.subr.bf16.mxu0 0
        %1407 = vmatpush2.bf16.xpose.msra.mxu0 0
        %1408 = vmatprep.subr.bf16.mxu0 0
        %1409 = vmatpush2.bf16.xpose.msra.mxu0 0
        %1410 = vmatprep.subr.bf16.mxu0 0
        %1411 = vmatpush2.bf16.xpose.msra.mxu0 0
        %1412 = vmatprep.mubr.bf16.mxu0 0
        %1413 = vmatmul.mubr.bf16.gmra.mxu0 %v1375
        %v1414 = vpop.f32.mrf.mxu0
        %v1415 = vadd.f32 %v1233, %v1414
        %v1416 = vpop.f32.mrf.mxu0
        %v1417 = vpop.f32.mrf.mxu0
        %v1418 = vpop.f32.mrf.mxu0
        %1419 = vdwg.mxu0
        %v1420 = vsel %vm1235, %v1277, -inf
        %1421 = vmax.xlane.f32.xlu0 %v1420
        %v1422 = vpop.xlane.xlu0 %1421
        %v1423 = vsel %vm1235, %v1323, -inf
        %1424 = vmax.xlane.f32.xlu0 %v1423
        %v1425 = vpop.xlane.xlu0 %1424
        %v1426 = vsel %vm1235, %v1369, -inf
        %1427 = vmax.xlane.f32.xlu0 %v1426
        %v1428 = vpop.xlane.xlu0 %1427
        %v1429 = vsel %vm1235, %v1415, -inf
        %1430 = vmax.xlane.f32.xlu0 %v1429
        %v1431 = vpop.xlane.xlu0 %1430
        %v1432 = vsub.f32 %v1277, %v1422
        %v1433 = vsub.f32 %v1323, %v1425
        %v1434 = vsub.f32 %v1369, %v1428
        %v1435 = vsub.f32 %v1415, %v1431
        %v1436 = vmul.f32 %v1432, 1.442695
        %v1437 = vpow.pop %v1436
        %v1438 = vmul.f32 %v1433, 1.442695
        %v1439 = vpow.pop %v1438
        %v1440 = vmul.f32 %v1434, 1.442695
        %v1441 = vpow.pop %v1440
        %v1442 = vmul.f32 %v1435, 1.442695
        %v1443 = vpow.pop %v1442
        %v1444 = vsel %vm1235, %v1437, 0.0
        %1445 = vadd.xlane.f32.xlu0 %v1444
        %v1446 = vpop.xlane.xlu0 %1445
        %v1447 = vsel %vm1235, %v1439, 0.0
        %1448 = vadd.xlane.f32.xlu0 %v1447
        %v1449 = vpop.xlane.xlu0 %1448
        %v1450 = vsel %vm1235, %v1441, 0.0
        %1451 = vadd.xlane.f32.xlu0 %v1450
        %v1452 = vpop.xlane.xlu0 %1451
        %v1453 = vsel %vm1235, %v1443, 0.0
        %1454 = vadd.xlane.f32.xlu0 %v1453
        %v1455 = vpop.xlane.xlu0 %1454
        %v1456 = vrcp.pop %v1446
        %v1457 = vrcp.pop %v1449
        %v1458 = vrcp.pop %v1452
        %v1459 = vrcp.pop %v1455
        %v1460 = vmul.f32 %v1437, %v1456
        %v1461 = vmul.f32 %v1439, %v1457
        %v1462 = vmul.f32 %v1441, %v1458
        %v1463 = vmul.f32 %v1443, %v1459
        %v1464 = vpack.c.bf16 %v1460, %v1460
        %v1465 = vpack.c.bf16 %v1461, %v1461
        %v1466 = vpack.c.bf16 %v1462, %v1462
        %v1467 = vpack.c.bf16 %v1463, %v1463
        %v1468 = vpack.c.bf16 %v1217, %v1217
        %v1469 = vpack.c.bf16 %v1218, %v1218
        %v1470 = vpack.c.bf16 %v1219, %v1219
        %v1471 = vpack.c.bf16 %v1220, %v1220
        %v1473 = vsel %vm1235, %v1464, 0
        %vm1475 = vcmask 1043456
        %v1477 = vsel %vm1475, %v1468, 0
        %1479 = vmatprep.subr.bf16.mxu0 0
        %1480 = vmatpush1.bf16.msra.mxu0 0
        %1481 = vmatprep.subr.bf16.mxu0 0
        %1482 = vmatpush1.bf16.msra.mxu0 0
        %1483 = vmatprep.subr.bf16.mxu0 0
        %1484 = vmatpush1.bf16.msra.mxu0 0
        %1485 = vmatprep.subr.bf16.mxu0 0
        %1486 = vmatpush1.bf16.msra.mxu0 0
        %1487 = vmatprep.subr.bf16.mxu0 0
        %1488 = vmatpush1.bf16.msra.mxu0 0
        %1489 = vmatprep.subr.bf16.mxu0 0
        %1490 = vmatpush1.bf16.msra.mxu0 0
        %1491 = vmatprep.subr.bf16.mxu0 0
        %1492 = vmatpush1.bf16.msra.mxu0 0
        %1493 = vmatprep.subr.bf16.mxu0 0
        %1494 = vmatpush1.bf16.msra.mxu0 %v1477
        %1495 = vmatprep.subr.bf16.mxu0 0
        %1496 = vmatpush2.bf16.msra.mxu0 0
        %1497 = vmatprep.subr.bf16.mxu0 0
        %1498 = vmatpush2.bf16.msra.mxu0 0
        %1499 = vmatprep.subr.bf16.mxu0 0
        %1500 = vmatpush2.bf16.msra.mxu0 0
        %1501 = vmatprep.subr.bf16.mxu0 0
        %1502 = vmatpush2.bf16.msra.mxu0 0
        %1503 = vmatprep.subr.bf16.mxu0 0
        %1504 = vmatpush2.bf16.msra.mxu0 0
        %1505 = vmatprep.subr.bf16.mxu0 0
        %1506 = vmatpush2.bf16.msra.mxu0 0
        %1507 = vmatprep.subr.bf16.mxu0 0
        %1508 = vmatpush2.bf16.msra.mxu0 0
        %1509 = vmatprep.subr.bf16.mxu0 0
        %1510 = vmatpush2.bf16.msra.mxu0 0
        %1511 = vmatprep.mubr.bf16.mxu0 0
        %1512 = vmatmul.mubr.bf16.gmra.mxu0 %v1473
        %v1513 = vpop.f32.mrf.mxu0
        %v1514 = vadd.f32 0.0, %v1513
        %v1515 = vpop.f32.mrf.mxu0
        %v1516 = vpop.f32.mrf.mxu0
        %v1517 = vpop.f32.mrf.mxu0
        %1518 = vdwg.mxu0
        %v1520 = vsel %vm1235, %v1465, 0
        %v1523 = vsel %vm1475, %v1469, 0
        %1525 = vmatprep.subr.bf16.mxu0 0
        %1526 = vmatpush1.bf16.msra.mxu0 0
        %1527 = vmatprep.subr.bf16.mxu0 0
        %1528 = vmatpush1.bf16.msra.mxu0 0
        %1529 = vmatprep.subr.bf16.mxu0 0
        %1530 = vmatpush1.bf16.msra.mxu0 0
        %1531 = vmatprep.subr.bf16.mxu0 0
        %1532 = vmatpush1.bf16.msra.mxu0 0
        %1533 = vmatprep.subr.bf16.mxu0 0
        %1534 = vmatpush1.bf16.msra.mxu0 0
        %1535 = vmatprep.subr.bf16.mxu0 0
        %1536 = vmatpush1.bf16.msra.mxu0 0
        %1537 = vmatprep.subr.bf16.mxu0 0
        %1538 = vmatpush1.bf16.msra.mxu0 0
        %1539 = vmatprep.subr.bf16.mxu0 0
        %1540 = vmatpush1.bf16.msra.mxu0 %v1523
        %1541 = vmatprep.subr.bf16.mxu0 0
        %1542 = vmatpush2.bf16.msra.mxu0 0
        %1543 = vmatprep.subr.bf16.mxu0 0
        %1544 = vmatpush2.bf16.msra.mxu0 0
        %1545 = vmatprep.subr.bf16.mxu0 0
        %1546 = vmatpush2.bf16.msra.mxu0 0
        %1547 = vmatprep.subr.bf16.mxu0 0
        %1548 = vmatpush2.bf16.msra.mxu0 0
        %1549 = vmatprep.subr.bf16.mxu0 0
        %1550 = vmatpush2.bf16.msra.mxu0 0
        %1551 = vmatprep.subr.bf16.mxu0 0
        %1552 = vmatpush2.bf16.msra.mxu0 0
        %1553 = vmatprep.subr.bf16.mxu0 0
        %1554 = vmatpush2.bf16.msra.mxu0 0
        %1555 = vmatprep.subr.bf16.mxu0 0
        %1556 = vmatpush2.bf16.msra.mxu0 0
        %1557 = vmatprep.mubr.bf16.mxu0 0
        %1558 = vmatmul.mubr.bf16.gmra.mxu0 %v1520
        %v1559 = vpop.f32.mrf.mxu0
        %v1560 = vadd.f32 0.0, %v1559
        %v1561 = vpop.f32.mrf.mxu0
        %v1562 = vpop.f32.mrf.mxu0
        %v1563 = vpop.f32.mrf.mxu0
        %1564 = vdwg.mxu0
        %v1566 = vsel %vm1235, %v1466, 0
        %v1569 = vsel %vm1475, %v1470, 0
        %1571 = vmatprep.subr.bf16.mxu0 0
        %1572 = vmatpush1.bf16.msra.mxu0 0
        %1573 = vmatprep.subr.bf16.mxu0 0
        %1574 = vmatpush1.bf16.msra.mxu0 0
        %1575 = vmatprep.subr.bf16.mxu0 0
        %1576 = vmatpush1.bf16.msra.mxu0 0
        %1577 = vmatprep.subr.bf16.mxu0 0
        %1578 = vmatpush1.bf16.msra.mxu0 0
        %1579 = vmatprep.subr.bf16.mxu0 0
        %1580 = vmatpush1.bf16.msra.mxu0 0
        %1581 = vmatprep.subr.bf16.mxu0 0
        %1582 = vmatpush1.bf16.msra.mxu0 0
        %1583 = vmatprep.subr.bf16.mxu0 0
        %1584 = vmatpush1.bf16.msra.mxu0 0
        %1585 = vmatprep.subr.bf16.mxu0 0
        %1586 = vmatpush1.bf16.msra.mxu0 %v1569
        %1587 = vmatprep.subr.bf16.mxu0 0
        %1588 = vmatpush2.bf16.msra.mxu0 0
        %1589 = vmatprep.subr.bf16.mxu0 0
        %1590 = vmatpush2.bf16.msra.mxu0 0
        %1591 = vmatprep.subr.bf16.mxu0 0
        %1592 = vmatpush2.bf16.msra.mxu0 0
        %1593 = vmatprep.subr.bf16.mxu0 0
        %1594 = vmatpush2.bf16.msra.mxu0 0
        %1595 = vmatprep.subr.bf16.mxu0 0
        %1596 = vmatpush2.bf16.msra.mxu0 0
        %1597 = vmatprep.subr.bf16.mxu0 0
        %1598 = vmatpush2.bf16.msra.mxu0 0
        %1599 = vmatprep.subr.bf16.mxu0 0
        %1600 = vmatpush2.bf16.msra.mxu0 0
        %1601 = vmatprep.subr.bf16.mxu0 0
        %1602 = vmatpush2.bf16.msra.mxu0 0
        %1603 = vmatprep.mubr.bf16.mxu0 0
        %1604 = vmatmul.mubr.bf16.gmra.mxu0 %v1566
        %v1605 = vpop.f32.mrf.mxu0
        %v1606 = vadd.f32 0.0, %v1605
        %v1607 = vpop.f32.mrf.mxu0
        %v1608 = vpop.f32.mrf.mxu0
        %v1609 = vpop.f32.mrf.mxu0
        %1610 = vdwg.mxu0
        %v1612 = vsel %vm1235, %v1467, 0
        %v1615 = vsel %vm1475, %v1471, 0
        %1617 = vmatprep.subr.bf16.mxu0 0
        %1618 = vmatpush1.bf16.msra.mxu0 0
        %1619 = vmatprep.subr.bf16.mxu0 0
        %1620 = vmatpush1.bf16.msra.mxu0 0
        %1621 = vmatprep.subr.bf16.mxu0 0
        %1622 = vmatpush1.bf16.msra.mxu0 0
        %1623 = vmatprep.subr.bf16.mxu0 0
        %1624 = vmatpush1.bf16.msra.mxu0 0
        %1625 = vmatprep.subr.bf16.mxu0 0
        %1626 = vmatpush1.bf16.msra.mxu0 0
        %1627 = vmatprep.subr.bf16.mxu0 0
        %1628 = vmatpush1.bf16.msra.mxu0 0
        %1629 = vmatprep.subr.bf16.mxu0 0
        %1630 = vmatpush1.bf16.msra.mxu0 0
        %1631 = vmatprep.subr.bf16.mxu0 0
        %1632 = vmatpush1.bf16.msra.mxu0 %v1615
        %1633 = vmatprep.subr.bf16.mxu0 0
        %1634 = vmatpush2.bf16.msra.mxu0 0
        %1635 = vmatprep.subr.bf16.mxu0 0
        %1636 = vmatpush2.bf16.msra.mxu0 0
        %1637 = vmatprep.subr.bf16.mxu0 0
        %1638 = vmatpush2.bf16.msra.mxu0 0
        %1639 = vmatprep.subr.bf16.mxu0 0
        %1640 = vmatpush2.bf16.msra.mxu0 0
        %1641 = vmatprep.subr.bf16.mxu0 0
        %1642 = vmatpush2.bf16.msra.mxu0 0
        %1643 = vmatprep.subr.bf16.mxu0 0
        %1644 = vmatpush2.bf16.msra.mxu0 0
        %1645 = vmatprep.subr.bf16.mxu0 0
        %1646 = vmatpush2.bf16.msra.mxu0 0
        %1647 = vmatprep.subr.bf16.mxu0 0
        %1648 = vmatpush2.bf16.msra.mxu0 0
        %1649 = vmatprep.mubr.bf16.mxu0 0
        %1650 = vmatmul.mubr.bf16.gmra.mxu0 %v1612
        %v1651 = vpop.f32.mrf.mxu0
        %v1652 = vadd.f32 0.0, %v1651
        %v1653 = vpop.f32.mrf.mxu0
        %v1654 = vpop.f32.mrf.mxu0
        %v1655 = vpop.f32.mrf.mxu0
        %1656 = vdwg.mxu0
        %v1657 = vcombine.low %v1514, %v1606
        %v1658 = vcombine.high %v1514, %v1606
        %v1660 = vunpack.c.l.s4 1983009808
        %v1661 = vunpack.c.0.s8 %v1660
        %v1662 = vlaneseq
        %v1663 = vshrl.u32 %v1662, 7
        %v1664 = vsub.s32 %v1661, %v1663
        %v1665 = vrot.slane %v1657, %v1664
        %v1667 = vunpack.c.l.s4 1983009808
        %v1668 = vunpack.c.0.s8 %v1667
        %v1669 = vlaneseq
        %v1670 = vshrl.u32 %v1669, 7
        %v1671 = vsub.s32 %v1668, %v1670
        %v1672 = vrot.slane %v1658, %v1671
        %v1673 = vcombine.low %v1560, %v1652
        %v1674 = vcombine.high %v1560, %v1652
        %v1676 = vunpack.c.l.s4 1983009808
        %v1677 = vunpack.c.0.s8 %v1676
        %v1678 = vlaneseq
        %v1679 = vshrl.u32 %v1678, 7
        %v1680 = vsub.s32 %v1677, %v1679
        %v1681 = vrot.slane %v1673, %v1680
        %v1683 = vunpack.c.l.s4 1983009808
        %v1684 = vunpack.c.0.s8 %v1683
        %v1685 = vlaneseq
        %v1686 = vshrl.u32 %v1685, 7
        %v1687 = vsub.s32 %v1684, %v1686
        %v1688 = vrot.slane %v1674, %v1687
        %v1689 = vcombine.low %v1665, %v1681
        %v1690 = vcombine.high %v1665, %v1681
        %v1692 = vunpack.c.l.s4 1934713408
        %v1693 = vunpack.c.0.s8 %v1692
        %v1694 = vlaneseq
        %v1695 = vshrl.u32 %v1694, 7
        %v1696 = vsub.s32 %v1693, %v1695
        %v1697 = vrot.slane %v1689, %v1696
        %v1699 = vunpack.c.l.s4 1934713408
        %v1700 = vunpack.c.0.s8 %v1699
        %v1701 = vlaneseq
        %v1702 = vshrl.u32 %v1701, 7
        %v1703 = vsub.s32 %v1700, %v1702
        %v1704 = vrot.slane %v1690, %v1703
        %v1705 = vcombine.low %v1672, %v1688
        %v1706 = vcombine.high %v1672, %v1688
        %v1708 = vunpack.c.l.s4 1934713408
        %v1709 = vunpack.c.0.s8 %v1708
        %v1710 = vlaneseq
        %v1711 = vshrl.u32 %v1710, 7
        %v1712 = vsub.s32 %v1709, %v1711
        %v1713 = vrot.slane %v1705, %v1712
        %v1715 = vunpack.c.l.s4 1934713408
        %v1716 = vunpack.c.0.s8 %v1715
        %v1717 = vlaneseq
        %v1718 = vshrl.u32 %v1717, 7
        %v1719 = vsub.s32 %v1716, %v1718
        %v1720 = vrot.slane %v1706, %v1719
        %v1721 = vcombine.high %v1697, 0.0
        %v1722 = vcombine.high %v1704, 0.0
        %v1723 = vcombine.high %v1713, 0.0
        %v1724 = vcombine.high %v1720, 0.0
        %v1725 = vcombine.low %v1697, %v1704
        %v1727 = vunpack.c.l.s4 1983009808
        %v1728 = vunpack.c.0.s8 %v1727
        %v1729 = vlaneseq
        %v1730 = vshrl.u32 %v1729, 7
        %v1731 = vsub.s32 %v1728, %v1730
        %v1732 = vrot.slane %v1725, %v1731
        %v1733 = vcombine.low %v1721, %v1722
        %v1735 = vunpack.c.l.s4 1983009808
        %v1736 = vunpack.c.0.s8 %v1735
        %v1737 = vlaneseq
        %v1738 = vshrl.u32 %v1737, 7
        %v1739 = vsub.s32 %v1736, %v1738
        %v1740 = vrot.slane %v1733, %v1739
        %v1741 = vcombine.low %v1713, %v1720
        %v1743 = vunpack.c.l.s4 1983009808
        %v1744 = vunpack.c.0.s8 %v1743
        %v1745 = vlaneseq
        %v1746 = vshrl.u32 %v1745, 7
        %v1747 = vsub.s32 %v1744, %v1746
        %v1748 = vrot.slane %v1741, %v1747
        %v1749 = vcombine.low %v1723, %v1724
        %v1751 = vunpack.c.l.s4 1983009808
        %v1752 = vunpack.c.0.s8 %v1751
        %v1753 = vlaneseq
        %v1754 = vshrl.u32 %v1753, 7
        %v1755 = vsub.s32 %v1752, %v1754
        %v1756 = vrot.slane %v1749, %v1755
        %v1757 = vcombine.low %v1732, %v1740
        %v1758 = vcombine.high %v1732, %v1740
        %v1760 = vunpack.c.l.s4 1934713408
        %v1761 = vunpack.c.0.s8 %v1760
        %v1762 = vlaneseq
        %v1763 = vshrl.u32 %v1762, 7
        %v1764 = vsub.s32 %v1761, %v1763
        %v1765 = vrot.slane %v1757, %v1764
        %v1767 = vunpack.c.l.s4 1934713408
        %v1768 = vunpack.c.0.s8 %v1767
        %v1769 = vlaneseq
        %v1770 = vshrl.u32 %v1769, 7
        %v1771 = vsub.s32 %v1768, %v1770
        %v1772 = vrot.slane %v1758, %v1771
        %v1773 = vcombine.low %v1748, %v1756
        %v1774 = vcombine.high %v1748, %v1756
        %v1776 = vunpack.c.l.s4 1934713408
        %v1777 = vunpack.c.0.s8 %v1776
        %v1778 = vlaneseq
        %v1779 = vshrl.u32 %v1778, 7
        %v1780 = vsub.s32 %v1777, %v1779
        %v1781 = vrot.slane %v1773, %v1780
        %v1783 = vunpack.c.l.s4 1934713408
        %v1784 = vunpack.c.0.s8 %v1783
        %v1785 = vlaneseq
        %v1786 = vshrl.u32 %v1785, 7
        %v1787 = vsub.s32 %v1784, %v1786
        %v1788 = vrot.slane %v1774, %v1787
        %v1789 = vcombine.low %v1765, %v1781
        %v1790 = vcombine.high %v1765, %v1781
        %v1791 = vcombine.low %v1772, %v1788
        %v1792 = vcombine.high %v1772, %v1788
        %1794 = vrot.lane.b32.xlu0 %v1790, 8
        %v1795 = vpop.permute.xlu0 %1794
        %1798 = vrot.lane.b32.xlu0 %v1791, 16
        %v1799 = vpop.permute.xlu0 %1798
        %1802 = vrot.lane.b32.xlu0 %v1792, 24
        %v1803 = vpop.permute.xlu0 %1802
        %v1805 = vsel %vm1235, %v1789, %v1795
        %vm1806 = vcmask 130048
        %v1807 = vsel %vm1806, %v1805, %v1799
        %vm1808 = vcmask 195584
        %v1809 = vsel %vm1808, %v1807, %v1803
        %1811 = vrot.lane.b32.xlu0 %v776, 120
        %v1812 = vpop.permute.xlu0 %1811
        %1814 = vrot.lane.b32.xlu0 %v776, 112
        %v1815 = vpop.permute.xlu0 %1814
        %1817 = vrot.lane.b32.xlu0 %v776, 104
        %v1818 = vpop.permute.xlu0 %1817
        %v1820 = vcombine.low %v776, %v1815
        %v1821 = vcombine.high %v776, %v1815
        %v1823 = vunpack.c.l.s4 1983009808
        %v1824 = vunpack.c.0.s8 %v1823
        %v1825 = vlaneseq
        %v1826 = vshrl.u32 %v1825, 7
        %v1827 = vsub.s32 %v1824, %v1826
        %v1828 = vrot.slane %v1820, %v1827
        %v1830 = vunpack.c.l.s4 1983009808
        %v1831 = vunpack.c.0.s8 %v1830
        %v1832 = vlaneseq
        %v1833 = vshrl.u32 %v1832, 7
        %v1834 = vsub.s32 %v1831, %v1833
        %v1835 = vrot.slane %v1821, %v1834
        %v1836 = vcombine.low %v1812, %v1818
        %v1837 = vcombine.high %v1812, %v1818
        %v1839 = vunpack.c.l.s4 1983009808
        %v1840 = vunpack.c.0.s8 %v1839
        %v1841 = vlaneseq
        %v1842 = vshrl.u32 %v1841, 7
        %v1843 = vsub.s32 %v1840, %v1842
        %v1844 = vrot.slane %v1836, %v1843
        %v1846 = vunpack.c.l.s4 1983009808
        %v1847 = vunpack.c.0.s8 %v1846
        %v1848 = vlaneseq
        %v1849 = vshrl.u32 %v1848, 7
        %v1850 = vsub.s32 %v1847, %v1849
        %v1851 = vrot.slane %v1837, %v1850
        %v1852 = vcombine.low %v1828, %v1844
        %v1853 = vcombine.high %v1828, %v1844
        %v1855 = vunpack.c.l.s4 1934713408
        %v1856 = vunpack.c.0.s8 %v1855
        %v1857 = vlaneseq
        %v1858 = vshrl.u32 %v1857, 7
        %v1859 = vsub.s32 %v1856, %v1858
        %v1860 = vrot.slane %v1852, %v1859
        %v1862 = vunpack.c.l.s4 1934713408
        %v1863 = vunpack.c.0.s8 %v1862
        %v1864 = vlaneseq
        %v1865 = vshrl.u32 %v1864, 7
        %v1866 = vsub.s32 %v1863, %v1865
        %v1867 = vrot.slane %v1853, %v1866
        %v1868 = vcombine.low %v1835, %v1851
        %v1869 = vcombine.high %v1835, %v1851
        %v1871 = vunpack.c.l.s4 1934713408
        %v1872 = vunpack.c.0.s8 %v1871
        %v1873 = vlaneseq
        %v1874 = vshrl.u32 %v1873, 7
        %v1875 = vsub.s32 %v1872, %v1874
        %v1876 = vrot.slane %v1868, %v1875
        %v1878 = vunpack.c.l.s4 1934713408
        %v1879 = vunpack.c.0.s8 %v1878
        %v1880 = vlaneseq
        %v1881 = vshrl.u32 %v1880, 7
        %v1882 = vsub.s32 %v1879, %v1881
        %v1883 = vrot.slane %v1869, %v1882
        %v1884 = vcombine.high %v1860, 0.0
        %v1885 = vcombine.high %v1867, 0.0
        %v1886 = vcombine.high %v1876, 0.0
        %v1887 = vcombine.high %v1883, 0.0
        %v1888 = vcombine.low %v1860, %v1867
        %v1890 = vunpack.c.l.s4 1983009808
        %v1891 = vunpack.c.0.s8 %v1890
        %v1892 = vlaneseq
        %v1893 = vshrl.u32 %v1892, 7
        %v1894 = vsub.s32 %v1891, %v1893
        %v1895 = vrot.slane %v1888, %v1894
        %v1896 = vcombine.low %v1884, %v1885
        %v1898 = vunpack.c.l.s4 1983009808
        %v1899 = vunpack.c.0.s8 %v1898
        %v1900 = vlaneseq
        %v1901 = vshrl.u32 %v1900, 7
        %v1902 = vsub.s32 %v1899, %v1901
        %v1903 = vrot.slane %v1896, %v1902
        %v1904 = vcombine.low %v1876, %v1883
        %v1906 = vunpack.c.l.s4 1983009808
        %v1907 = vunpack.c.0.s8 %v1906
        %v1908 = vlaneseq
        %v1909 = vshrl.u32 %v1908, 7
        %v1910 = vsub.s32 %v1907, %v1909
        %v1911 = vrot.slane %v1904, %v1910
        %v1912 = vcombine.low %v1886, %v1887
        %v1914 = vunpack.c.l.s4 1983009808
        %v1915 = vunpack.c.0.s8 %v1914
        %v1916 = vlaneseq
        %v1917 = vshrl.u32 %v1916, 7
        %v1918 = vsub.s32 %v1915, %v1917
        %v1919 = vrot.slane %v1912, %v1918
        %v1920 = vcombine.low %v1895, %v1903
        %v1921 = vcombine.high %v1895, %v1903
        %v1923 = vunpack.c.l.s4 1934713408
        %v1924 = vunpack.c.0.s8 %v1923
        %v1925 = vlaneseq
        %v1926 = vshrl.u32 %v1925, 7
        %v1927 = vsub.s32 %v1924, %v1926
        %v1928 = vrot.slane %v1920, %v1927
        %v1930 = vunpack.c.l.s4 1934713408
        %v1931 = vunpack.c.0.s8 %v1930
        %v1932 = vlaneseq
        %v1933 = vshrl.u32 %v1932, 7
        %v1934 = vsub.s32 %v1931, %v1933
        %v1935 = vrot.slane %v1921, %v1934
        %v1936 = vcombine.low %v1911, %v1919
        %v1937 = vcombine.high %v1911, %v1919
        %v1939 = vunpack.c.l.s4 1934713408
        %v1940 = vunpack.c.0.s8 %v1939
        %v1941 = vlaneseq
        %v1942 = vshrl.u32 %v1941, 7
        %v1943 = vsub.s32 %v1940, %v1942
        %v1944 = vrot.slane %v1936, %v1943
        %v1946 = vunpack.c.l.s4 1934713408
        %v1947 = vunpack.c.0.s8 %v1946
        %v1948 = vlaneseq
        %v1949 = vshrl.u32 %v1948, 7
        %v1950 = vsub.s32 %v1947, %v1949
        %v1951 = vrot.slane %v1937, %v1950
        %v1952 = vcombine.low %v1928, %v1944
        %v1953 = vcombine.high %v1928, %v1944
        %v1954 = vcombine.low %v1935, %v1951
        %v1955 = vcombine.high %v1935, %v1951
        %1956 = vrot.lane.b32.xlu0 %v776, 96
        %v1957 = vpop.permute.xlu0 %1956
        %1958 = vrot.lane.b32.xlu0 %v1812, 96
        %v1959 = vpop.permute.xlu0 %1958
        %1960 = vrot.lane.b32.xlu0 %v1815, 96
        %v1961 = vpop.permute.xlu0 %1960
        %1962 = vrot.lane.b32.xlu0 %v1818, 96
        %v1963 = vpop.permute.xlu0 %1962
        %v1968 = vcombine.low %v1957, %v1961
        %v1969 = vcombine.high %v1957, %v1961
        %v1971 = vunpack.c.l.s4 1983009808
        %v1972 = vunpack.c.0.s8 %v1971
        %v1973 = vlaneseq
        %v1974 = vshrl.u32 %v1973, 7
        %v1975 = vsub.s32 %v1972, %v1974
        %v1976 = vrot.slane %v1968, %v1975
        %v1978 = vunpack.c.l.s4 1983009808
        %v1979 = vunpack.c.0.s8 %v1978
        %v1980 = vlaneseq
        %v1981 = vshrl.u32 %v1980, 7
        %v1982 = vsub.s32 %v1979, %v1981
        %v1983 = vrot.slane %v1969, %v1982
        %v1984 = vcombine.low %v1959, %v1963
        %v1985 = vcombine.high %v1959, %v1963
        %v1987 = vunpack.c.l.s4 1983009808
        %v1988 = vunpack.c.0.s8 %v1987
        %v1989 = vlaneseq
        %v1990 = vshrl.u32 %v1989, 7
        %v1991 = vsub.s32 %v1988, %v1990
        %v1992 = vrot.slane %v1984, %v1991
        %v1994 = vunpack.c.l.s4 1983009808
        %v1995 = vunpack.c.0.s8 %v1994
        %v1996 = vlaneseq
        %v1997 = vshrl.u32 %v1996, 7
        %v1998 = vsub.s32 %v1995, %v1997
        %v1999 = vrot.slane %v1985, %v1998
        %v2000 = vcombine.low %v1976, %v1992
        %v2001 = vcombine.high %v1976, %v1992
        %v2003 = vunpack.c.l.s4 1934713408
        %v2004 = vunpack.c.0.s8 %v2003
        %v2005 = vlaneseq
        %v2006 = vshrl.u32 %v2005, 7
        %v2007 = vsub.s32 %v2004, %v2006
        %v2008 = vrot.slane %v2000, %v2007
        %v2010 = vunpack.c.l.s4 1934713408
        %v2011 = vunpack.c.0.s8 %v2010
        %v2012 = vlaneseq
        %v2013 = vshrl.u32 %v2012, 7
        %v2014 = vsub.s32 %v2011, %v2013
        %v2015 = vrot.slane %v2001, %v2014
        %v2016 = vcombine.low %v1983, %v1999
        %v2017 = vcombine.high %v1983, %v1999
        %v2019 = vunpack.c.l.s4 1934713408
        %v2020 = vunpack.c.0.s8 %v2019
        %v2021 = vlaneseq
        %v2022 = vshrl.u32 %v2021, 7
        %v2023 = vsub.s32 %v2020, %v2022
        %v2024 = vrot.slane %v2016, %v2023
        %v2026 = vunpack.c.l.s4 1934713408
        %v2027 = vunpack.c.0.s8 %v2026
        %v2028 = vlaneseq
        %v2029 = vshrl.u32 %v2028, 7
        %v2030 = vsub.s32 %v2027, %v2029
        %v2031 = vrot.slane %v2017, %v2030
        %v2032 = vcombine.high %v2008, 0.0
        %v2033 = vcombine.high %v2015, 0.0
        %v2034 = vcombine.high %v2024, 0.0
        %v2035 = vcombine.high %v2031, 0.0
        %v2036 = vcombine.low %v2008, %v2015
        %v2038 = vunpack.c.l.s4 1983009808
        %v2039 = vunpack.c.0.s8 %v2038
        %v2040 = vlaneseq
        %v2041 = vshrl.u32 %v2040, 7
        %v2042 = vsub.s32 %v2039, %v2041
        %v2043 = vrot.slane %v2036, %v2042
        %v2044 = vcombine.low %v2032, %v2033
        %v2046 = vunpack.c.l.s4 1983009808
        %v2047 = vunpack.c.0.s8 %v2046
        %v2048 = vlaneseq
        %v2049 = vshrl.u32 %v2048, 7
        %v2050 = vsub.s32 %v2047, %v2049
        %v2051 = vrot.slane %v2044, %v2050
        %v2052 = vcombine.low %v2024, %v2031
        %v2054 = vunpack.c.l.s4 1983009808
        %v2055 = vunpack.c.0.s8 %v2054
        %v2056 = vlaneseq
        %v2057 = vshrl.u32 %v2056, 7
        %v2058 = vsub.s32 %v2055, %v2057
        %v2059 = vrot.slane %v2052, %v2058
        %v2060 = vcombine.low %v2034, %v2035
        %v2062 = vunpack.c.l.s4 1983009808
        %v2063 = vunpack.c.0.s8 %v2062
        %v2064 = vlaneseq
        %v2065 = vshrl.u32 %v2064, 7
        %v2066 = vsub.s32 %v2063, %v2065
        %v2067 = vrot.slane %v2060, %v2066
        %v2068 = vcombine.low %v2043, %v2051
        %v2069 = vcombine.high %v2043, %v2051
        %v2071 = vunpack.c.l.s4 1934713408
        %v2072 = vunpack.c.0.s8 %v2071
        %v2073 = vlaneseq
        %v2074 = vshrl.u32 %v2073, 7
        %v2075 = vsub.s32 %v2072, %v2074
        %v2076 = vrot.slane %v2068, %v2075
        %v2078 = vunpack.c.l.s4 1934713408
        %v2079 = vunpack.c.0.s8 %v2078
        %v2080 = vlaneseq
        %v2081 = vshrl.u32 %v2080, 7
        %v2082 = vsub.s32 %v2079, %v2081
        %v2083 = vrot.slane %v2069, %v2082
        %v2084 = vcombine.low %v2059, %v2067
        %v2085 = vcombine.high %v2059, %v2067
        %v2087 = vunpack.c.l.s4 1934713408
        %v2088 = vunpack.c.0.s8 %v2087
        %v2089 = vlaneseq
        %v2090 = vshrl.u32 %v2089, 7
        %v2091 = vsub.s32 %v2088, %v2090
        %v2092 = vrot.slane %v2084, %v2091
        %v2094 = vunpack.c.l.s4 1934713408
        %v2095 = vunpack.c.0.s8 %v2094
        %v2096 = vlaneseq
        %v2097 = vshrl.u32 %v2096, 7
        %v2098 = vsub.s32 %v2095, %v2097
        %v2099 = vrot.slane %v2085, %v2098
        %v2100 = vcombine.low %v2076, %v2092
        %v2101 = vcombine.high %v2076, %v2092
        %v2102 = vcombine.low %v2083, %v2099
        %v2103 = vcombine.high %v2083, %v2099
        %2104 = vrot.lane.b32.xlu0 %v776, 64
        %v2105 = vpop.permute.xlu0 %2104
        %2106 = vrot.lane.b32.xlu0 %v1812, 64
        %v2107 = vpop.permute.xlu0 %2106
        %2108 = vrot.lane.b32.xlu0 %v1815, 64
        %v2109 = vpop.permute.xlu0 %2108
        %2110 = vrot.lane.b32.xlu0 %v1818, 64
        %v2111 = vpop.permute.xlu0 %2110
        %v2116 = vcombine.low %v2105, %v2109
        %v2117 = vcombine.high %v2105, %v2109
        %v2119 = vunpack.c.l.s4 1983009808
        %v2120 = vunpack.c.0.s8 %v2119
        %v2121 = vlaneseq
        %v2122 = vshrl.u32 %v2121, 7
        %v2123 = vsub.s32 %v2120, %v2122
        %v2124 = vrot.slane %v2116, %v2123
        %v2126 = vunpack.c.l.s4 1983009808
        %v2127 = vunpack.c.0.s8 %v2126
        %v2128 = vlaneseq
        %v2129 = vshrl.u32 %v2128, 7
        %v2130 = vsub.s32 %v2127, %v2129
        %v2131 = vrot.slane %v2117, %v2130
        %v2132 = vcombine.low %v2107, %v2111
        %v2133 = vcombine.high %v2107, %v2111
        %v2135 = vunpack.c.l.s4 1983009808
        %v2136 = vunpack.c.0.s8 %v2135
        %v2137 = vlaneseq
        %v2138 = vshrl.u32 %v2137, 7
        %v2139 = vsub.s32 %v2136, %v2138
        %v2140 = vrot.slane %v2132, %v2139
        %v2142 = vunpack.c.l.s4 1983009808
        %v2143 = vunpack.c.0.s8 %v2142
        %v2144 = vlaneseq
        %v2145 = vshrl.u32 %v2144, 7
        %v2146 = vsub.s32 %v2143, %v2145
        %v2147 = vrot.slane %v2133, %v2146
        %v2148 = vcombine.low %v2124, %v2140
        %v2149 = vcombine.high %v2124, %v2140
        %v2151 = vunpack.c.l.s4 1934713408
        %v2152 = vunpack.c.0.s8 %v2151
        %v2153 = vlaneseq
        %v2154 = vshrl.u32 %v2153, 7
        %v2155 = vsub.s32 %v2152, %v2154
        %v2156 = vrot.slane %v2148, %v2155
        %v2158 = vunpack.c.l.s4 1934713408
        %v2159 = vunpack.c.0.s8 %v2158
        %v2160 = vlaneseq
        %v2161 = vshrl.u32 %v2160, 7
        %v2162 = vsub.s32 %v2159, %v2161
        %v2163 = vrot.slane %v2149, %v2162
        %v2164 = vcombine.low %v2131, %v2147
        %v2165 = vcombine.high %v2131, %v2147
        %v2167 = vunpack.c.l.s4 1934713408
        %v2168 = vunpack.c.0.s8 %v2167
        %v2169 = vlaneseq
        %v2170 = vshrl.u32 %v2169, 7
        %v2171 = vsub.s32 %v2168, %v2170
        %v2172 = vrot.slane %v2164, %v2171
        %v2174 = vunpack.c.l.s4 1934713408
        %v2175 = vunpack.c.0.s8 %v2174
        %v2176 = vlaneseq
        %v2177 = vshrl.u32 %v2176, 7
        %v2178 = vsub.s32 %v2175, %v2177
        %v2179 = vrot.slane %v2165, %v2178
        %v2180 = vcombine.high %v2156, 0.0
        %v2181 = vcombine.high %v2163, 0.0
        %v2182 = vcombine.high %v2172, 0.0
        %v2183 = vcombine.high %v2179, 0.0
        %v2184 = vcombine.low %v2156, %v2163
        %v2186 = vunpack.c.l.s4 1983009808
        %v2187 = vunpack.c.0.s8 %v2186
        %v2188 = vlaneseq
        %v2189 = vshrl.u32 %v2188, 7
        %v2190 = vsub.s32 %v2187, %v2189
        %v2191 = vrot.slane %v2184, %v2190
        %v2192 = vcombine.low %v2180, %v2181
        %v2194 = vunpack.c.l.s4 1983009808
        %v2195 = vunpack.c.0.s8 %v2194
        %v2196 = vlaneseq
        %v2197 = vshrl.u32 %v2196, 7
        %v2198 = vsub.s32 %v2195, %v2197
        %v2199 = vrot.slane %v2192, %v2198
        %v2200 = vcombine.low %v2172, %v2179
        %v2202 = vunpack.c.l.s4 1983009808
        %v2203 = vunpack.c.0.s8 %v2202
        %v2204 = vlaneseq
        %v2205 = vshrl.u32 %v2204, 7
        %v2206 = vsub.s32 %v2203, %v2205
        %v2207 = vrot.slane %v2200, %v2206
        %v2208 = vcombine.low %v2182, %v2183
        %v2210 = vunpack.c.l.s4 1983009808
        %v2211 = vunpack.c.0.s8 %v2210
        %v2212 = vlaneseq
        %v2213 = vshrl.u32 %v2212, 7
        %v2214 = vsub.s32 %v2211, %v2213
        %v2215 = vrot.slane %v2208, %v2214
        %v2216 = vcombine.low %v2191, %v2199
        %v2217 = vcombine.high %v2191, %v2199
        %v2219 = vunpack.c.l.s4 1934713408
        %v2220 = vunpack.c.0.s8 %v2219
        %v2221 = vlaneseq
        %v2222 = vshrl.u32 %v2221, 7
        %v2223 = vsub.s32 %v2220, %v2222
        %v2224 = vrot.slane %v2216, %v2223
        %v2226 = vunpack.c.l.s4 1934713408
        %v2227 = vunpack.c.0.s8 %v2226
        %v2228 = vlaneseq
        %v2229 = vshrl.u32 %v2228, 7
        %v2230 = vsub.s32 %v2227, %v2229
        %v2231 = vrot.slane %v2217, %v2230
        %v2232 = vcombine.low %v2207, %v2215
        %v2233 = vcombine.high %v2207, %v2215
        %v2235 = vunpack.c.l.s4 1934713408
        %v2236 = vunpack.c.0.s8 %v2235
        %v2237 = vlaneseq
        %v2238 = vshrl.u32 %v2237, 7
        %v2239 = vsub.s32 %v2236, %v2238
        %v2240 = vrot.slane %v2232, %v2239
        %v2242 = vunpack.c.l.s4 1934713408
        %v2243 = vunpack.c.0.s8 %v2242
        %v2244 = vlaneseq
        %v2245 = vshrl.u32 %v2244, 7
        %v2246 = vsub.s32 %v2243, %v2245
        %v2247 = vrot.slane %v2233, %v2246
        %v2248 = vcombine.low %v2224, %v2240
        %v2249 = vcombine.high %v2224, %v2240
        %v2250 = vcombine.low %v2231, %v2247
        %v2251 = vcombine.high %v2231, %v2247
        %v2252 = vpack.c.bf16 %v1952, %v1952
        %v2253 = vpack.c.bf16 %v1953, %v1953
        %v2254 = vpack.c.bf16 %v1954, %v1954
        %v2255 = vpack.c.bf16 %v1955, %v1955
        %v2256 = vpack.c.bf16 %v2100, %v2100
        %v2257 = vpack.c.bf16 %v2101, %v2101
        %v2258 = vpack.c.bf16 %v2102, %v2102
        %v2259 = vpack.c.bf16 %v2103, %v2103
        %v2261 = vlaneseq
        %v2262 = vshrl.u32 %v2261, 7
        %v2263 = vsub.s32 0, %v2262
        %v2264 = vrot.slane %v709, %v2263
        %v2267 = vsel %vm1235, %v2252, 0
        %v2270 = vsel %vm1235, %v2256, 0
        %2272 = vmatprep.subr.bf16.mxu0 0
        %2273 = vmatpush1.bf16.xpose.msra.mxu0 0
        %2274 = vmatprep.subr.bf16.mxu0 0
        %2275 = vmatpush1.bf16.xpose.msra.mxu0 0
        %2276 = vmatprep.subr.bf16.mxu0 0
        %2277 = vmatpush1.bf16.xpose.msra.mxu0 0
        %2278 = vmatprep.subr.bf16.mxu0 0
        %2279 = vmatpush1.bf16.xpose.msra.mxu0 0
        %2280 = vmatprep.subr.bf16.mxu0 0
        %2281 = vmatpush1.bf16.xpose.msra.mxu0 0
        %2282 = vmatprep.subr.bf16.mxu0 0
        %2283 = vmatpush1.bf16.xpose.msra.mxu0 0
        %2284 = vmatprep.subr.bf16.mxu0 0
        %2285 = vmatpush1.bf16.xpose.msra.mxu0 0
        %2286 = vmatprep.subr.bf16.mxu0 0
        %2287 = vmatpush1.bf16.xpose.msra.mxu0 %v2270
        %2288 = vmatprep.subr.bf16.mxu0 0
        %2289 = vmatpush2.bf16.xpose.msra.mxu0 0
        %2290 = vmatprep.subr.bf16.mxu0 0
        %2291 = vmatpush2.bf16.xpose.msra.mxu0 0
        %2292 = vmatprep.subr.bf16.mxu0 0
        %2293 = vmatpush2.bf16.xpose.msra.mxu0 0
        %2294 = vmatprep.subr.bf16.mxu0 0
        %2295 = vmatpush2.bf16.xpose.msra.mxu0 0
        %2296 = vmatprep.subr.bf16.mxu0 0
        %2297 = vmatpush2.bf16.xpose.msra.mxu0 0
        %2298 = vmatprep.subr.bf16.mxu0 0
        %2299 = vmatpush2.bf16.xpose.msra.mxu0 0
        %2300 = vmatprep.subr.bf16.mxu0 0
        %2301 = vmatpush2.bf16.xpose.msra.mxu0 0
        %2302 = vmatprep.subr.bf16.mxu0 0
        %2303 = vmatpush2.bf16.xpose.msra.mxu0 0
        %2304 = vmatprep.mubr.bf16.mxu0 0
        %2305 = vmatmul.mubr.bf16.gmra.mxu0 %v2267
        %v2306 = vpop.f32.mrf.mxu0
        %v2307 = vadd.f32 %v2264, %v2306
        %v2308 = vpop.f32.mrf.mxu0
        %v2309 = vpop.f32.mrf.mxu0
        %v2310 = vpop.f32.mrf.mxu0
        %2311 = vdwg.mxu0
        %v2313 = vsel %vm1235, %v2253, 0
        %v2316 = vsel %vm1235, %v2257, 0
        %2318 = vmatprep.subr.bf16.mxu0 0
        %2319 = vmatpush1.bf16.xpose.msra.mxu0 0
        %2320 = vmatprep.subr.bf16.mxu0 0
        %2321 = vmatpush1.bf16.xpose.msra.mxu0 0
        %2322 = vmatprep.subr.bf16.mxu0 0
        %2323 = vmatpush1.bf16.xpose.msra.mxu0 0
        %2324 = vmatprep.subr.bf16.mxu0 0
        %2325 = vmatpush1.bf16.xpose.msra.mxu0 0
        %2326 = vmatprep.subr.bf16.mxu0 0
        %2327 = vmatpush1.bf16.xpose.msra.mxu0 0
        %2328 = vmatprep.subr.bf16.mxu0 0
        %2329 = vmatpush1.bf16.xpose.msra.mxu0 0
        %2330 = vmatprep.subr.bf16.mxu0 0
        %2331 = vmatpush1.bf16.xpose.msra.mxu0 0
        %2332 = vmatprep.subr.bf16.mxu0 0
        %2333 = vmatpush1.bf16.xpose.msra.mxu0 %v2316
        %2334 = vmatprep.subr.bf16.mxu0 0
        %2335 = vmatpush2.bf16.xpose.msra.mxu0 0
        %2336 = vmatprep.subr.bf16.mxu0 0
        %2337 = vmatpush2.bf16.xpose.msra.mxu0 0
        %2338 = vmatprep.subr.bf16.mxu0 0
        %2339 = vmatpush2.bf16.xpose.msra.mxu0 0
        %2340 = vmatprep.subr.bf16.mxu0 0
        %2341 = vmatpush2.bf16.xpose.msra.mxu0 0
        %2342 = vmatprep.subr.bf16.mxu0 0
        %2343 = vmatpush2.bf16.xpose.msra.mxu0 0
        %2344 = vmatprep.subr.bf16.mxu0 0
        %2345 = vmatpush2.bf16.xpose.msra.mxu0 0
        %2346 = vmatprep.subr.bf16.mxu0 0
        %2347 = vmatpush2.bf16.xpose.msra.mxu0 0
        %2348 = vmatprep.subr.bf16.mxu0 0
        %2349 = vmatpush2.bf16.xpose.msra.mxu0 0
        %2350 = vmatprep.mubr.bf16.mxu0 0
        %2351 = vmatmul.mubr.bf16.gmra.mxu0 %v2313
        %v2352 = vpop.f32.mrf.mxu0
        %v2353 = vadd.f32 %v2264, %v2352
        %v2354 = vpop.f32.mrf.mxu0
        %v2355 = vpop.f32.mrf.mxu0
        %v2356 = vpop.f32.mrf.mxu0
        %2357 = vdwg.mxu0
        %v2359 = vsel %vm1235, %v2254, 0
        %v2362 = vsel %vm1235, %v2258, 0
        %2364 = vmatprep.subr.bf16.mxu0 0
        %2365 = vmatpush1.bf16.xpose.msra.mxu0 0
        %2366 = vmatprep.subr.bf16.mxu0 0
        %2367 = vmatpush1.bf16.xpose.msra.mxu0 0
        %2368 = vmatprep.subr.bf16.mxu0 0
        %2369 = vmatpush1.bf16.xpose.msra.mxu0 0
        %2370 = vmatprep.subr.bf16.mxu0 0
        %2371 = vmatpush1.bf16.xpose.msra.mxu0 0
        %2372 = vmatprep.subr.bf16.mxu0 0
        %2373 = vmatpush1.bf16.xpose.msra.mxu0 0
        %2374 = vmatprep.subr.bf16.mxu0 0
        %2375 = vmatpush1.bf16.xpose.msra.mxu0 0
        %2376 = vmatprep.subr.bf16.mxu0 0
        %2377 = vmatpush1.bf16.xpose.msra.mxu0 0
        %2378 = vmatprep.subr.bf16.mxu0 0
        %2379 = vmatpush1.bf16.xpose.msra.mxu0 %v2362
        %2380 = vmatprep.subr.bf16.mxu0 0
        %2381 = vmatpush2.bf16.xpose.msra.mxu0 0
        %2382 = vmatprep.subr.bf16.mxu0 0
        %2383 = vmatpush2.bf16.xpose.msra.mxu0 0
        %2384 = vmatprep.subr.bf16.mxu0 0
        %2385 = vmatpush2.bf16.xpose.msra.mxu0 0
        %2386 = vmatprep.subr.bf16.mxu0 0
        %2387 = vmatpush2.bf16.xpose.msra.mxu0 0
        %2388 = vmatprep.subr.bf16.mxu0 0
        %2389 = vmatpush2.bf16.xpose.msra.mxu0 0
        %2390 = vmatprep.subr.bf16.mxu0 0
        %2391 = vmatpush2.bf16.xpose.msra.mxu0 0
        %2392 = vmatprep.subr.bf16.mxu0 0
        %2393 = vmatpush2.bf16.xpose.msra.mxu0 0
        %2394 = vmatprep.subr.bf16.mxu0 0
        %2395 = vmatpush2.bf16.xpose.msra.mxu0 0
        %2396 = vmatprep.mubr.bf16.mxu0 0
        %2397 = vmatmul.mubr.bf16.gmra.mxu0 %v2359
        %v2398 = vpop.f32.mrf.mxu0
        %v2399 = vadd.f32 %v2264, %v2398
        %v2400 = vpop.f32.mrf.mxu0
        %v2401 = vpop.f32.mrf.mxu0
        %v2402 = vpop.f32.mrf.mxu0
        %2403 = vdwg.mxu0
        %v2405 = vsel %vm1235, %v2255, 0
        %v2408 = vsel %vm1235, %v2259, 0
        %2410 = vmatprep.subr.bf16.mxu0 0
        %2411 = vmatpush1.bf16.xpose.msra.mxu0 0
        %2412 = vmatprep.subr.bf16.mxu0 0
        %2413 = vmatpush1.bf16.xpose.msra.mxu0 0
        %2414 = vmatprep.subr.bf16.mxu0 0
        %2415 = vmatpush1.bf16.xpose.msra.mxu0 0
        %2416 = vmatprep.subr.bf16.mxu0 0
        %2417 = vmatpush1.bf16.xpose.msra.mxu0 0
        %2418 = vmatprep.subr.bf16.mxu0 0
        %2419 = vmatpush1.bf16.xpose.msra.mxu0 0
        %2420 = vmatprep.subr.bf16.mxu0 0
        %2421 = vmatpush1.bf16.xpose.msra.mxu0 0
        %2422 = vmatprep.subr.bf16.mxu0 0
        %2423 = vmatpush1.bf16.xpose.msra.mxu0 0
        %2424 = vmatprep.subr.bf16.mxu0 0
        %2425 = vmatpush1.bf16.xpose.msra.mxu0 %v2408
        %2426 = vmatprep.subr.bf16.mxu0 0
        %2427 = vmatpush2.bf16.xpose.msra.mxu0 0
        %2428 = vmatprep.subr.bf16.mxu0 0
        %2429 = vmatpush2.bf16.xpose.msra.mxu0 0
        %2430 = vmatprep.subr.bf16.mxu0 0
        %2431 = vmatpush2.bf16.xpose.msra.mxu0 0
        %2432 = vmatprep.subr.bf16.mxu0 0
        %2433 = vmatpush2.bf16.xpose.msra.mxu0 0
        %2434 = vmatprep.subr.bf16.mxu0 0
        %2435 = vmatpush2.bf16.xpose.msra.mxu0 0
        %2436 = vmatprep.subr.bf16.mxu0 0
        %2437 = vmatpush2.bf16.xpose.msra.mxu0 0
        %2438 = vmatprep.subr.bf16.mxu0 0
        %2439 = vmatpush2.bf16.xpose.msra.mxu0 0
        %2440 = vmatprep.subr.bf16.mxu0 0
        %2441 = vmatpush2.bf16.xpose.msra.mxu0 0
        %2442 = vmatprep.mubr.bf16.mxu0 0
        %2443 = vmatmul.mubr.bf16.gmra.mxu0 %v2405
        %v2444 = vpop.f32.mrf.mxu0
        %v2445 = vadd.f32 %v2264, %v2444
        %v2446 = vpop.f32.mrf.mxu0
        %v2447 = vpop.f32.mrf.mxu0
        %v2448 = vpop.f32.mrf.mxu0
        %2449 = vdwg.mxu0
        %v2450 = vsel %vm1235, %v2307, -inf
        %2451 = vmax.xlane.f32.xlu0 %v2450
        %v2452 = vpop.xlane.xlu0 %2451
        %v2453 = vsel %vm1235, %v2353, -inf
        %2454 = vmax.xlane.f32.xlu0 %v2453
        %v2455 = vpop.xlane.xlu0 %2454
        %v2456 = vsel %vm1235, %v2399, -inf
        %2457 = vmax.xlane.f32.xlu0 %v2456
        %v2458 = vpop.xlane.xlu0 %2457
        %v2459 = vsel %vm1235, %v2445, -inf
        %2460 = vmax.xlane.f32.xlu0 %v2459
        %v2461 = vpop.xlane.xlu0 %2460
        %v2462 = vsub.f32 %v2307, %v2452
        %v2463 = vsub.f32 %v2353, %v2455
        %v2464 = vsub.f32 %v2399, %v2458
        %v2465 = vsub.f32 %v2445, %v2461
        %v2466 = vmul.f32 %v2462, 1.442695
        %v2467 = vpow.pop %v2466
        %v2468 = vmul.f32 %v2463, 1.442695
        %v2469 = vpow.pop %v2468
        %v2470 = vmul.f32 %v2464, 1.442695
        %v2471 = vpow.pop %v2470
        %v2472 = vmul.f32 %v2465, 1.442695
        %v2473 = vpow.pop %v2472
        %v2474 = vsel %vm1235, %v2467, 0.0
        %2475 = vadd.xlane.f32.xlu0 %v2474
        %v2476 = vpop.xlane.xlu0 %2475
        %v2477 = vsel %vm1235, %v2469, 0.0
        %2478 = vadd.xlane.f32.xlu0 %v2477
        %v2479 = vpop.xlane.xlu0 %2478
        %v2480 = vsel %vm1235, %v2471, 0.0
        %2481 = vadd.xlane.f32.xlu0 %v2480
        %v2482 = vpop.xlane.xlu0 %2481
        %v2483 = vsel %vm1235, %v2473, 0.0
        %2484 = vadd.xlane.f32.xlu0 %v2483
        %v2485 = vpop.xlane.xlu0 %2484
        %v2486 = vrcp.pop %v2476
        %v2487 = vrcp.pop %v2479
        %v2488 = vrcp.pop %v2482
        %v2489 = vrcp.pop %v2485
        %v2490 = vmul.f32 %v2467, %v2486
        %v2491 = vmul.f32 %v2469, %v2487
        %v2492 = vmul.f32 %v2471, %v2488
        %v2493 = vmul.f32 %v2473, %v2489
        %v2494 = vpack.c.bf16 %v2490, %v2490
        %v2495 = vpack.c.bf16 %v2491, %v2491
        %v2496 = vpack.c.bf16 %v2492, %v2492
        %v2497 = vpack.c.bf16 %v2493, %v2493
        %v2498 = vpack.c.bf16 %v2248, %v2248
        %v2499 = vpack.c.bf16 %v2249, %v2249
        %v2500 = vpack.c.bf16 %v2250, %v2250
        %v2501 = vpack.c.bf16 %v2251, %v2251
        %v2503 = vsel %vm1235, %v2494, 0
        %v2506 = vsel %vm1475, %v2498, 0
        %2508 = vmatprep.subr.bf16.mxu0 0
        %2509 = vmatpush1.bf16.msra.mxu0 0
        %2510 = vmatprep.subr.bf16.mxu0 0
        %2511 = vmatpush1.bf16.msra.mxu0 0
        %2512 = vmatprep.subr.bf16.mxu0 0
        %2513 = vmatpush1.bf16.msra.mxu0 0
        %2514 = vmatprep.subr.bf16.mxu0 0
        %2515 = vmatpush1.bf16.msra.mxu0 0
        %2516 = vmatprep.subr.bf16.mxu0 0
        %2517 = vmatpush1.bf16.msra.mxu0 0
        %2518 = vmatprep.subr.bf16.mxu0 0
        %2519 = vmatpush1.bf16.msra.mxu0 0
        %2520 = vmatprep.subr.bf16.mxu0 0
        %2521 = vmatpush1.bf16.msra.mxu0 0
        %2522 = vmatprep.subr.bf16.mxu0 0
        %2523 = vmatpush1.bf16.msra.mxu0 %v2506
        %2524 = vmatprep.subr.bf16.mxu0 0
        %2525 = vmatpush2.bf16.msra.mxu0 0
        %2526 = vmatprep.subr.bf16.mxu0 0
        %2527 = vmatpush2.bf16.msra.mxu0 0
        %2528 = vmatprep.subr.bf16.mxu0 0
        %2529 = vmatpush2.bf16.msra.mxu0 0
        %2530 = vmatprep.subr.bf16.mxu0 0
        %2531 = vmatpush2.bf16.msra.mxu0 0
        %2532 = vmatprep.subr.bf16.mxu0 0
        %2533 = vmatpush2.bf16.msra.mxu0 0
        %2534 = vmatprep.subr.bf16.mxu0 0
        %2535 = vmatpush2.bf16.msra.mxu0 0
        %2536 = vmatprep.subr.bf16.mxu0 0
        %2537 = vmatpush2.bf16.msra.mxu0 0
        %2538 = vmatprep.subr.bf16.mxu0 0
        %2539 = vmatpush2.bf16.msra.mxu0 0
        %2540 = vmatprep.mubr.bf16.mxu0 0
        %2541 = vmatmul.mubr.bf16.gmra.mxu0 %v2503
        %v2542 = vpop.f32.mrf.mxu0
        %v2543 = vadd.f32 0.0, %v2542
        %v2544 = vpop.f32.mrf.mxu0
        %v2545 = vpop.f32.mrf.mxu0
        %v2546 = vpop.f32.mrf.mxu0
        %2547 = vdwg.mxu0
        %v2549 = vsel %vm1235, %v2495, 0
        %v2552 = vsel %vm1475, %v2499, 0
        %2554 = vmatprep.subr.bf16.mxu0 0
        %2555 = vmatpush1.bf16.msra.mxu0 0
        %2556 = vmatprep.subr.bf16.mxu0 0
        %2557 = vmatpush1.bf16.msra.mxu0 0
        %2558 = vmatprep.subr.bf16.mxu0 0
        %2559 = vmatpush1.bf16.msra.mxu0 0
        %2560 = vmatprep.subr.bf16.mxu0 0
        %2561 = vmatpush1.bf16.msra.mxu0 0
        %2562 = vmatprep.subr.bf16.mxu0 0
        %2563 = vmatpush1.bf16.msra.mxu0 0
        %2564 = vmatprep.subr.bf16.mxu0 0
        %2565 = vmatpush1.bf16.msra.mxu0 0
        %2566 = vmatprep.subr.bf16.mxu0 0
        %2567 = vmatpush1.bf16.msra.mxu0 0
        %2568 = vmatprep.subr.bf16.mxu0 0
        %2569 = vmatpush1.bf16.msra.mxu0 %v2552
        %2570 = vmatprep.subr.bf16.mxu0 0
        %2571 = vmatpush2.bf16.msra.mxu0 0
        %2572 = vmatprep.subr.bf16.mxu0 0
        %2573 = vmatpush2.bf16.msra.mxu0 0
        %2574 = vmatprep.subr.bf16.mxu0 0
        %2575 = vmatpush2.bf16.msra.mxu0 0
        %2576 = vmatprep.subr.bf16.mxu0 0
        %2577 = vmatpush2.bf16.msra.mxu0 0
        %2578 = vmatprep.subr.bf16.mxu0 0
        %2579 = vmatpush2.bf16.msra.mxu0 0
        %2580 = vmatprep.subr.bf16.mxu0 0
        %2581 = vmatpush2.bf16.msra.mxu0 0
        %2582 = vmatprep.subr.bf16.mxu0 0
        %2583 = vmatpush2.bf16.msra.mxu0 0
        %2584 = vmatprep.subr.bf16.mxu0 0
        %2585 = vmatpush2.bf16.msra.mxu0 0
        %2586 = vmatprep.mubr.bf16.mxu0 0
        %2587 = vmatmul.mubr.bf16.gmra.mxu0 %v2549
        %v2588 = vpop.f32.mrf.mxu0
        %v2589 = vadd.f32 0.0, %v2588
        %v2590 = vpop.f32.mrf.mxu0
        %v2591 = vpop.f32.mrf.mxu0
        %v2592 = vpop.f32.mrf.mxu0
        %2593 = vdwg.mxu0
        %v2595 = vsel %vm1235, %v2496, 0
        %v2598 = vsel %vm1475, %v2500, 0
        %2600 = vmatprep.subr.bf16.mxu0 0
        %2601 = vmatpush1.bf16.msra.mxu0 0
        %2602 = vmatprep.subr.bf16.mxu0 0
        %2603 = vmatpush1.bf16.msra.mxu0 0
        %2604 = vmatprep.subr.bf16.mxu0 0
        %2605 = vmatpush1.bf16.msra.mxu0 0
        %2606 = vmatprep.subr.bf16.mxu0 0
        %2607 = vmatpush1.bf16.msra.mxu0 0
        %2608 = vmatprep.subr.bf16.mxu0 0
        %2609 = vmatpush1.bf16.msra.mxu0 0
        %2610 = vmatprep.subr.bf16.mxu0 0
        %2611 = vmatpush1.bf16.msra.mxu0 0
        %2612 = vmatprep.subr.bf16.mxu0 0
        %2613 = vmatpush1.bf16.msra.mxu0 0
        %2614 = vmatprep.subr.bf16.mxu0 0
        %2615 = vmatpush1.bf16.msra.mxu0 %v2598
        %2616 = vmatprep.subr.bf16.mxu0 0
        %2617 = vmatpush2.bf16.msra.mxu0 0
        %2618 = vmatprep.subr.bf16.mxu0 0
        %2619 = vmatpush2.bf16.msra.mxu0 0
        %2620 = vmatprep.subr.bf16.mxu0 0
        %2621 = vmatpush2.bf16.msra.mxu0 0
        %2622 = vmatprep.subr.bf16.mxu0 0
        %2623 = vmatpush2.bf16.msra.mxu0 0
        %2624 = vmatprep.subr.bf16.mxu0 0
        %2625 = vmatpush2.bf16.msra.mxu0 0
        %2626 = vmatprep.subr.bf16.mxu0 0
        %2627 = vmatpush2.bf16.msra.mxu0 0
        %2628 = vmatprep.subr.bf16.mxu0 0
        %2629 = vmatpush2.bf16.msra.mxu0 0
        %2630 = vmatprep.subr.bf16.mxu0 0
        %2631 = vmatpush2.bf16.msra.mxu0 0
        %2632 = vmatprep.mubr.bf16.mxu0 0
        %2633 = vmatmul.mubr.bf16.gmra.mxu0 %v2595
        %v2634 = vpop.f32.mrf.mxu0
        %v2635 = vadd.f32 0.0, %v2634
        %v2636 = vpop.f32.mrf.mxu0
        %v2637 = vpop.f32.mrf.mxu0
        %v2638 = vpop.f32.mrf.mxu0
        %2639 = vdwg.mxu0
        %v2641 = vsel %vm1235, %v2497, 0
        %v2644 = vsel %vm1475, %v2501, 0
        %2646 = vmatprep.subr.bf16.mxu0 0
        %2647 = vmatpush1.bf16.msra.mxu0 0
        %2648 = vmatprep.subr.bf16.mxu0 0
        %2649 = vmatpush1.bf16.msra.mxu0 0
        %2650 = vmatprep.subr.bf16.mxu0 0
        %2651 = vmatpush1.bf16.msra.mxu0 0
        %2652 = vmatprep.subr.bf16.mxu0 0
        %2653 = vmatpush1.bf16.msra.mxu0 0
        %2654 = vmatprep.subr.bf16.mxu0 0
        %2655 = vmatpush1.bf16.msra.mxu0 0
        %2656 = vmatprep.subr.bf16.mxu0 0
        %2657 = vmatpush1.bf16.msra.mxu0 0
        %2658 = vmatprep.subr.bf16.mxu0 0
        %2659 = vmatpush1.bf16.msra.mxu0 0
        %2660 = vmatprep.subr.bf16.mxu0 0
        %2661 = vmatpush1.bf16.msra.mxu0 %v2644
        %2662 = vmatprep.subr.bf16.mxu0 0
        %2663 = vmatpush2.bf16.msra.mxu0 0
        %2664 = vmatprep.subr.bf16.mxu0 0
        %2665 = vmatpush2.bf16.msra.mxu0 0
        %2666 = vmatprep.subr.bf16.mxu0 0
        %2667 = vmatpush2.bf16.msra.mxu0 0
        %2668 = vmatprep.subr.bf16.mxu0 0
        %2669 = vmatpush2.bf16.msra.mxu0 0
        %2670 = vmatprep.subr.bf16.mxu0 0
        %2671 = vmatpush2.bf16.msra.mxu0 0
        %2672 = vmatprep.subr.bf16.mxu0 0
        %2673 = vmatpush2.bf16.msra.mxu0 0
        %2674 = vmatprep.subr.bf16.mxu0 0
        %2675 = vmatpush2.bf16.msra.mxu0 0
        %2676 = vmatprep.subr.bf16.mxu0 0
        %2677 = vmatpush2.bf16.msra.mxu0 0
        %2678 = vmatprep.mubr.bf16.mxu0 0
        %2679 = vmatmul.mubr.bf16.gmra.mxu0 %v2641
        %v2680 = vpop.f32.mrf.mxu0
        %v2681 = vadd.f32 0.0, %v2680
        %v2682 = vpop.f32.mrf.mxu0
        %v2683 = vpop.f32.mrf.mxu0
        %v2684 = vpop.f32.mrf.mxu0
        %2685 = vdwg.mxu0
        %v2686 = vcombine.low %v2543, %v2635
        %v2687 = vcombine.high %v2543, %v2635
        %v2689 = vunpack.c.l.s4 1983009808
        %v2690 = vunpack.c.0.s8 %v2689
        %v2691 = vlaneseq
        %v2692 = vshrl.u32 %v2691, 7
        %v2693 = vsub.s32 %v2690, %v2692
        %v2694 = vrot.slane %v2686, %v2693
        %v2696 = vunpack.c.l.s4 1983009808
        %v2697 = vunpack.c.0.s8 %v2696
        %v2698 = vlaneseq
        %v2699 = vshrl.u32 %v2698, 7
        %v2700 = vsub.s32 %v2697, %v2699
        %v2701 = vrot.slane %v2687, %v2700
        %v2702 = vcombine.low %v2589, %v2681
        %v2703 = vcombine.high %v2589, %v2681
        %v2705 = vunpack.c.l.s4 1983009808
        %v2706 = vunpack.c.0.s8 %v2705
        %v2707 = vlaneseq
        %v2708 = vshrl.u32 %v2707, 7
        %v2709 = vsub.s32 %v2706, %v2708
        %v2710 = vrot.slane %v2702, %v2709
        %v2712 = vunpack.c.l.s4 1983009808
        %v2713 = vunpack.c.0.s8 %v2712
        %v2714 = vlaneseq
        %v2715 = vshrl.u32 %v2714, 7
        %v2716 = vsub.s32 %v2713, %v2715
        %v2717 = vrot.slane %v2703, %v2716
        %v2718 = vcombine.low %v2694, %v2710
        %v2719 = vcombine.high %v2694, %v2710
        %v2721 = vunpack.c.l.s4 1934713408
        %v2722 = vunpack.c.0.s8 %v2721
        %v2723 = vlaneseq
        %v2724 = vshrl.u32 %v2723, 7
        %v2725 = vsub.s32 %v2722, %v2724
        %v2726 = vrot.slane %v2718, %v2725
        %v2728 = vunpack.c.l.s4 1934713408
        %v2729 = vunpack.c.0.s8 %v2728
        %v2730 = vlaneseq
        %v2731 = vshrl.u32 %v2730, 7
        %v2732 = vsub.s32 %v2729, %v2731
        %v2733 = vrot.slane %v2719, %v2732
        %v2734 = vcombine.low %v2701, %v2717
        %v2735 = vcombine.high %v2701, %v2717
        %v2737 = vunpack.c.l.s4 1934713408
        %v2738 = vunpack.c.0.s8 %v2737
        %v2739 = vlaneseq
        %v2740 = vshrl.u32 %v2739, 7
        %v2741 = vsub.s32 %v2738, %v2740
        %v2742 = vrot.slane %v2734, %v2741
        %v2744 = vunpack.c.l.s4 1934713408
        %v2745 = vunpack.c.0.s8 %v2744
        %v2746 = vlaneseq
        %v2747 = vshrl.u32 %v2746, 7
        %v2748 = vsub.s32 %v2745, %v2747
        %v2749 = vrot.slane %v2735, %v2748
        %v2750 = vcombine.high %v2726, 0.0
        %v2751 = vcombine.high %v2733, 0.0
        %v2752 = vcombine.high %v2742, 0.0
        %v2753 = vcombine.high %v2749, 0.0
        %v2754 = vcombine.low %v2726, %v2733
        %v2756 = vunpack.c.l.s4 1983009808
        %v2757 = vunpack.c.0.s8 %v2756
        %v2758 = vlaneseq
        %v2759 = vshrl.u32 %v2758, 7
        %v2760 = vsub.s32 %v2757, %v2759
        %v2761 = vrot.slane %v2754, %v2760
        %v2762 = vcombine.low %v2750, %v2751
        %v2764 = vunpack.c.l.s4 1983009808
        %v2765 = vunpack.c.0.s8 %v2764
        %v2766 = vlaneseq
        %v2767 = vshrl.u32 %v2766, 7
        %v2768 = vsub.s32 %v2765, %v2767
        %v2769 = vrot.slane %v2762, %v2768
        %v2770 = vcombine.low %v2742, %v2749
        %v2772 = vunpack.c.l.s4 1983009808
        %v2773 = vunpack.c.0.s8 %v2772
        %v2774 = vlaneseq
        %v2775 = vshrl.u32 %v2774, 7
        %v2776 = vsub.s32 %v2773, %v2775
        %v2777 = vrot.slane %v2770, %v2776
        %v2778 = vcombine.low %v2752, %v2753
        %v2780 = vunpack.c.l.s4 1983009808
        %v2781 = vunpack.c.0.s8 %v2780
        %v2782 = vlaneseq
        %v2783 = vshrl.u32 %v2782, 7
        %v2784 = vsub.s32 %v2781, %v2783
        %v2785 = vrot.slane %v2778, %v2784
        %v2786 = vcombine.low %v2761, %v2769
        %v2787 = vcombine.high %v2761, %v2769
        %v2789 = vunpack.c.l.s4 1934713408
        %v2790 = vunpack.c.0.s8 %v2789
        %v2791 = vlaneseq
        %v2792 = vshrl.u32 %v2791, 7
        %v2793 = vsub.s32 %v2790, %v2792
        %v2794 = vrot.slane %v2786, %v2793
        %v2796 = vunpack.c.l.s4 1934713408
        %v2797 = vunpack.c.0.s8 %v2796
        %v2798 = vlaneseq
        %v2799 = vshrl.u32 %v2798, 7
        %v2800 = vsub.s32 %v2797, %v2799
        %v2801 = vrot.slane %v2787, %v2800
        %v2802 = vcombine.low %v2777, %v2785
        %v2803 = vcombine.high %v2777, %v2785
        %v2805 = vunpack.c.l.s4 1934713408
        %v2806 = vunpack.c.0.s8 %v2805
        %v2807 = vlaneseq
        %v2808 = vshrl.u32 %v2807, 7
        %v2809 = vsub.s32 %v2806, %v2808
        %v2810 = vrot.slane %v2802, %v2809
        %v2812 = vunpack.c.l.s4 1934713408
        %v2813 = vunpack.c.0.s8 %v2812
        %v2814 = vlaneseq
        %v2815 = vshrl.u32 %v2814, 7
        %v2816 = vsub.s32 %v2813, %v2815
        %v2817 = vrot.slane %v2803, %v2816
        %v2818 = vcombine.low %v2794, %v2810
        %v2819 = vcombine.high %v2794, %v2810
        %v2820 = vcombine.low %v2801, %v2817
        %v2821 = vcombine.high %v2801, %v2817
        %2823 = vrot.lane.b32.xlu0 %v2819, 8
        %v2824 = vpop.permute.xlu0 %2823
        %2827 = vrot.lane.b32.xlu0 %v2820, 16
        %v2828 = vpop.permute.xlu0 %2827
        %2831 = vrot.lane.b32.xlu0 %v2821, 24
        %v2832 = vpop.permute.xlu0 %2831
        %v2834 = vsel %vm1235, %v2818, %v2824
        %v2835 = vsel %vm1806, %v2834, %v2828
        %v2836 = vsel %vm1808, %v2835, %v2832
        %v2837 = vpack.c.bf16 %v2836, %v1809
        %v2838 = vld [vmem:[%s659] sm:$0xf]
        %v2839 = vld [vmem:[%s659 + $0x4] sm:$0xf]
        %v2840 = vld [vmem:[%s659 + $0x8] sm:$0xf]
        %v2841 = vld [vmem:[%s659 + $0xc] sm:$0xf]
        %v2842 = vld [vmem:[%s662] sm:$0x1]
        %v2844 = vlaneseq
        %v2845 = vshrl.u32 %v2844, 7
        %v2846 = vsub.s32 0, %v2845
        %v2847 = vrot.slane %v2842, %v2846
        %v2853 = vunpack.c.l.b16 %v2838
        %v2854 = vunpack.c.l.b16 %v2839
        %v2855 = vunpack.c.l.b16 %v2840
        %v2856 = vunpack.c.l.b16 %v2841
        %v2857 = vpack.c.b16 %v2854, %v2853
        %v2858 = vpack.c.b16 %v2856, %v2855
        %v2862 = vsel %vm734, %v2837, 0
        %2864 = vmatprep.subr.bf16.mxu0 0
        %2865 = vmatpush1.bf16.msra.mxu0 0
        %2866 = vmatprep.subr.bf16.mxu0 0
        %2867 = vmatpush1.bf16.msra.mxu0 0
        %2868 = vmatprep.subr.bf16.mxu0 0
        %2869 = vmatpush1.bf16.msra.mxu0 0
        %2870 = vmatprep.subr.bf16.mxu0 0
        %2871 = vmatpush1.bf16.msra.mxu0 0
        %2872 = vmatprep.subr.bf16.mxu0 0
        %2873 = vmatpush1.bf16.msra.mxu0 0
        %2874 = vmatprep.subr.bf16.mxu0 0
        %2875 = vmatpush1.bf16.msra.mxu0 0
        %2876 = vmatprep.subr.bf16.mxu0 0
        %2877 = vmatpush1.bf16.msra.mxu0 %v2858
        %2878 = vmatprep.subr.bf16.mxu0 0
        %2879 = vmatpush1.bf16.msra.mxu0 %v2857
        %2880 = vmatprep.subr.bf16.mxu0 0
        %2881 = vmatpush2.bf16.msra.mxu0 0
        %2882 = vmatprep.subr.bf16.mxu0 0
        %2883 = vmatpush2.bf16.msra.mxu0 0
        %2884 = vmatprep.subr.bf16.mxu0 0
        %2885 = vmatpush2.bf16.msra.mxu0 0
        %2886 = vmatprep.subr.bf16.mxu0 0
        %2887 = vmatpush2.bf16.msra.mxu0 0
        %2888 = vmatprep.subr.bf16.mxu0 0
        %2889 = vmatpush2.bf16.msra.mxu0 0
        %2890 = vmatprep.subr.bf16.mxu0 0
        %2891 = vmatpush2.bf16.msra.mxu0 0
        %2892 = vmatprep.subr.bf16.mxu0 0
        %2893 = vmatpush2.bf16.msra.mxu0 0
        %2894 = vmatprep.subr.bf16.mxu0 0
        %2895 = vmatpush2.bf16.msra.mxu0 0
        %2896 = vmatprep.mubr.bf16.mxu0 0
        %2897 = vmatmul.mubr.bf16.gmra.mxu0 %v2862
        %v2898 = vpop.f32.mrf.mxu0
        %v2899 = vadd.f32 %v2847, %v2898
        %v2900 = vpop.f32.mrf.mxu0
        %v2901 = vpop.f32.mrf.mxu0
        %v2902 = vadd.f32 %v2847, %v2901
        %v2903 = vpop.f32.mrf.mxu0
        %2904 = vdwg.mxu0
        %v2905 = vadd.f32 %v702, %v2899
        %v2906 = vadd.f32 %v703, %v2902
        %v2907 = vsel %vm734, %v2905, 0.0
        %2908 = vadd.xlane.f32.xlu0 %v2907
        %v2909 = vpop.xlane.xlu0 %2908
        %v2910 = vsel %vm734, %v2906, 0.0
        %2911 = vadd.xlane.f32.xlu0 %v2910
        %v2912 = vpop.xlane.xlu0 %2911
        %v2913 = vrcp.pop 32.0
        %v2914 = vmul.f32 %v2909, %v2913
        %v2915 = vmul.f32 %v2912, %v2913
        %v2916 = vsub.f32 %v2905, %v2914
        %v2917 = vsub.f32 %v2906, %v2915
        %v2918 = vmul.f32 %v2916, %v2916
        %v2919 = vmul.f32 %v2917, %v2917
        %v2920 = vsel %vm734, %v2918, 0.0
        %2921 = vadd.xlane.f32.xlu0 %v2920
        %v2922 = vpop.xlane.xlu0 %2921
        %v2923 = vsel %vm734, %v2919, 0.0
        %2924 = vadd.xlane.f32.xlu0 %v2923
        %v2925 = vpop.xlane.xlu0 %2924
        %v2926 = vmul.f32 %v2922, %v2913
        %v2927 = vmul.f32 %v2925, %v2913
        %v2928 = vadd.f32 %v2926, 1e-05
        %v2929 = vadd.f32 %v2927, 1e-05
        %v2930 = vrsqrt.pop %v2928
        %v2931 = vrsqrt.pop %v2929
        %v2932 = vmul.f32 %v2916, %v2930
        %v2933 = vmul.f32 %v2917, %v2931
        %v2934 = vld [vmem:[%s665] sm:$0x1]
        %v2936 = vlaneseq
        %v2937 = vshrl.u32 %v2936, 7
        %v2938 = vsub.s32 0, %v2937
        %v2939 = vrot.slane %v2934, %v2938
        %v2941 = vmul.f32 %v2932, %v2939
        %v2942 = vmul.f32 %v2933, %v2939
        %v2943 = vld [vmem:[%s668] sm:$0x1]
        %v2945 = vlaneseq
        %v2946 = vshrl.u32 %v2945, 7
        %v2947 = vsub.s32 0, %v2946
        %v2948 = vrot.slane %v2943, %v2947
        %v2950 = vadd.f32 %v2941, %v2948
        %v2951 = vadd.f32 %v2942, %v2948
        %v2952 = vpack.c.bf16 %v2951, %v2950
        %v2953 = vld [vmem:[%s673] sm:$0xf]
        %v2954 = vld [vmem:[%s673 + $0x4] sm:$0xf]
        %v2955 = vld [vmem:[%s673 + $0x8] sm:$0xf]
        %v2956 = vld [vmem:[%s673 + $0xc] sm:$0xf]
        %v2957 = vld [vmem:[%s676] sm:$0x1]
        %v2959 = vlaneseq
        %v2960 = vshrl.u32 %v2959, 7
        %v2961 = vsub.s32 0, %v2960
        %v2962 = vrot.slane %v2957, %v2961
        %v2968 = vunpack.c.l.b16 %v2953
        %v2969 = vunpack.c.l.b16 %v2954
        %v2970 = vunpack.c.l.b16 %v2955
        %v2971 = vunpack.c.l.b16 %v2956
        %v2972 = vpack.c.b16 %v2969, %v2968
        %v2973 = vpack.c.b16 %v2971, %v2970
        %v2977 = vsel %vm734, %v2952, 0
        %2979 = vmatprep.subr.bf16.mxu0 0
        %2980 = vmatpush1.bf16.msra.mxu0 0
        %2981 = vmatprep.subr.bf16.mxu0 0
        %2982 = vmatpush1.bf16.msra.mxu0 0
        %2983 = vmatprep.subr.bf16.mxu0 0
        %2984 = vmatpush1.bf16.msra.mxu0 0
        %2985 = vmatprep.subr.bf16.mxu0 0
        %2986 = vmatpush1.bf16.msra.mxu0 0
        %2987 = vmatprep.subr.bf16.mxu0 0
        %2988 = vmatpush1.bf16.msra.mxu0 0
        %2989 = vmatprep.subr.bf16.mxu0 0
        %2990 = vmatpush1.bf16.msra.mxu0 0
        %2991 = vmatprep.subr.bf16.mxu0 0
        %2992 = vmatpush1.bf16.msra.mxu0 %v2973
        %2993 = vmatprep.subr.bf16.mxu0 0
        %2994 = vmatpush1.bf16.msra.mxu0 %v2972
        %2995 = vmatprep.subr.bf16.mxu0 0
        %2996 = vmatpush2.bf16.msra.mxu0 0
        %2997 = vmatprep.subr.bf16.mxu0 0
        %2998 = vmatpush2.bf16.msra.mxu0 0
        %2999 = vmatprep.subr.bf16.mxu0 0
        %3000 = vmatpush2.bf16.msra.mxu0 0
        %3001 = vmatprep.subr.bf16.mxu0 0
        %3002 = vmatpush2.bf16.msra.mxu0 0
        %3003 = vmatprep.subr.bf16.mxu0 0
        %3004 = vmatpush2.bf16.msra.mxu0 0
        %3005 = vmatprep.subr.bf16.mxu0 0
        %3006 = vmatpush2.bf16.msra.mxu0 0
        %3007 = vmatprep.subr.bf16.mxu0 0
        %3008 = vmatpush2.bf16.msra.mxu0 0
        %3009 = vmatprep.subr.bf16.mxu0 0
        %3010 = vmatpush2.bf16.msra.mxu0 0
        %3011 = vmatprep.mubr.bf16.mxu0 0
        %3012 = vmatmul.mubr.bf16.gmra.mxu0 %v2977
        %v3013 = vpop.f32.mrf.mxu0
        %v3014 = vadd.f32 %v2962, %v3013
        %v3015 = vpop.f32.mrf.mxu0
        %v3016 = vpop.f32.mrf.mxu0
        %v3017 = vadd.f32 %v2962, %v3016
        %v3018 = vpop.f32.mrf.mxu0
        %3019 = vdwg.mxu0
        %v3020 = vmax.f32 %v3014, 0.0
        %v3021 = vmax.f32 %v3017, 0.0
        %v3022 = vpack.c.bf16 %v3021, %v3020
        %v3023 = vld [vmem:[%s681] sm:$0xf]
        %v3024 = vld [vmem:[%s681 + $0x4] sm:$0xf]
        %v3025 = vld [vmem:[%s681 + $0x8] sm:$0xf]
        %v3026 = vld [vmem:[%s681 + $0xc] sm:$0xf]
        %v3027 = vld [vmem:[%s681 + $0x10] sm:$0xf]
        %v3028 = vld [vmem:[%s681 + $0x14] sm:$0xf]
        %v3029 = vld [vmem:[%s681 + $0x18] sm:$0xf]
        %v3030 = vld [vmem:[%s681 + $0x1c] sm:$0xf]
        %v3031 = vld [vmem:[%s684] sm:$0x1]
        %v3033 = vlaneseq
        %v3034 = vshrl.u32 %v3033, 7
        %v3035 = vsub.s32 0, %v3034
        %v3036 = vrot.slane %v3031, %v3035
        %v3046 = vunpack.c.l.b16 %v3023
        %v3047 = vunpack.c.l.b16 %v3024
        %v3048 = vunpack.c.l.b16 %v3025
        %v3049 = vunpack.c.l.b16 %v3026
        %v3050 = vunpack.c.l.b16 %v3027
        %v3051 = vunpack.c.l.b16 %v3028
        %v3052 = vunpack.c.l.b16 %v3029
        %v3053 = vunpack.c.l.b16 %v3030
        %v3054 = vpack.c.b16 %v3047, %v3046
        %v3055 = vpack.c.b16 %v3049, %v3048
        %v3056 = vpack.c.b16 %v3051, %v3050
        %v3057 = vpack.c.b16 %v3053, %v3052
        %vm3062 = vcmask 523264
        %v3064 = vsel %vm3062, %v3022, 0
        %3066 = vmatprep.subr.bf16.mxu0 0
        %3067 = vmatpush1.bf16.msra.mxu0 0
        %3068 = vmatprep.subr.bf16.mxu0 0
        %3069 = vmatpush1.bf16.msra.mxu0 0
        %3070 = vmatprep.subr.bf16.mxu0 0
        %3071 = vmatpush1.bf16.msra.mxu0 0
        %3072 = vmatprep.subr.bf16.mxu0 0
        %3073 = vmatpush1.bf16.msra.mxu0 0
        %3074 = vmatprep.subr.bf16.mxu0 0
        %3075 = vmatpush1.bf16.msra.mxu0 %v3057
        %3076 = vmatprep.subr.bf16.mxu0 0
        %3077 = vmatpush1.bf16.msra.mxu0 %v3056
        %3078 = vmatprep.subr.bf16.mxu0 0
        %3079 = vmatpush1.bf16.msra.mxu0 %v3055
        %3080 = vmatprep.subr.bf16.mxu0 0
        %3081 = vmatpush1.bf16.msra.mxu0 %v3054
        %3082 = vmatprep.subr.bf16.mxu0 0
        %3083 = vmatpush2.bf16.msra.mxu0 0
        %3084 = vmatprep.subr.bf16.mxu0 0
        %3085 = vmatpush2.bf16.msra.mxu0 0
        %3086 = vmatprep.subr.bf16.mxu0 0
        %3087 = vmatpush2.bf16.msra.mxu0 0
        %3088 = vmatprep.subr.bf16.mxu0 0
        %3089 = vmatpush2.bf16.msra.mxu0 0
        %3090 = vmatprep.subr.bf16.mxu0 0
        %3091 = vmatpush2.bf16.msra.mxu0 0
        %3092 = vmatprep.subr.bf16.mxu0 0
        %3093 = vmatpush2.bf16.msra.mxu0 0
        %3094 = vmatprep.subr.bf16.mxu0 0
        %3095 = vmatpush2.bf16.msra.mxu0 0
        %3096 = vmatprep.subr.bf16.mxu0 0
        %3097 = vmatpush2.bf16.msra.mxu0 0
        %3098 = vmatprep.mubr.bf16.mxu0 0
        %3099 = vmatmul.mubr.bf16.gmra.mxu0 %v3064
        %v3100 = vpop.f32.mrf.mxu0
        %v3101 = vadd.f32 %v3036, %v3100
        %v3102 = vpop.f32.mrf.mxu0
        %v3103 = vpop.f32.mrf.mxu0
        %v3104 = vadd.f32 %v3036, %v3103
        %v3105 = vpop.f32.mrf.mxu0
        %3106 = vdwg.mxu0
        %v3107 = vadd.f32 %v2950, %v3101
        %v3108 = vadd.f32 %v2951, %v3104
        %v3109 = vsel %vm734, %v3107, 0.0
        %3110 = vadd.xlane.f32.xlu0 %v3109
        %v3111 = vpop.xlane.xlu0 %3110
        %v3112 = vsel %vm734, %v3108, 0.0
        %3113 = vadd.xlane.f32.xlu0 %v3112
        %v3114 = vpop.xlane.xlu0 %3113
        %v3115 = vmul.f32 %v3111, %v2913
        %v3116 = vmul.f32 %v3114, %v2913
        %v3117 = vsub.f32 %v3107, %v3115
        %v3118 = vsub.f32 %v3108, %v3116
        %v3119 = vmul.f32 %v3117, %v3117
        %v3120 = vmul.f32 %v3118, %v3118
        %v3121 = vsel %vm734, %v3119, 0.0
        %3122 = vadd.xlane.f32.xlu0 %v3121
        %v3123 = vpop.xlane.xlu0 %3122
        %v3124 = vsel %vm734, %v3120, 0.0
        %3125 = vadd.xlane.f32.xlu0 %v3124
        %v3126 = vpop.xlane.xlu0 %3125
        %v3127 = vmul.f32 %v3123, %v2913
        %v3128 = vmul.f32 %v3126, %v2913
        %v3129 = vadd.f32 %v3127, 1e-05
        %v3130 = vadd.f32 %v3128, 1e-05
        %v3131 = vrsqrt.pop %v3129
        %v3132 = vrsqrt.pop %v3130
        %v3133 = vmul.f32 %v3117, %v3131
        %v3134 = vmul.f32 %v3118, %v3132
        %v3135 = vld [vmem:[%s687] sm:$0x1]
        %v3137 = vlaneseq
        %v3138 = vshrl.u32 %v3137, 7
        %v3139 = vsub.s32 0, %v3138
        %v3140 = vrot.slane %v3135, %v3139
        %v3142 = vmul.f32 %v3133, %v3140
        %v3143 = vmul.f32 %v3134, %v3140
        %v3144 = vld [vmem:[%s690] sm:$0x1]
        %v3146 = vlaneseq
        %v3147 = vshrl.u32 %v3146, 7
        %v3148 = vsub.s32 0, %v3147
        %v3149 = vrot.slane %v3144, %v3148
        %v3151 = vadd.f32 %v3142, %v3149
        %v3152 = vadd.f32 %v3143, %v3149
        %3153 = vst.msk [vmem:[#allocation2] sm:$0xff] %vm734, %v3151
        %3154 = vst.msk [vmem:[#allocation2 + $0x8] sm:$0xff] %vm734, %v3152
        %p3155 = scmp.eq.s32.totalorder %s33, 1
        // Predicated region
        $region89: #{tpu_custom_call.1} parent=75 // pred_check
          %p3156 = pneg %p3155
        $region90: #{tpu_custom_call.1} parent=75 // pred_check_branch
          %3158 = sbr.rel (%p3156) target = $region92
        $region91: #{tpu_custom_call.1} parent=75 // pred_region
          %v3160 = vsel %vm1235, %v704, 0
          %3162 = vmatprep.subr.mxu0 0.0
          %3163 = vmatpush1.msra.mxu0 0.0
          %3164 = vmatprep.subr.mxu0 0.0
          %3165 = vmatpush1.msra.mxu0 0.0
          %3166 = vmatprep.subr.mxu0 0.0
          %3167 = vmatpush1.msra.mxu0 0.0
          %3168 = vmatprep.subr.mxu0 0.0
          %3169 = vmatpush1.msra.mxu0 0.0
          %3170 = vmatprep.subr.mxu0 0.0
          %3171 = vmatpush1.msra.mxu0 0.0
          %3172 = vmatprep.subr.mxu0 0.0
          %3173 = vmatpush1.msra.mxu0 0.0
          %3174 = vmatprep.subr.mxu0 0.0
          %3175 = vmatpush1.msra.mxu0 0.0
          %3176 = vmatprep.subr.mxu0 0.0
          %3177 = vmatpush1.msra.mxu0 0.0
          %3178 = vmatprep.subr.mxu0 0.0
          %3179 = vmatpush1.msra.mxu0 0.0
          %3180 = vmatprep.subr.mxu0 0.0
          %3181 = vmatpush1.msra.mxu0 0.0
          %3182 = vmatprep.subr.mxu0 0.0
          %3183 = vmatpush1.msra.mxu0 0.0
          %3184 = vmatprep.subr.mxu0 0.0
          %3185 = vmatpush1.msra.mxu0 0.0
          %3186 = vmatprep.subr.mxu0 0.0
          %3187 = vmatpush1.msra.mxu0 0.0
          %3188 = vmatprep.subr.mxu0 0.0
          %3189 = vmatpush1.msra.mxu0 0.0
          %3190 = vmatprep.subr.mxu0 0.0
          %3191 = vmatpush1.msra.mxu0 0.0
          %3192 = vmatprep.subr.mxu0 0.0
          %3193 = vmatpush1.msra.mxu0 %v3151
          %3194 = vmatprep.subr.mxu0 0.0
          %3195 = vmatpush2.msra.mxu0 0.0
          %3196 = vmatprep.subr.mxu0 0.0
          %3197 = vmatpush2.msra.mxu0 0.0
          %3198 = vmatprep.subr.mxu0 0.0
          %3199 = vmatpush2.msra.mxu0 0.0
          %3200 = vmatprep.subr.mxu0 0.0
          %3201 = vmatpush2.msra.mxu0 0.0
          %3202 = vmatprep.subr.mxu0 0.0
          %3203 = vmatpush2.msra.mxu0 0.0
          %3204 = vmatprep.subr.mxu0 0.0
          %3205 = vmatpush2.msra.mxu0 0.0
          %3206 = vmatprep.subr.mxu0 0.0
          %3207 = vmatpush2.msra.mxu0 0.0
          %3208 = vmatprep.subr.mxu0 0.0
          %3209 = vmatpush2.msra.mxu0 0.0
          %3210 = vmatprep.subr.mxu0 0.0
          %3211 = vmatpush2.msra.mxu0 0.0
          %3212 = vmatprep.subr.mxu0 0.0
          %3213 = vmatpush2.msra.mxu0 0.0
          %3214 = vmatprep.subr.mxu0 0.0
          %3215 = vmatpush2.msra.mxu0 0.0
          %3216 = vmatprep.subr.mxu0 0.0
          %3217 = vmatpush2.msra.mxu0 0.0
          %3218 = vmatprep.subr.mxu0 0.0
          %3219 = vmatpush2.msra.mxu0 0.0
          %3220 = vmatprep.subr.mxu0 0.0
          %3221 = vmatpush2.msra.mxu0 0.0
          %3222 = vmatprep.subr.mxu0 0.0
          %3223 = vmatpush2.msra.mxu0 0.0
          %3224 = vmatprep.subr.mxu0 0.0
          %3225 = vmatpush2.msra.mxu0 0.0
          %3226 = vmatprep.mubr.f32.mxu0 0.0
          %3227 = vmatmul.mubr.f32.gmra.mxu0 %v3160
          %v3228 = vpop.f32.mrf.mxu0
          %v3229 = vadd.f32 0.0, %v3228
          %v3230 = vpop.f32.mrf.mxu0
          %3231 = vdwg.mxu0
          %v3233 = vsel %vm1235, %v705, 0
          %3235 = vmatprep.subr.mxu0 0.0
          %3236 = vmatpush1.msra.mxu0 0.0
          %3237 = vmatprep.subr.mxu0 0.0
          %3238 = vmatpush1.msra.mxu0 0.0
          %3239 = vmatprep.subr.mxu0 0.0
          %3240 = vmatpush1.msra.mxu0 0.0
          %3241 = vmatprep.subr.mxu0 0.0
          %3242 = vmatpush1.msra.mxu0 0.0
          %3243 = vmatprep.subr.mxu0 0.0
          %3244 = vmatpush1.msra.mxu0 0.0
          %3245 = vmatprep.subr.mxu0 0.0
          %3246 = vmatpush1.msra.mxu0 0.0
          %3247 = vmatprep.subr.mxu0 0.0
          %3248 = vmatpush1.msra.mxu0 0.0
          %3249 = vmatprep.subr.mxu0 0.0
          %3250 = vmatpush1.msra.mxu0 0.0
          %3251 = vmatprep.subr.mxu0 0.0
          %3252 = vmatpush1.msra.mxu0 0.0
          %3253 = vmatprep.subr.mxu0 0.0
          %3254 = vmatpush1.msra.mxu0 0.0
          %3255 = vmatprep.subr.mxu0 0.0
          %3256 = vmatpush1.msra.mxu0 0.0
          %3257 = vmatprep.subr.mxu0 0.0
          %3258 = vmatpush1.msra.mxu0 0.0
          %3259 = vmatprep.subr.mxu0 0.0
          %3260 = vmatpush1.msra.mxu0 0.0
          %3261 = vmatprep.subr.mxu0 0.0
          %3262 = vmatpush1.msra.mxu0 0.0
          %3263 = vmatprep.subr.mxu0 0.0
          %3264 = vmatpush1.msra.mxu0 0.0
          %3265 = vmatprep.subr.mxu0 0.0
          %3266 = vmatpush1.msra.mxu0 %v3152
          %3267 = vmatprep.subr.mxu0 0.0
          %3268 = vmatpush2.msra.mxu0 0.0
          %3269 = vmatprep.subr.mxu0 0.0
          %3270 = vmatpush2.msra.mxu0 0.0
          %3271 = vmatprep.subr.mxu0 0.0
          %3272 = vmatpush2.msra.mxu0 0.0
          %3273 = vmatprep.subr.mxu0 0.0
          %3274 = vmatpush2.msra.mxu0 0.0
          %3275 = vmatprep.subr.mxu0 0.0
          %3276 = vmatpush2.msra.mxu0 0.0
          %3277 = vmatprep.subr.mxu0 0.0
          %3278 = vmatpush2.msra.mxu0 0.0
          %3279 = vmatprep.subr.mxu0 0.0
          %3280 = vmatpush2.msra.mxu0 0.0
          %3281 = vmatprep.subr.mxu0 0.0
          %3282 = vmatpush2.msra.mxu0 0.0
          %3283 = vmatprep.subr.mxu0 0.0
          %3284 = vmatpush2.msra.mxu0 0.0
          %3285 = vmatprep.subr.mxu0 0.0
          %3286 = vmatpush2.msra.mxu0 0.0
          %3287 = vmatprep.subr.mxu0 0.0
          %3288 = vmatpush2.msra.mxu0 0.0
          %3289 = vmatprep.subr.mxu0 0.0
          %3290 = vmatpush2.msra.mxu0 0.0
          %3291 = vmatprep.subr.mxu0 0.0
          %3292 = vmatpush2.msra.mxu0 0.0
          %3293 = vmatprep.subr.mxu0 0.0
          %3294 = vmatpush2.msra.mxu0 0.0
          %3295 = vmatprep.subr.mxu0 0.0
          %3296 = vmatpush2.msra.mxu0 0.0
          %3297 = vmatprep.subr.mxu0 0.0
          %3298 = vmatpush2.msra.mxu0 0.0
          %3299 = vmatprep.mubr.f32.mxu0 0.0
          %3300 = vmatmul.mubr.f32.gmra.mxu0 %v3233
          %v3301 = vpop.f32.mrf.mxu0
          %v3302 = vadd.f32 0.0, %v3301
          %v3303 = vpop.f32.mrf.mxu0
          %3304 = vdwg.mxu0
          %vm3305 = vcmask 57344
          %v3306 = vsel %vm3305, %v704, 0.0
          %3307 = vadd.xlane.f32.xlu0 %v3306
          %v3308 = vpop.xlane.xlu0 %3307
          %v3309 = vsel %vm3305, %v705, 0.0
          %3310 = vadd.xlane.f32.xlu0 %v3309
          %v3311 = vpop.xlane.xlu0 %3310
          %v3312 = vmax.f32 %v3308, 1.0
          %v3313 = vmax.f32 %v3311, 1.0
          %v3314 = vrcp.pop %v3312
          %v3315 = vmul.f32 %v3229, %v3314
          %v3316 = vrcp.pop %v3313
          %v3317 = vmul.f32 %v3302, %v3316
          %vm3318 = vcmask 253952
          %3319 = vst.msk [vmem:[#allocation8] sm:$0x1] %vm3318, %v3315
          %3320 = vst.msk [vmem:[#allocation8 + $0x1] sm:$0x1] %vm3318, %v3317
        $region92: #{tpu_custom_call.1} parent=75 // pred_fallthru
          _
        // Predicated region
        $region93: #{tpu_custom_call.1} parent=75 // pred_check
          %p3321 = pneg %p422
        $region94: #{tpu_custom_call.1} parent=75 // pred_check_branch
          %3323 = sbr.rel (%p3321) target = $region96
        $region95: #{tpu_custom_call.1} parent=75 // pred_region
          %s3324 = smul.u32 2, %s32
          %s3326 = ssub.s32 32, 32
          %3327 = vsyncadd [#allocation5], %s3326
          %s3328 = smul.addr %s3324, 16
          %s3329 = scalar_lea.hbm %s14, %s3328
          %s3330 = sshll.u32 [#allocation8], 4
          %s3331 = int_to_ptr.vmem [resolvable:$true] %s3330
          %3336 = dma.vmem_to_hbm [thread:$0]  %s3331, 32, %s3329, [#allocation5], 16, 16, 1
        $region96: #{tpu_custom_call.1} parent=75 // pred_fallthru
          _
        // Predicated region
        $region97: #{tpu_custom_call.1} parent=75 // pred_check
          %p3337 = pneg %p422
        $region98: #{tpu_custom_call.1} parent=75 // pred_check_branch
          %3339 = sbr.rel (%p3337) target = $region100
        $region99: #{tpu_custom_call.1} parent=75 // pred_region
          %3340 = dma.done [#allocation5], 32
        $region100: #{tpu_custom_call.1} parent=75 // pred_fallthru
          _
      $region76: #{tpu_custom_call.1} parent=5 // pred_fallthru
        _
      %p3341 = scmp.le.s32.totalorder 2, %s23
      // Predicated region
      $region101: #{tpu_custom_call.1} parent=5 // pred_check
        %p3342 = pneg %p3341
      $region102: #{tpu_custom_call.1} parent=5 // pred_check_branch
        %3344 = sbr.rel (%p3342) target = $region104
      $region103: #{tpu_custom_call.1} parent=5 // pred_region
        %s3345 = ssub.s32 %s23, 2
      $region104: #{tpu_custom_call.1} parent=5 // pred_fallthru
        _
    $region6: #{tpu_custom_call.1} parent=1 // loop_footer
      %s27 = sadd.s32 1, %s23
    $region7: #{tpu_custom_call.1} parent=1 // loop_footer_branch
      %22 = sbr.rel target = $region3
    $region8: #{tpu_custom_call.1} parent=1 // loop_exit
      _
    %3346 = vsyncpa [#allocation4], 1
    %s3347 = scalar_lea.sflag [#allocation4], 1
    %3348 = vsyncpa %s3347, 1
    %3349 = vsyncpa [#allocation7], 1
    %3350 = vsyncpa [#allocation5], 1
    %s3351 = scalar_lea.sflag [#allocation5], 1
    %3352 = vsyncpa %s3351, 1

</llo_original>
